<compile_context>
chip_gen: v7x
topology: tpu7x:2x2x1
jax: 0.10.0
libtpu: 0.0.40
codegen_flags: <defaults>
</compile_context>

<pallas_src>
import functools

import jax
import jax.numpy as jnp
import numpy as np
from jax.experimental import pallas as pl
from jax.experimental.pallas import tpu as pltpu

BN_EPS = 1e-5


def _round_up(x, m):
    return (x + m - 1) // m * m


# ------------------------------ Pallas kernel ------------------------------ #
def _fused_pair_kernel(x4_ref, wa_ref, ba_ref, mask_ref, wb_ref, bb_ref, o_ref,
                       q_ref, *, cout_a, lph_b, l_out, a_meta, b_offs,
                       relu_a, relu_b):
    """Two fused conv3x3/s2 + folded-BN (+ReLU) layers for one sample.

    x4_ref  : (1, 16*CinA, Lph4) mod-4 phase grids of the zero-padded pair input,
              stacked phase-major along channels, each flattened row-major with
              row pitch Wr.
    wa_ref  : (9, CoutA, 16*CinA) layer-A weights; one stacked (zero-padded)
              matrix per (output phase, window offset) tap group.
    ba_ref  : (CoutA, 1) f32 layer-A folded BN bias.
    mask_ref: (4, LphB) f32; zeroes layer-A output-grid positions that correspond
              to layer-B input padding (outside layer A's true output).
    wb_ref  : (4, CoutB, 4*CoutA) layer-B weights, one per window offset.
    bb_ref  : (CoutB, 1) f32 layer-B folded BN bias.
    o_ref   : (1, CoutB, HoB*Wr) flattened layer-B output rows (junk pitch columns
              stripped by the wrapper).
    q_ref   : VMEM scratch (4*CoutA, LphB): layer A's output, stored directly as
              layer B's 4 input phase grids.  Never touches HBM.
    """
    # ---- layer A: fill the 4 output phase grids of the pair's inner layer ----
    for q_idx in range(4):
        acc = None
        for mm, off in a_meta[q_idx]:
            tap = x4_ref[0, :, off:off + lph_b]               # (16*CinA, LphB)
            d = jnp.dot(wa_ref[mm], tap, preferred_element_type=jnp.float32)
            acc = d if acc is None else acc + d
        y = acc + ba_ref[...]
        if relu_a:
            y = jnp.maximum(y, 0.0)
        y = y * mask_ref[q_idx:q_idx + 1, :]
        q_ref[q_idx * cout_a:(q_idx + 1) * cout_a, :] = y
    # ---- layer B: consume the phase grids straight out of VMEM ----
    acc = None
    for mm in range(len(b_offs)):
        off = b_offs[mm]
        tap = q_ref[:, off:off + l_out]                       # (4*CoutA, HoB*Wr)
        d = jnp.dot(wb_ref[mm].astype(jnp.float32), tap,
                    preferred_element_type=jnp.float32)
        acc = d if acc is None else acc + d
    y = acc + bb_ref[...]
    if relu_b:
        y = jnp.maximum(y, 0.0)
    o_ref[0] = y.astype(o_ref.dtype)


# ------------------------------ Plan building ------------------------------ #
def _pair_geometry(h, w):
    ho_a, wo_a = (h + 1) // 2, (w + 1) // 2         # layer-A (inner) output
    ho_b, wo_b = (ho_a + 1) // 2, (wo_a + 1) // 2   # layer-B (pair) output
    wr = _round_up(wo_b + 2, 8)   # common lane row pitch of all flattened grids
    hr_b = ho_b + 2               # layer-B input phase grid rows (incl. guards)
    hr4 = hr_b + 2                # mod-4 input phase grid rows (incl. guards)
    return dict(h=h, w=w, ho_a=ho_a, wo_a=wo_a, ho_b=ho_b, wo_b=wo_b, wr=wr,
                hr_b=hr_b, hr4=hr4, lph4=hr4 * wr, lph_b=hr_b * wr,
                l_out=ho_b * wr)


def _build_pair_plan(w_a, b_a, w_b, b_b, *, relu_a, relu_b, h, w):
    """Static per-pair plan: geometry, stacked weights, tap metadata, mask.

    w_a/w_b: BN-folded conv weights (Cout, Cin, 3, 3) f32; b_a/b_b: (Cout, 1) f32.
    Runs once outside jit (numpy)."""
    g = _pair_geometry(h, w)
    wr = g["wr"]
    w_a = np.asarray(w_a, np.float32)
    w_b = np.asarray(w_b, np.float32)
    cout_a, cin_a = w_a.shape[:2]
    cout_b = w_b.shape[0]

    # Layer A: taps grouped by (output phase q, flattened window offset); one
    # stacked (CoutA, 16*CinA) matrix per group, zero blocks where a mod-4 input
    # phase does not contribute.  Output phase (qy,qx) tap (ky,kx) reads input
    # phase ((2qy+ky)%4, (2qx+kx)%4) at window offset ((2qy+ky)//4, (2qx+kx)//4).
    groups = {}
    for qy in (0, 1):
        for qx in (0, 1):
            for ky in range(3):
                for kx in range(3):
                    ty, tx = 2 * qy + ky, 2 * qx + kx
                    key = (qy * 2 + qx, (ty // 4) * wr + (tx // 4))
                    mat = groups.setdefault(
                        key, np.zeros((cout_a, 16 * cin_a), np.float32))
                    a_idx = (ty % 4) * 4 + (tx % 4)
                    mat[:, a_idx * cin_a:(a_idx + 1) * cin_a] += w_a[:, :, ky, kx]
    keys = sorted(groups)
    assert len(keys) == 9, keys
    wa_stack = np.stack([groups[k] for k in keys])            # (9, CoutA, 16*CinA)
    a_meta = tuple(tuple((mm, off) for mm, (q, off) in enumerate(keys) if q == qi)
                   for qi in range(4))

    # Mask: zero the layer-A output-grid entries that are layer-B input padding
    # (positions outside layer A's true HoA x WoA output).
    r = np.arange(g["hr_b"])[:, None]
    c = np.arange(wr)[None, :]
    mask = np.zeros((4, g["lph_b"]), np.float32)
    for qy in (0, 1):
        for qx in (0, 1):
            oy, ox = 2 * r + qy - 1, 2 * c + qx - 1           # indices into outA
            ok = (oy >= 0) & (oy < g["ho_a"]) & (ox >= 0) & (ox < g["wo_a"])
            mask[qy * 2 + qx] = ok.astype(np.float32).reshape(-1)

    # Layer B: taps grouped by window offset (dy,dx)=(ky//2,kx//2); stacked
    # (CoutB, 4*CoutA) matrices, phase blocks ordered like q_ref's row blocks.
    wb_stack = np.zeros((4, cout_b, 4 * cout_a), np.float32)
    b_offs = []
    for dy in (0, 1):
        for dx in (0, 1):
            b_offs.append(dy * wr + dx)
            for ky in range(2 * dy, min(2 * dy + 2, 3)):
                for kx in range(2 * dx, min(2 * dx + 2, 3)):
                    p_idx = (ky % 2) * 2 + (kx % 2)
                    wb_stack[dy * 2 + dx, :,
                             p_idx * cout_a:(p_idx + 1) * cout_a] += w_b[:, :, ky, kx]

    return dict(geom=g, cin_a=cin_a, cout_a=cout_a, cout_b=cout_b,
                relu_a=relu_a, relu_b=relu_b,
                a_meta=a_meta, b_offs=tuple(b_offs),
                wa=jnp.asarray(wa_stack), ba=jnp.asarray(b_a, dtype=jnp.float32),
                mask=jnp.asarray(mask),
                wb=jnp.asarray(wb_stack), bb=jnp.asarray(b_b, dtype=jnp.float32))


# ------------------------------ Pair wrapper -------------------------------- #
def _apply_fused_pair(x, p, compute_dtype):
    """(N, CinA, H, W) -> (N, CoutB, ceil(H/4), ceil(W/4)) via one pallas_call."""
    n, cin, h, w = x.shape
    g = p["geom"]
    assert (cin, h, w) == (p["cin_a"], g["h"], g["w"]), (x.shape, g)
    wr, hr4, lph4 = g["wr"], g["hr4"], g["lph4"]
    lph_b, l_out = g["lph_b"], g["l_out"]
    cout_a, cout_b = p["cout_a"], p["cout_b"]

    # One fused XLA pass over the pair input: zero-pad (conv pad 1 + mod-4
    # alignment 2 = 3 on top/left) and rearrange into the 16 mod-4 phase grids,
    # stacked phase-major along channels.  ~1x the input moved; no im2col.
    xp = jnp.pad(x.astype(compute_dtype),
                 ((0, 0), (0, 0), (3, 4 * hr4 - 3 - h), (3, 4 * wr - 3 - w)))
    x4 = xp.reshape(n, cin, hr4, 4, wr, 4)
    x4 = x4.transpose(0, 3, 5, 1, 2, 4).reshape(n, 16 * cin, lph4)

    wa = p["wa"].astype(compute_dtype)
    wb = p["wb"].astype(compute_dtype)
    n_mm_a = wa.shape[0]

    # VMEM budget for this pair (inputs double-buffered + f32 scratch), capped at
    # 48 MiB so the same plan also fits v7x's 64 MiB physical VMEM.
    item = np.dtype(compute_dtype).itemsize
    ws = (16 * cin * lph4 + n_mm_a * cout_a * 16 * cin
          + 4 * cout_b * 4 * cout_a + cout_b * l_out) * item \
        + (4 * lph_b + cout_a + cout_b + 4 * cout_a * lph_b) * 4
    vmem_limit = int(min(48 * 2**20, max(16 * 2**20, 8 * ws)))

    kernel = functools.partial(
        _fused_pair_kernel, cout_a=cout_a, lph_b=lph_b, l_out=l_out,
        a_meta=p["a_meta"], b_offs=p["b_offs"],
        relu_a=p["relu_a"], relu_b=p["relu_b"])

    out = pl.pallas_call(
        kernel,
        out_shape=jax.ShapeDtypeStruct((n, cout_b, l_out), compute_dtype),
        grid=(n,),
        in_specs=[
            pl.BlockSpec((1, 16 * cin, lph4), lambda i: (i, 0, 0)),
            pl.BlockSpec((n_mm_a, cout_a, 16 * cin), lambda i: (0, 0, 0)),
            pl.BlockSpec((cout_a, 1), lambda i: (0, 0)),
            pl.BlockSpec((4, lph_b), lambda i: (0, 0)),
            pl.BlockSpec((4, cout_b, 4 * cout_a), lambda i: (0, 0, 0)),
            pl.BlockSpec((cout_b, 1), lambda i: (0, 0)),
        ],
        out_specs=pl.BlockSpec((1, cout_b, l_out), lambda i: (i, 0, 0)),
        scratch_shapes=[pltpu.VMEM((4 * cout_a, lph_b), jnp.float32)],
        compiler_params=pltpu.CompilerParams(
            dimension_semantics=("parallel",),
            vmem_limit_bytes=vmem_limit),
    )(x4, wa, p["ba"], p["mask"], wb, p["bb"])

    # Strip the pitch-padding columns (row pitch Wr -> true width WoB); under jit
    # this slice fuses with the next pair's pad/phase-split pass.
    return out.reshape(n, cout_b, g["ho_b"], wr)[:, :, :, :g["wo_b"]]


# ------------------------------ Param setup -------------------------------- #
def init_stem_params(key, in_dim, dim):
    """Synthetic Conv2d + BatchNorm2d (eval mode) parameters, PyTorch layouts."""
    chans = [in_dim, dim // 8, dim // 4, dim // 2, dim]
    params = []
    for i in range(4):
        cin, cout = chans[i], chans[i + 1]
        key, kw, kg, kb, km, kv = jax.random.split(key, 6)
        weight = jax.random.normal(kw, (cout, cin, 3, 3), jnp.float32) * 0.1
        gamma = 1.0 + 0.1 * jax.random.normal(kg, (cout,), jnp.float32)
        beta = 0.1 * jax.random.normal(kb, (cout,), jnp.float32)
        run_mean = 0.1 * jax.random.normal(km, (cout,), jnp.float32)
        run_var = jnp.abs(jax.random.normal(kv, (cout,), jnp.float32)) + 0.5
        params.append((weight, gamma, beta, run_mean, run_var))
    return params


def fold_layer_params(weight, gamma, beta, run_mean, run_var):
    """Fold inference-mode BN into the conv weight (scale) and a per-channel bias."""
    scale = gamma / jnp.sqrt(run_var + BN_EPS)
    w = (weight * scale[:, None, None, None]).astype(jnp.float32)
    bias = (beta - run_mean * scale).reshape(-1, 1).astype(jnp.float32)
    return w, bias


def build_stem_plan(params, h, w):
    """Fold BN and build the two fused-pair plans for a given input spatial size."""
    folded = [fold_layer_params(*p) for p in params]
    (w1, b1), (w2, b2), (w3, b3), (w4, b4) = folded
    pair1 = _build_pair_plan(w1, b1, w2, b2, relu_a=True, relu_b=True, h=h, w=w)
    pair2 = _build_pair_plan(w3, b3, w4, b4, relu_a=True, relu_b=False,
                             h=(h + 3) // 4, w=(w + 3) // 4)
    return [pair1, pair2]


# ------------------------------ Stem forward ------------------------------- #
def stem_forward(x_nchw, plan, *, compute_dtype=jnp.float32):
    y = x_nchw
    for p in plan:
        y = _apply_fused_pair(y, p, compute_dtype)
    return y.astype(x_nchw.dtype)


# -------------------------------- Reference -------------------------------- #
def stem_reference(x_nchw, params):
    x = x_nchw
    for i, (weight, gamma, beta, run_mean, run_var) in enumerate(params):
        y = jax.lax.conv_general_dilated(
            x, weight, window_strides=(2, 2), padding=((1, 1), (1, 1)),
            dimension_numbers=("NCHW", "OIHW", "NCHW"),
            precision=jax.lax.Precision.HIGHEST)
        scale = gamma / jnp.sqrt(run_var + BN_EPS)
        y = y * scale[None, :, None, None] \
            + (beta - run_mean * scale)[None, :, None, None]
        if i < 3:
            y = jnp.maximum(y, 0.0)
        x = y
    return x


if __name__ == "__main__":
    key = jax.random.PRNGKey(0)
    in_dim, dim = 4, 32                 # stem widths: 4 -> 4 -> 8 -> 16 -> 32
    N, H, W = 2, 16, 16

    key, kx = jax.random.split(key)
    x = jax.random.normal(kx, (N, in_dim, H, W), jnp.float32)   # NCHW like PyTorch
    params = init_stem_params(key, in_dim, dim)
    plan = build_stem_plan(params, H, W)

    ref = jax.block_until_ready(stem_reference(x, params))

    # f32 path (tight check).
    fwd_f32 = jax.jit(lambda v: stem_forward(v, plan, compute_dtype=jnp.float32))
    out = jax.block_until_ready(fwd_f32(x))
    assert out.shape == (N, dim, H // 16, W // 16), out.shape
    err = float(jnp.max(jnp.abs(out - ref)))
    assert jnp.allclose(out, ref, atol=2e-3, rtol=2e-3), err

    # bf16 activations/weights (recommended on v5e/v6e/v7x; f32 accumulate).
    fwd_bf16 = jax.jit(lambda v: stem_forward(v, plan, compute_dtype=jnp.bfloat16))
    out_bf16 = jax.block_until_ready(fwd_bf16(x)).astype(jnp.float32)
    rel = float(jnp.linalg.norm(out_bf16 - ref)
                / (jnp.linalg.norm(ref) + 1e-30))
    assert rel < 0.05, rel

    print("KERNEL_OK")
</pallas_src>

<mosaic_0001>
module attributes {stable_mosaic.version = 11 : i64} {
  func.func @_fused_pair_kernel(%arg0: i32, %arg1: memref<1x64x64xf32, #tpu.memory_space<vmem>>, %arg2: memref<9x4x64xf32, #tpu.memory_space<vmem>>, %arg3: memref<4x1xf32, #tpu.memory_space<vmem>>, %arg4: memref<4x48xf32, #tpu.memory_space<vmem>>, %arg5: memref<4x8x16xf32, #tpu.memory_space<vmem>>, %arg6: memref<8x1xf32, #tpu.memory_space<vmem>>, %arg7: memref<1x8x32xf32, #tpu.memory_space<vmem>>, %arg8: memref<16x48xf32, #tpu.memory_space<vmem>>) attributes {dimension_semantics = [#tpu.dimension_semantics<parallel>], iteration_bounds = array<i64: 2>, scalar_prefetch = 0 : i64, scratch_operands = 1 : i64, tpu.core_type = #tpu.core_type<tc>, window_params = [{transform_indices = @transform_0, window_bounds = array<i64: 1, 64, 64>}, {pipeline_mode = #tpu.pipeline_mode<synchronous>, transform_indices = @transform_1, window_bounds = array<i64: 9, 4, 64>}, {pipeline_mode = #tpu.pipeline_mode<synchronous>, transform_indices = @transform_2, window_bounds = array<i64: 4, 1>}, {pipeline_mode = #tpu.pipeline_mode<synchronous>, transform_indices = @transform_3, window_bounds = array<i64: 4, 48>}, {pipeline_mode = #tpu.pipeline_mode<synchronous>, transform_indices = @transform_4, window_bounds = array<i64: 4, 8, 16>}, {pipeline_mode = #tpu.pipeline_mode<synchronous>, transform_indices = @transform_5, window_bounds = array<i64: 8, 1>}, {transform_indices = @transform_6, window_bounds = array<i64: 1, 8, 32>}]} {
    %c0 = arith.constant 0 : index
    %c0_0 = arith.constant 0 : index
    %c0_1 = arith.constant 0 : index
    %0 = vector.load %arg1[%c0, %c0_0, %c0_1] : memref<1x64x64xf32, #tpu.memory_space<vmem>>, vector<1x64x48xf32>
    %1 = vector.shape_cast %0 : vector<1x64x48xf32> to vector<64x48xf32>
    %c0_2 = arith.constant 0 : index
    %c0_3 = arith.constant 0 : index
    %c0_4 = arith.constant 0 : index
    %2 = vector.load %arg2[%c0_2, %c0_3, %c0_4] : memref<9x4x64xf32, #tpu.memory_space<vmem>>, vector<1x4x64xf32>
    %3 = vector.shape_cast %2 : vector<1x4x64xf32> to vector<4x64xf32>
    %cst = arith.constant dense<0.000000e+00> : vector<4x48xf32>
    %4 = tpu.matmul %3, %1, %cst {dimension_numbers = #tpu.dot_dimension_numbers<[1], [0], [0], [1], [0, 0, 1, 1], [], []>} : vector<4x64xf32>, vector<64x48xf32>, vector<4x48xf32> -> vector<4x48xf32>
    %c0_5 = arith.constant 0 : index
    %c0_6 = arith.constant 0 : index
    %5 = vector.load %arg3[%c0_5, %c0_6] : memref<4x1xf32, #tpu.memory_space<vmem>>, vector<4x1xf32>
    %6 = vector.broadcast %5 : vector<4x1xf32> to vector<4x48xf32>
    %7 = arith.addf %4, %6 : vector<4x48xf32>
    %cst_7 = arith.constant 0.000000e+00 : f32
    %8 = vector.broadcast %cst_7 : f32 to vector<4x48xf32>
    %9 = arith.maximumf %7, %8 : vector<4x48xf32>
    %c0_8 = arith.constant 0 : index
    %c0_9 = arith.constant 0 : index
    %10 = vector.load %arg4[%c0_8, %c0_9] : memref<4x48xf32, #tpu.memory_space<vmem>>, vector<1x48xf32>
    %11 = vector.broadcast %10 : vector<1x48xf32> to vector<4x48xf32>
    %12 = arith.mulf %9, %11 : vector<4x48xf32>
    %c0_10 = arith.constant 0 : index
    %c0_11 = arith.constant 0 : index
    %13 = vector.load %arg8[%c0_10, %c0_11] : memref<16x48xf32, #tpu.memory_space<vmem>>, vector<4x48xf32>
    tpu.vector_store %arg8[%c0_10, %c0_11], %12 {strides = array<i32>} : memref<16x48xf32, #tpu.memory_space<vmem>>, vector<4x48xf32>,
    %c0_12 = arith.constant 0 : index
    %c0_13 = arith.constant 0 : index
    %c0_14 = arith.constant 0 : index
    %14 = vector.load %arg1[%c0_12, %c0_13, %c0_14] : memref<1x64x64xf32, #tpu.memory_space<vmem>>, vector<1x64x48xf32>
    %15 = vector.shape_cast %14 : vector<1x64x48xf32> to vector<64x48xf32>
    %c1 = arith.constant 1 : index
    %c0_15 = arith.constant 0 : index
    %c0_16 = arith.constant 0 : index
    %16 = vector.load %arg2[%c1, %c0_15, %c0_16] : memref<9x4x64xf32, #tpu.memory_space<vmem>>, vector<1x4x64xf32>
    %17 = vector.shape_cast %16 : vector<1x4x64xf32> to vector<4x64xf32>
    %cst_17 = arith.constant dense<0.000000e+00> : vector<4x48xf32>
    %18 = tpu.matmul %17, %15, %cst_17 {dimension_numbers = #tpu.dot_dimension_numbers<[1], [0], [0], [1], [0, 0, 1, 1], [], []>} : vector<4x64xf32>, vector<64x48xf32>, vector<4x48xf32> -> vector<4x48xf32>
    %c0_18 = arith.constant 0 : index
    %c0_19 = arith.constant 0 : index
    %c1_20 = arith.constant 1 : index
    %19 = vector.load %arg1[%c0_18, %c0_19, %c1_20] : memref<1x64x64xf32, #tpu.memory_space<vmem>>, vector<1x64x48xf32>
    %20 = vector.shape_cast %19 : vector<1x64x48xf32> to vector<64x48xf32>
    %c2 = arith.constant 2 : index
    %c0_21 = arith.constant 0 : index
    %c0_22 = arith.constant 0 : index
    %21 = vector.load %arg2[%c2, %c0_21, %c0_22] : memref<9x4x64xf32, #tpu.memory_space<vmem>>, vector<1x4x64xf32>
    %22 = vector.shape_cast %21 : vector<1x4x64xf32> to vector<4x64xf32>
    %cst_23 = arith.constant dense<0.000000e+00> : vector<4x48xf32>
    %23 = tpu.matmul %22, %20, %cst_23 {dimension_numbers = #tpu.dot_dimension_numbers<[1], [0], [0], [1], [0, 0, 1, 1], [], []>} : vector<4x64xf32>, vector<64x48xf32>, vector<4x48xf32> -> vector<4x48xf32>
    %24 = arith.addf %18, %23 : vector<4x48xf32>
    %c0_24 = arith.constant 0 : index
    %c0_25 = arith.constant 0 : index
    %25 = vector.load %arg3[%c0_24, %c0_25] : memref<4x1xf32, #tpu.memory_space<vmem>>, vector<4x1xf32>
    %26 = vector.broadcast %25 : vector<4x1xf32> to vector<4x48xf32>
    %27 = arith.addf %24, %26 : vector<4x48xf32>
    %cst_26 = arith.constant 0.000000e+00 : f32
    %28 = vector.broadcast %cst_26 : f32 to vector<4x48xf32>
    %29 = arith.maximumf %27, %28 : vector<4x48xf32>
    %c1_27 = arith.constant 1 : index
    %c0_28 = arith.constant 0 : index
    %30 = vector.load %arg4[%c1_27, %c0_28] : memref<4x48xf32, #tpu.memory_space<vmem>>, vector<1x48xf32>
    %31 = vector.broadcast %30 : vector<1x48xf32> to vector<4x48xf32>
    %32 = arith.mulf %29, %31 : vector<4x48xf32>
    %c4 = arith.constant 4 : index
    %c0_29 = arith.constant 0 : index
    %33 = vector.load %arg8[%c4, %c0_29] : memref<16x48xf32, #tpu.memory_space<vmem>>, vector<4x48xf32>
    tpu.vector_store %arg8[%c4, %c0_29], %32 {strides = array<i32>} : memref<16x48xf32, #tpu.memory_space<vmem>>, vector<4x48xf32>,
    %c0_30 = arith.constant 0 : index
    %c0_31 = arith.constant 0 : index
    %c0_32 = arith.constant 0 : index
    %34 = vector.load %arg1[%c0_30, %c0_31, %c0_32] : memref<1x64x64xf32, #tpu.memory_space<vmem>>, vector<1x64x48xf32>
    %35 = vector.shape_cast %34 : vector<1x64x48xf32> to vector<64x48xf32>
    %c3 = arith.constant 3 : index
    %c0_33 = arith.constant 0 : index
    %c0_34 = arith.constant 0 : index
    %36 = vector.load %arg2[%c3, %c0_33, %c0_34] : memref<9x4x64xf32, #tpu.memory_space<vmem>>, vector<1x4x64xf32>
    %37 = vector.shape_cast %36 : vector<1x4x64xf32> to vector<4x64xf32>
    %cst_35 = arith.constant dense<0.000000e+00> : vector<4x48xf32>
    %38 = tpu.matmul %37, %35, %cst_35 {dimension_numbers = #tpu.dot_dimension_numbers<[1], [0], [0], [1], [0, 0, 1, 1], [], []>} : vector<4x64xf32>, vector<64x48xf32>, vector<4x48xf32> -> vector<4x48xf32>
    %c0_36 = arith.constant 0 : index
    %c0_37 = arith.constant 0 : index
    %c8 = arith.constant 8 : index
    %39 = vector.load %arg1[%c0_36, %c0_37, %c8] : memref<1x64x64xf32, #tpu.memory_space<vmem>>, vector<1x64x48xf32>
    %40 = vector.shape_cast %39 : vector<1x64x48xf32> to vector<64x48xf32>
    %c4_38 = arith.constant 4 : index
    %c0_39 = arith.constant 0 : index
    %c0_40 = arith.constant 0 : index
    %41 = vector.load %arg2[%c4_38, %c0_39, %c0_40] : memref<9x4x64xf32, #tpu.memory_space<vmem>>, vector<1x4x64xf32>
    %42 = vector.shape_cast %41 : vector<1x4x64xf32> to vector<4x64xf32>
    %cst_41 = arith.constant dense<0.000000e+00> : vector<4x48xf32>
    %43 = tpu.matmul %42, %40, %cst_41 {dimension_numbers = #tpu.dot_dimension_numbers<[1], [0], [0], [1], [0, 0, 1, 1], [], []>} : vector<4x64xf32>, vector<64x48xf32>, vector<4x48xf32> -> vector<4x48xf32>
    %44 = arith.addf %38, %43 : vector<4x48xf32>
    %c0_42 = arith.constant 0 : index
    %c0_43 = arith.constant 0 : index
    %45 = vector.load %arg3[%c0_42, %c0_43] : memref<4x1xf32, #tpu.memory_space<vmem>>, vector<4x1xf32>
    %46 = vector.broadcast %45 : vector<4x1xf32> to vector<4x48xf32>
    %47 = arith.addf %44, %46 : vector<4x48xf32>
    %cst_44 = arith.constant 0.000000e+00 : f32
    %48 = vector.broadcast %cst_44 : f32 to vector<4x48xf32>
    %49 = arith.maximumf %47, %48 : vector<4x48xf32>
    %c2_45 = arith.constant 2 : index
    %c0_46 = arith.constant 0 : index
    %50 = vector.load %arg4[%c2_45, %c0_46] : memref<4x48xf32, #tpu.memory_space<vmem>>, vector<1x48xf32>
    %51 = vector.broadcast %50 : vector<1x48xf32> to vector<4x48xf32>
    %52 = arith.mulf %49, %51 : vector<4x48xf32>
    %c8_47 = arith.constant 8 : index
    %c0_48 = arith.constant 0 : index
    %53 = vector.load %arg8[%c8_47, %c0_48] : memref<16x48xf32, #tpu.memory_space<vmem>>, vector<4x48xf32>
    tpu.vector_store %arg8[%c8_47, %c0_48], %52 {strides = array<i32>} : memref<16x48xf32, #tpu.memory_space<vmem>>, vector<4x48xf32>,
    %c0_49 = arith.constant 0 : index
    %c0_50 = arith.constant 0 : index
    %c0_51 = arith.constant 0 : index
    %54 = vector.load %arg1[%c0_49, %c0_50, %c0_51] : memref<1x64x64xf32, #tpu.memory_space<vmem>>, vector<1x64x48xf32>
    %55 = vector.shape_cast %54 : vector<1x64x48xf32> to vector<64x48xf32>
    %c5 = arith.constant 5 : index
    %c0_52 = arith.constant 0 : index
    %c0_53 = arith.constant 0 : index
    %56 = vector.load %arg2[%c5, %c0_52, %c0_53] : memref<9x4x64xf32, #tpu.memory_space<vmem>>, vector<1x4x64xf32>
    %57 = vector.shape_cast %56 : vector<1x4x64xf32> to vector<4x64xf32>
    %cst_54 = arith.constant dense<0.000000e+00> : vector<4x48xf32>
    %58 = tpu.matmul %57, %55, %cst_54 {dimension_numbers = #tpu.dot_dimension_numbers<[1], [0], [0], [1], [0, 0, 1, 1], [], []>} : vector<4x64xf32>, vector<64x48xf32>, vector<4x48xf32> -> vector<4x48xf32>
    %c0_55 = arith.constant 0 : index
    %c0_56 = arith.constant 0 : index
    %c1_57 = arith.constant 1 : index
    %59 = vector.load %arg1[%c0_55, %c0_56, %c1_57] : memref<1x64x64xf32, #tpu.memory_space<vmem>>, vector<1x64x48xf32>
    %60 = vector.shape_cast %59 : vector<1x64x48xf32> to vector<64x48xf32>
    %c6 = arith.constant 6 : index
    %c0_58 = arith.constant 0 : index
    %c0_59 = arith.constant 0 : index
    %61 = vector.load %arg2[%c6, %c0_58, %c0_59] : memref<9x4x64xf32, #tpu.memory_space<vmem>>, vector<1x4x64xf32>
    %62 = vector.shape_cast %61 : vector<1x4x64xf32> to vector<4x64xf32>
    %cst_60 = arith.constant dense<0.000000e+00> : vector<4x48xf32>
    %63 = tpu.matmul %62, %60, %cst_60 {dimension_numbers = #tpu.dot_dimension_numbers<[1], [0], [0], [1], [0, 0, 1, 1], [], []>} : vector<4x64xf32>, vector<64x48xf32>, vector<4x48xf32> -> vector<4x48xf32>
    %64 = arith.addf %58, %63 : vector<4x48xf32>
    %c0_61 = arith.constant 0 : index
    %c0_62 = arith.constant 0 : index
    %c8_63 = arith.constant 8 : index
    %65 = vector.load %arg1[%c0_61, %c0_62, %c8_63] : memref<1x64x64xf32, #tpu.memory_space<vmem>>, vector<1x64x48xf32>
    %66 = vector.shape_cast %65 : vector<1x64x48xf32> to vector<64x48xf32>
    %c7 = arith.constant 7 : index
    %c0_64 = arith.constant 0 : index
    %c0_65 = arith.constant 0 : index
    %67 = vector.load %arg2[%c7, %c0_64, %c0_65] : memref<9x4x64xf32, #tpu.memory_space<vmem>>, vector<1x4x64xf32>
    %68 = vector.shape_cast %67 : vector<1x4x64xf32> to vector<4x64xf32>
    %cst_66 = arith.constant dense<0.000000e+00> : vector<4x48xf32>
    %69 = tpu.matmul %68, %66, %cst_66 {dimension_numbers = #tpu.dot_dimension_numbers<[1], [0], [0], [1], [0, 0, 1, 1], [], []>} : vector<4x64xf32>, vector<64x48xf32>, vector<4x48xf32> -> vector<4x48xf32>
    %70 = arith.addf %64, %69 : vector<4x48xf32>
    %c0_67 = arith.constant 0 : index
    %c0_68 = arith.constant 0 : index
    %c9 = arith.constant 9 : index
    %71 = vector.load %arg1[%c0_67, %c0_68, %c9] : memref<1x64x64xf32, #tpu.memory_space<vmem>>, vector<1x64x48xf32>
    %72 = vector.shape_cast %71 : vector<1x64x48xf32> to vector<64x48xf32>
    %c8_69 = arith.constant 8 : index
    %c0_70 = arith.constant 0 : index
    %c0_71 = arith.constant 0 : index
    %73 = vector.load %arg2[%c8_69, %c0_70, %c0_71] : memref<9x4x64xf32, #tpu.memory_space<vmem>>, vector<1x4x64xf32>
    %74 = vector.shape_cast %73 : vector<1x4x64xf32> to vector<4x64xf32>
    %cst_72 = arith.constant dense<0.000000e+00> : vector<4x48xf32>
    %75 = tpu.matmul %74, %72, %cst_72 {dimension_numbers = #tpu.dot_dimension_numbers<[1], [0], [0], [1], [0, 0, 1, 1], [], []>} : vector<4x64xf32>, vector<64x48xf32>, vector<4x48xf32> -> vector<4x48xf32>
    %76 = arith.addf %70, %75 : vector<4x48xf32>
    %c0_73 = arith.constant 0 : index
    %c0_74 = arith.constant 0 : index
    %77 = vector.load %arg3[%c0_73, %c0_74] : memref<4x1xf32, #tpu.memory_space<vmem>>, vector<4x1xf32>
    %78 = vector.broadcast %77 : vector<4x1xf32> to vector<4x48xf32>
    %79 = arith.addf %76, %78 : vector<4x48xf32>
    %cst_75 = arith.constant 0.000000e+00 : f32
    %80 = vector.broadcast %cst_75 : f32 to vector<4x48xf32>
    %81 = arith.maximumf %79, %80 : vector<4x48xf32>
    %c3_76 = arith.constant 3 : index
    %c0_77 = arith.constant 0 : index
    %82 = vector.load %arg4[%c3_76, %c0_77] : memref<4x48xf32, #tpu.memory_space<vmem>>, vector<1x48xf32>
    %83 = vector.broadcast %82 : vector<1x48xf32> to vector<4x48xf32>
    %84 = arith.mulf %81, %83 : vector<4x48xf32>
    %c12 = arith.constant 12 : index
    %c0_78 = arith.constant 0 : index
    %85 = vector.load %arg8[%c12, %c0_78] : memref<16x48xf32, #tpu.memory_space<vmem>>, vector<4x48xf32>
    tpu.vector_store %arg8[%c12, %c0_78], %84 {strides = array<i32>} : memref<16x48xf32, #tpu.memory_space<vmem>>, vector<4x48xf32>,
    %c0_79 = arith.constant 0 : index
    %c0_80 = arith.constant 0 : index
    %86 = vector.load %arg8[%c0_79, %c0_80] : memref<16x48xf32, #tpu.memory_space<vmem>>, vector<16x32xf32>
    %c0_81 = arith.constant 0 : index
    %c0_82 = arith.constant 0 : index
    %c0_83 = arith.constant 0 : index
    %87 = vector.load %arg5[%c0_81, %c0_82, %c0_83] : memref<4x8x16xf32, #tpu.memory_space<vmem>>, vector<1x8x16xf32>
    %88 = vector.shape_cast %87 : vector<1x8x16xf32> to vector<8x16xf32>
    %cst_84 = arith.constant dense<0.000000e+00> : vector<8x32xf32>
    %89 = tpu.matmul %88, %86, %cst_84 {dimension_numbers = #tpu.dot_dimension_numbers<[1], [0], [0], [1], [0, 0, 1, 1], [], []>} : vector<8x16xf32>, vector<16x32xf32>, vector<8x32xf32> -> vector<8x32xf32>
    %c0_85 = arith.constant 0 : index
    %c1_86 = arith.constant 1 : index
    %90 = vector.load %arg8[%c0_85, %c1_86] : memref<16x48xf32, #tpu.memory_space<vmem>>, vector<16x32xf32>
    %c1_87 = arith.constant 1 : index
    %c0_88 = arith.constant 0 : index
    %c0_89 = arith.constant 0 : index
    %91 = vector.load %arg5[%c1_87, %c0_88, %c0_89] : memref<4x8x16xf32, #tpu.memory_space<vmem>>, vector<1x8x16xf32>
    %92 = vector.shape_cast %91 : vector<1x8x16xf32> to vector<8x16xf32>
    %cst_90 = arith.constant dense<0.000000e+00> : vector<8x32xf32>
    %93 = tpu.matmul %92, %90, %cst_90 {dimension_numbers = #tpu.dot_dimension_numbers<[1], [0], [0], [1], [0, 0, 1, 1], [], []>} : vector<8x16xf32>, vector<16x32xf32>, vector<8x32xf32> -> vector<8x32xf32>
    %94 = arith.addf %89, %93 : vector<8x32xf32>
    %c0_91 = arith.constant 0 : index
    %c8_92 = arith.constant 8 : index
    %95 = vector.load %arg8[%c0_91, %c8_92] : memref<16x48xf32, #tpu.memory_space<vmem>>, vector<16x32xf32>
    %c2_93 = arith.constant 2 : index
    %c0_94 = arith.constant 0 : index
    %c0_95 = arith.constant 0 : index
    %96 = vector.load %arg5[%c2_93, %c0_94, %c0_95] : memref<4x8x16xf32, #tpu.memory_space<vmem>>, vector<1x8x16xf32>
    %97 = vector.shape_cast %96 : vector<1x8x16xf32> to vector<8x16xf32>
    %cst_96 = arith.constant dense<0.000000e+00> : vector<8x32xf32>
    %98 = tpu.matmul %97, %95, %cst_96 {dimension_numbers = #tpu.dot_dimension_numbers<[1], [0], [0], [1], [0, 0, 1, 1], [], []>} : vector<8x16xf32>, vector<16x32xf32>, vector<8x32xf32> -> vector<8x32xf32>
    %99 = arith.addf %94, %98 : vector<8x32xf32>
    %c0_97 = arith.constant 0 : index
    %c9_98 = arith.constant 9 : index
    %100 = vector.load %arg8[%c0_97, %c9_98] : memref<16x48xf32, #tpu.memory_space<vmem>>, vector<16x32xf32>
    %c3_99 = arith.constant 3 : index
    %c0_100 = arith.constant 0 : index
    %c0_101 = arith.constant 0 : index
    %101 = vector.load %arg5[%c3_99, %c0_100, %c0_101] : memref<4x8x16xf32, #tpu.memory_space<vmem>>, vector<1x8x16xf32>
    %102 = vector.shape_cast %101 : vector<1x8x16xf32> to vector<8x16xf32>
    %cst_102 = arith.constant dense<0.000000e+00> : vector<8x32xf32>
    %103 = tpu.matmul %102, %100, %cst_102 {dimension_numbers = #tpu.dot_dimension_numbers<[1], [0], [0], [1], [0, 0, 1, 1], [], []>} : vector<8x16xf32>, vector<16x32xf32>, vector<8x32xf32> -> vector<8x32xf32>
    %104 = arith.addf %99, %103 : vector<8x32xf32>
    %c0_103 = arith.constant 0 : index
    %c0_104 = arith.constant 0 : index
    %105 = vector.load %arg6[%c0_103, %c0_104] : memref<8x1xf32, #tpu.memory_space<vmem>>, vector<8x1xf32>
    %106 = vector.broadcast %105 : vector<8x1xf32> to vector<8x32xf32>
    %107 = arith.addf %104, %106 : vector<8x32xf32>
    %cst_105 = arith.constant 0.000000e+00 : f32
    %108 = vector.broadcast %cst_105 : f32 to vector<8x32xf32>
    %109 = arith.maximumf %107, %108 : vector<8x32xf32>
    %c0_106 = arith.constant 0 : index
    %c0_107 = arith.constant 0 : index
    %c0_108 = arith.constant 0 : index
    %110 = vector.load %arg7[%c0_106, %c0_107, %c0_108] : memref<1x8x32xf32, #tpu.memory_space<vmem>>, vector<1x8x32xf32>
    %111 = vector.shape_cast %110 : vector<1x8x32xf32> to vector<8x32xf32>
    %112 = vector.shape_cast %109 : vector<8x32xf32> to vector<1x8x32xf32>
    tpu.vector_store %arg7[%c0_106, %c0_107, %c0_108], %112 {strides = array<i32>} : memref<1x8x32xf32, #tpu.memory_space<vmem>>, vector<1x8x32xf32>,
    return
  }
  func.func @transform_0(%arg0: i32) -> (i32, i32, i32) {
    %c0_i32 = arith.constant 0 : i32
    %c0_i32_0 = arith.constant 0 : i32
    %c0_i32_1 = arith.constant 0 : i32
    return %arg0, %c0_i32, %c0_i32_0 : i32, i32, i32
  }
  func.func @transform_1(%arg0: i32) -> (i32, i32, i32) {
    %c0_i32 = arith.constant 0 : i32
    %c0_i32_0 = arith.constant 0 : i32
    %c0_i32_1 = arith.constant 0 : i32
    %c0_i32_2 = arith.constant 0 : i32
    return %c0_i32, %c0_i32_0, %c0_i32_1 : i32, i32, i32
  }
  func.func @transform_2(%arg0: i32) -> (i32, i32) {
    %c0_i32 = arith.constant 0 : i32
    %c0_i32_0 = arith.constant 0 : i32
    %c0_i32_1 = arith.constant 0 : i32
    return %c0_i32, %c0_i32_0 : i32, i32
  }
  func.func @transform_3(%arg0: i32) -> (i32, i32) {
    %c0_i32 = arith.constant 0 : i32
    %c0_i32_0 = arith.constant 0 : i32
    %c0_i32_1 = arith.constant 0 : i32
    return %c0_i32, %c0_i32_0 : i32, i32
  }
  func.func @transform_4(%arg0: i32) -> (i32, i32, i32) {
    %c0_i32 = arith.constant 0 : i32
    %c0_i32_0 = arith.constant 0 : i32
    %c0_i32_1 = arith.constant 0 : i32
    %c0_i32_2 = arith.constant 0 : i32
    return %c0_i32, %c0_i32_0, %c0_i32_1 : i32, i32, i32
  }
  func.func @transform_5(%arg0: i32) -> (i32, i32) {
    %c0_i32 = arith.constant 0 : i32
    %c0_i32_0 = arith.constant 0 : i32
    %c0_i32_1 = arith.constant 0 : i32
    return %c0_i32, %c0_i32_0 : i32, i32
  }
  func.func @transform_6(%arg0: i32) -> (i32, i32, i32) {
    %c0_i32 = arith.constant 0 : i32
    %c0_i32_0 = arith.constant 0 : i32
    %c0_i32_1 = arith.constant 0 : i32
    return %arg0, %c0_i32, %c0_i32_0 : i32, i32, i32
  }
}

module attributes {stable_mosaic.version = 11 : i64} {
  func.func @_fused_pair_kernel(%arg0: i32, %arg1: memref<1x128x40xf32, #tpu.memory_space<vmem>>, %arg2: memref<9x16x128xf32, #tpu.memory_space<vmem>>, %arg3: memref<16x1xf32, #tpu.memory_space<vmem>>, %arg4: memref<4x24xf32, #tpu.memory_space<vmem>>, %arg5: memref<4x32x64xf32, #tpu.memory_space<vmem>>, %arg6: memref<32x1xf32, #tpu.memory_space<vmem>>, %arg7: memref<1x32x8xf32, #tpu.memory_space<vmem>>, %arg8: memref<64x24xf32, #tpu.memory_space<vmem>>) attributes {dimension_semantics = [#tpu.dimension_semantics<parallel>], iteration_bounds = array<i64: 2>, scalar_prefetch = 0 : i64, scratch_operands = 1 : i64, tpu.core_type = #tpu.core_type<tc>, window_params = [{transform_indices = @transform_0, window_bounds = array<i64: 1, 128, 40>}, {pipeline_mode = #tpu.pipeline_mode<synchronous>, transform_indices = @transform_1, window_bounds = array<i64: 9, 16, 128>}, {pipeline_mode = #tpu.pipeline_mode<synchronous>, transform_indices = @transform_2, window_bounds = array<i64: 16, 1>}, {pipeline_mode = #tpu.pipeline_mode<synchronous>, transform_indices = @transform_3, window_bounds = array<i64: 4, 24>}, {pipeline_mode = #tpu.pipeline_mode<synchronous>, transform_indices = @transform_4, window_bounds = array<i64: 4, 32, 64>}, {pipeline_mode = #tpu.pipeline_mode<synchronous>, transform_indices = @transform_5, window_bounds = array<i64: 32, 1>}, {transform_indices = @transform_6, window_bounds = array<i64: 1, 32, 8>}]} {
    %c0 = arith.constant 0 : index
    %c0_0 = arith.constant 0 : index
    %c0_1 = arith.constant 0 : index
    %0 = vector.load %arg1[%c0, %c0_0, %c0_1] : memref<1x128x40xf32, #tpu.memory_space<vmem>>, vector<1x128x24xf32>
    %1 = vector.shape_cast %0 : vector<1x128x24xf32> to vector<128x24xf32>
    %c0_2 = arith.constant 0 : index
    %c0_3 = arith.constant 0 : index
    %c0_4 = arith.constant 0 : index
    %2 = vector.load %arg2[%c0_2, %c0_3, %c0_4] : memref<9x16x128xf32, #tpu.memory_space<vmem>>, vector<1x16x128xf32>
    %3 = vector.shape_cast %2 : vector<1x16x128xf32> to vector<16x128xf32>
    %cst = arith.constant dense<0.000000e+00> : vector<16x24xf32>
    %4 = tpu.matmul %3, %1, %cst {dimension_numbers = #tpu.dot_dimension_numbers<[1], [0], [0], [1], [0, 0, 1, 1], [], []>} : vector<16x128xf32>, vector<128x24xf32>, vector<16x24xf32> -> vector<16x24xf32>
    %c0_5 = arith.constant 0 : index
    %c0_6 = arith.constant 0 : index
    %5 = vector.load %arg3[%c0_5, %c0_6] : memref<16x1xf32, #tpu.memory_space<vmem>>, vector<16x1xf32>
    %6 = vector.broadcast %5 : vector<16x1xf32> to vector<16x24xf32>
    %7 = arith.addf %4, %6 : vector<16x24xf32>
    %cst_7 = arith.constant 0.000000e+00 : f32
    %8 = vector.broadcast %cst_7 : f32 to vector<16x24xf32>
    %9 = arith.maximumf %7, %8 : vector<16x24xf32>
    %c0_8 = arith.constant 0 : index
    %c0_9 = arith.constant 0 : index
    %10 = vector.load %arg4[%c0_8, %c0_9] : memref<4x24xf32, #tpu.memory_space<vmem>>, vector<1x24xf32>
    %11 = vector.broadcast %10 : vector<1x24xf32> to vector<16x24xf32>
    %12 = arith.mulf %9, %11 : vector<16x24xf32>
    %c0_10 = arith.constant 0 : index
    %c0_11 = arith.constant 0 : index
    %13 = vector.load %arg8[%c0_10, %c0_11] : memref<64x24xf32, #tpu.memory_space<vmem>>, vector<16x24xf32>
    tpu.vector_store %arg8[%c0_10, %c0_11], %12 {strides = array<i32>} : memref<64x24xf32, #tpu.memory_space<vmem>>, vector<16x24xf32>,
    %c0_12 = arith.constant 0 : index
    %c0_13 = arith.constant 0 : index
    %c0_14 = arith.constant 0 : index
    %14 = vector.load %arg1[%c0_12, %c0_13, %c0_14] : memref<1x128x40xf32, #tpu.memory_space<vmem>>, vector<1x128x24xf32>
    %15 = vector.shape_cast %14 : vector<1x128x24xf32> to vector<128x24xf32>
    %c1 = arith.constant 1 : index
    %c0_15 = arith.constant 0 : index
    %c0_16 = arith.constant 0 : index
    %16 = vector.load %arg2[%c1, %c0_15, %c0_16] : memref<9x16x128xf32, #tpu.memory_space<vmem>>, vector<1x16x128xf32>
    %17 = vector.shape_cast %16 : vector<1x16x128xf32> to vector<16x128xf32>
    %cst_17 = arith.constant dense<0.000000e+00> : vector<16x24xf32>
    %18 = tpu.matmul %17, %15, %cst_17 {dimension_numbers = #tpu.dot_dimension_numbers<[1], [0], [0], [1], [0, 0, 1, 1], [], []>} : vector<16x128xf32>, vector<128x24xf32>, vector<16x24xf32> -> vector<16x24xf32>
    %c0_18 = arith.constant 0 : index
    %c0_19 = arith.constant 0 : index
    %c1_20 = arith.constant 1 : index
    %19 = vector.load %arg1[%c0_18, %c0_19, %c1_20] : memref<1x128x40xf32, #tpu.memory_space<vmem>>, vector<1x128x24xf32>
    %20 = vector.shape_cast %19 : vector<1x128x24xf32> to vector<128x24xf32>
    %c2 = arith.constant 2 : index
    %c0_21 = arith.constant 0 : index
    %c0_22 = arith.constant 0 : index
    %21 = vector.load %arg2[%c2, %c0_21, %c0_22] : memref<9x16x128xf32, #tpu.memory_space<vmem>>, vector<1x16x128xf32>
    %22 = vector.shape_cast %21 : vector<1x16x128xf32> to vector<16x128xf32>
    %cst_23 = arith.constant dense<0.000000e+00> : vector<16x24xf32>
    %23 = tpu.matmul %22, %20, %cst_23 {dimension_numbers = #tpu.dot_dimension_numbers<[1], [0], [0], [1], [0, 0, 1, 1], [], []>} : vector<16x128xf32>, vector<128x24xf32>, vector<16x24xf32> -> vector<16x24xf32>
    %24 = arith.addf %18, %23 : vector<16x24xf32>
    %c0_24 = arith.constant 0 : index
    %c0_25 = arith.constant 0 : index
    %25 = vector.load %arg3[%c0_24, %c0_25] : memref<16x1xf32, #tpu.memory_space<vmem>>, vector<16x1xf32>
    %26 = vector.broadcast %25 : vector<16x1xf32> to vector<16x24xf32>
    %27 = arith.addf %24, %26 : vector<16x24xf32>
    %cst_26 = arith.constant 0.000000e+00 : f32
    %28 = vector.broadcast %cst_26 : f32 to vector<16x24xf32>
    %29 = arith.maximumf %27, %28 : vector<16x24xf32>
    %c1_27 = arith.constant 1 : index
    %c0_28 = arith.constant 0 : index
    %30 = vector.load %arg4[%c1_27, %c0_28] : memref<4x24xf32, #tpu.memory_space<vmem>>, vector<1x24xf32>
    %31 = vector.broadcast %30 : vector<1x24xf32> to vector<16x24xf32>
    %32 = arith.mulf %29, %31 : vector<16x24xf32>
    %c16 = arith.constant 16 : index
    %c0_29 = arith.constant 0 : index
    %33 = vector.load %arg8[%c16, %c0_29] : memref<64x24xf32, #tpu.memory_space<vmem>>, vector<16x24xf32>
    tpu.vector_store %arg8[%c16, %c0_29], %32 {strides = array<i32>} : memref<64x24xf32, #tpu.memory_space<vmem>>, vector<16x24xf32>,
    %c0_30 = arith.constant 0 : index
    %c0_31 = arith.constant 0 : index
    %c0_32 = arith.constant 0 : index
    %34 = vector.load %arg1[%c0_30, %c0_31, %c0_32] : memref<1x128x40xf32, #tpu.memory_space<vmem>>, vector<1x128x24xf32>
    %35 = vector.shape_cast %34 : vector<1x128x24xf32> to vector<128x24xf32>
    %c3 = arith.constant 3 : index
    %c0_33 = arith.constant 0 : index
    %c0_34 = arith.constant 0 : index
    %36 = vector.load %arg2[%c3, %c0_33, %c0_34] : memref<9x16x128xf32, #tpu.memory_space<vmem>>, vector<1x16x128xf32>
    %37 = vector.shape_cast %36 : vector<1x16x128xf32> to vector<16x128xf32>
    %cst_35 = arith.constant dense<0.000000e+00> : vector<16x24xf32>
    %38 = tpu.matmul %37, %35, %cst_35 {dimension_numbers = #tpu.dot_dimension_numbers<[1], [0], [0], [1], [0, 0, 1, 1], [], []>} : vector<16x128xf32>, vector<128x24xf32>, vector<16x24xf32> -> vector<16x24xf32>
    %c0_36 = arith.constant 0 : index
    %c0_37 = arith.constant 0 : index
    %c8 = arith.constant 8 : index
    %39 = vector.load %arg1[%c0_36, %c0_37, %c8] : memref<1x128x40xf32, #tpu.memory_space<vmem>>, vector<1x128x24xf32>
    %40 = vector.shape_cast %39 : vector<1x128x24xf32> to vector<128x24xf32>
    %c4 = arith.constant 4 : index
    %c0_38 = arith.constant 0 : index
    %c0_39 = arith.constant 0 : index
    %41 = vector.load %arg2[%c4, %c0_38, %c0_39] : memref<9x16x128xf32, #tpu.memory_space<vmem>>, vector<1x16x128xf32>
    %42 = vector.shape_cast %41 : vector<1x16x128xf32> to vector<16x128xf32>
    %cst_40 = arith.constant dense<0.000000e+00> : vector<16x24xf32>
    %43 = tpu.matmul %42, %40, %cst_40 {dimension_numbers = #tpu.dot_dimension_numbers<[1], [0], [0], [1], [0, 0, 1, 1], [], []>} : vector<16x128xf32>, vector<128x24xf32>, vector<16x24xf32> -> vector<16x24xf32>
    %44 = arith.addf %38, %43 : vector<16x24xf32>
    %c0_41 = arith.constant 0 : index
    %c0_42 = arith.constant 0 : index
    %45 = vector.load %arg3[%c0_41, %c0_42] : memref<16x1xf32, #tpu.memory_space<vmem>>, vector<16x1xf32>
    %46 = vector.broadcast %45 : vector<16x1xf32> to vector<16x24xf32>
    %47 = arith.addf %44, %46 : vector<16x24xf32>
    %cst_43 = arith.constant 0.000000e+00 : f32
    %48 = vector.broadcast %cst_43 : f32 to vector<16x24xf32>
    %49 = arith.maximumf %47, %48 : vector<16x24xf32>
    %c2_44 = arith.constant 2 : index
    %c0_45 = arith.constant 0 : index
    %50 = vector.load %arg4[%c2_44, %c0_45] : memref<4x24xf32, #tpu.memory_space<vmem>>, vector<1x24xf32>
    %51 = vector.broadcast %50 : vector<1x24xf32> to vector<16x24xf32>
    %52 = arith.mulf %49, %51 : vector<16x24xf32>
    %c32 = arith.constant 32 : index
    %c0_46 = arith.constant 0 : index
    %53 = vector.load %arg8[%c32, %c0_46] : memref<64x24xf32, #tpu.memory_space<vmem>>, vector<16x24xf32>
    tpu.vector_store %arg8[%c32, %c0_46], %52 {strides = array<i32>} : memref<64x24xf32, #tpu.memory_space<vmem>>, vector<16x24xf32>,
    %c0_47 = arith.constant 0 : index
    %c0_48 = arith.constant 0 : index
    %c0_49 = arith.constant 0 : index
    %54 = vector.load %arg1[%c0_47, %c0_48, %c0_49] : memref<1x128x40xf32, #tpu.memory_space<vmem>>, vector<1x128x24xf32>
    %55 = vector.shape_cast %54 : vector<1x128x24xf32> to vector<128x24xf32>
    %c5 = arith.constant 5 : index
    %c0_50 = arith.constant 0 : index
    %c0_51 = arith.constant 0 : index
    %56 = vector.load %arg2[%c5, %c0_50, %c0_51] : memref<9x16x128xf32, #tpu.memory_space<vmem>>, vector<1x16x128xf32>
    %57 = vector.shape_cast %56 : vector<1x16x128xf32> to vector<16x128xf32>
    %cst_52 = arith.constant dense<0.000000e+00> : vector<16x24xf32>
    %58 = tpu.matmul %57, %55, %cst_52 {dimension_numbers = #tpu.dot_dimension_numbers<[1], [0], [0], [1], [0, 0, 1, 1], [], []>} : vector<16x128xf32>, vector<128x24xf32>, vector<16x24xf32> -> vector<16x24xf32>
    %c0_53 = arith.constant 0 : index
    %c0_54 = arith.constant 0 : index
    %c1_55 = arith.constant 1 : index
    %59 = vector.load %arg1[%c0_53, %c0_54, %c1_55] : memref<1x128x40xf32, #tpu.memory_space<vmem>>, vector<1x128x24xf32>
    %60 = vector.shape_cast %59 : vector<1x128x24xf32> to vector<128x24xf32>
    %c6 = arith.constant 6 : index
    %c0_56 = arith.constant 0 : index
    %c0_57 = arith.constant 0 : index
    %61 = vector.load %arg2[%c6, %c0_56, %c0_57] : memref<9x16x128xf32, #tpu.memory_space<vmem>>, vector<1x16x128xf32>
    %62 = vector.shape_cast %61 : vector<1x16x128xf32> to vector<16x128xf32>
    %cst_58 = arith.constant dense<0.000000e+00> : vector<16x24xf32>
    %63 = tpu.matmul %62, %60, %cst_58 {dimension_numbers = #tpu.dot_dimension_numbers<[1], [0], [0], [1], [0, 0, 1, 1], [], []>} : vector<16x128xf32>, vector<128x24xf32>, vector<16x24xf32> -> vector<16x24xf32>
    %64 = arith.addf %58, %63 : vector<16x24xf32>
    %c0_59 = arith.constant 0 : index
    %c0_60 = arith.constant 0 : index
    %c8_61 = arith.constant 8 : index
    %65 = vector.load %arg1[%c0_59, %c0_60, %c8_61] : memref<1x128x40xf32, #tpu.memory_space<vmem>>, vector<1x128x24xf32>
    %66 = vector.shape_cast %65 : vector<1x128x24xf32> to vector<128x24xf32>
    %c7 = arith.constant 7 : index
    %c0_62 = arith.constant 0 : index
    %c0_63 = arith.constant 0 : index
    %67 = vector.load %arg2[%c7, %c0_62, %c0_63] : memref<9x16x128xf32, #tpu.memory_space<vmem>>, vector<1x16x128xf32>
    %68 = vector.shape_cast %67 : vector<1x16x128xf32> to vector<16x128xf32>
    %cst_64 = arith.constant dense<0.000000e+00> : vector<16x24xf32>
    %69 = tpu.matmul %68, %66, %cst_64 {dimension_numbers = #tpu.dot_dimension_numbers<[1], [0], [0], [1], [0, 0, 1, 1], [], []>} : vector<16x128xf32>, vector<128x24xf32>, vector<16x24xf32> -> vector<16x24xf32>
    %70 = arith.addf %64, %69 : vector<16x24xf32>
    %c0_65 = arith.constant 0 : index
    %c0_66 = arith.constant 0 : index
    %c9 = arith.constant 9 : index
    %71 = vector.load %arg1[%c0_65, %c0_66, %c9] : memref<1x128x40xf32, #tpu.memory_space<vmem>>, vector<1x128x24xf32>
    %72 = vector.shape_cast %71 : vector<1x128x24xf32> to vector<128x24xf32>
    %c8_67 = arith.constant 8 : index
    %c0_68 = arith.constant 0 : index
    %c0_69 = arith.constant 0 : index
    %73 = vector.load %arg2[%c8_67, %c0_68, %c0_69] : memref<9x16x128xf32, #tpu.memory_space<vmem>>, vector<1x16x128xf32>
    %74 = vector.shape_cast %73 : vector<1x16x128xf32> to vector<16x128xf32>
    %cst_70 = arith.constant dense<0.000000e+00> : vector<16x24xf32>
    %75 = tpu.matmul %74, %72, %cst_70 {dimension_numbers = #tpu.dot_dimension_numbers<[1], [0], [0], [1], [0, 0, 1, 1], [], []>} : vector<16x128xf32>, vector<128x24xf32>, vector<16x24xf32> -> vector<16x24xf32>
    %76 = arith.addf %70, %75 : vector<16x24xf32>
    %c0_71 = arith.constant 0 : index
    %c0_72 = arith.constant 0 : index
    %77 = vector.load %arg3[%c0_71, %c0_72] : memref<16x1xf32, #tpu.memory_space<vmem>>, vector<16x1xf32>
    %78 = vector.broadcast %77 : vector<16x1xf32> to vector<16x24xf32>
    %79 = arith.addf %76, %78 : vector<16x24xf32>
    %cst_73 = arith.constant 0.000000e+00 : f32
    %80 = vector.broadcast %cst_73 : f32 to vector<16x24xf32>
    %81 = arith.maximumf %79, %80 : vector<16x24xf32>
    %c3_74 = arith.constant 3 : index
    %c0_75 = arith.constant 0 : index
    %82 = vector.load %arg4[%c3_74, %c0_75] : memref<4x24xf32, #tpu.memory_space<vmem>>, vector<1x24xf32>
    %83 = vector.broadcast %82 : vector<1x24xf32> to vector<16x24xf32>
    %84 = arith.mulf %81, %83 : vector<16x24xf32>
    %c48 = arith.constant 48 : index
    %c0_76 = arith.constant 0 : index
    %85 = vector.load %arg8[%c48, %c0_76] : memref<64x24xf32, #tpu.memory_space<vmem>>, vector<16x24xf32>
    tpu.vector_store %arg8[%c48, %c0_76], %84 {strides = array<i32>} : memref<64x24xf32, #tpu.memory_space<vmem>>, vector<16x24xf32>,
    %c0_77 = arith.constant 0 : index
    %c0_78 = arith.constant 0 : index
    %86 = vector.load %arg8[%c0_77, %c0_78] : memref<64x24xf32, #tpu.memory_space<vmem>>, vector<64x8xf32>
    %c0_79 = arith.constant 0 : index
    %c0_80 = arith.constant 0 : index
    %c0_81 = arith.constant 0 : index
    %87 = vector.load %arg5[%c0_79, %c0_80, %c0_81] : memref<4x32x64xf32, #tpu.memory_space<vmem>>, vector<1x32x64xf32>
    %88 = vector.shape_cast %87 : vector<1x32x64xf32> to vector<32x64xf32>
    %cst_82 = arith.constant dense<0.000000e+00> : vector<32x8xf32>
    %89 = tpu.matmul %88, %86, %cst_82 {dimension_numbers = #tpu.dot_dimension_numbers<[1], [0], [0], [1], [0, 0, 1, 1], [], []>} : vector<32x64xf32>, vector<64x8xf32>, vector<32x8xf32> -> vector<32x8xf32>
    %c0_83 = arith.constant 0 : index
    %c1_84 = arith.constant 1 : index
    %90 = vector.load %arg8[%c0_83, %c1_84] : memref<64x24xf32, #tpu.memory_space<vmem>>, vector<64x8xf32>
    %c1_85 = arith.constant 1 : index
    %c0_86 = arith.constant 0 : index
    %c0_87 = arith.constant 0 : index
    %91 = vector.load %arg5[%c1_85, %c0_86, %c0_87] : memref<4x32x64xf32, #tpu.memory_space<vmem>>, vector<1x32x64xf32>
    %92 = vector.shape_cast %91 : vector<1x32x64xf32> to vector<32x64xf32>
    %cst_88 = arith.constant dense<0.000000e+00> : vector<32x8xf32>
    %93 = tpu.matmul %92, %90, %cst_88 {dimension_numbers = #tpu.dot_dimension_numbers<[1], [0], [0], [1], [0, 0, 1, 1], [], []>} : vector<32x64xf32>, vector<64x8xf32>, vector<32x8xf32> -> vector<32x8xf32>
    %94 = arith.addf %89, %93 : vector<32x8xf32>
    %c0_89 = arith.constant 0 : index
    %c8_90 = arith.constant 8 : index
    %95 = vector.load %arg8[%c0_89, %c8_90] : memref<64x24xf32, #tpu.memory_space<vmem>>, vector<64x8xf32>
    %c2_91 = arith.constant 2 : index
    %c0_92 = arith.constant 0 : index
    %c0_93 = arith.constant 0 : index
    %96 = vector.load %arg5[%c2_91, %c0_92, %c0_93] : memref<4x32x64xf32, #tpu.memory_space<vmem>>, vector<1x32x64xf32>
    %97 = vector.shape_cast %96 : vector<1x32x64xf32> to vector<32x64xf32>
    %cst_94 = arith.constant dense<0.000000e+00> : vector<32x8xf32>
    %98 = tpu.matmul %97, %95, %cst_94 {dimension_numbers = #tpu.dot_dimension_numbers<[1], [0], [0], [1], [0, 0, 1, 1], [], []>} : vector<32x64xf32>, vector<64x8xf32>, vector<32x8xf32> -> vector<32x8xf32>
    %99 = arith.addf %94, %98 : vector<32x8xf32>
    %c0_95 = arith.constant 0 : index
    %c9_96 = arith.constant 9 : index
    %100 = vector.load %arg8[%c0_95, %c9_96] : memref<64x24xf32, #tpu.memory_space<vmem>>, vector<64x8xf32>
    %c3_97 = arith.constant 3 : index
    %c0_98 = arith.constant 0 : index
    %c0_99 = arith.constant 0 : index
    %101 = vector.load %arg5[%c3_97, %c0_98, %c0_99] : memref<4x32x64xf32, #tpu.memory_space<vmem>>, vector<1x32x64xf32>
    %102 = vector.shape_cast %101 : vector<1x32x64xf32> to vector<32x64xf32>
    %cst_100 = arith.constant dense<0.000000e+00> : vector<32x8xf32>
    %103 = tpu.matmul %102, %100, %cst_100 {dimension_numbers = #tpu.dot_dimension_numbers<[1], [0], [0], [1], [0, 0, 1, 1], [], []>} : vector<32x64xf32>, vector<64x8xf32>, vector<32x8xf32> -> vector<32x8xf32>
    %104 = arith.addf %99, %103 : vector<32x8xf32>
    %c0_101 = arith.constant 0 : index
    %c0_102 = arith.constant 0 : index
    %105 = vector.load %arg6[%c0_101, %c0_102] : memref<32x1xf32, #tpu.memory_space<vmem>>, vector<32x1xf32>
    %106 = vector.broadcast %105 : vector<32x1xf32> to vector<32x8xf32>
    %107 = arith.addf %104, %106 : vector<32x8xf32>
    %c0_103 = arith.constant 0 : index
    %c0_104 = arith.constant 0 : index
    %c0_105 = arith.constant 0 : index
    %108 = vector.load %arg7[%c0_103, %c0_104, %c0_105] : memref<1x32x8xf32, #tpu.memory_space<vmem>>, vector<1x32x8xf32>
    %109 = vector.shape_cast %108 : vector<1x32x8xf32> to vector<32x8xf32>
    %110 = vector.shape_cast %107 : vector<32x8xf32> to vector<1x32x8xf32>
    tpu.vector_store %arg7[%c0_103, %c0_104, %c0_105], %110 {strides = array<i32>} : memref<1x32x8xf32, #tpu.memory_space<vmem>>, vector<1x32x8xf32>,
    return
  }
  func.func @transform_0(%arg0: i32) -> (i32, i32, i32) {
    %c0_i32 = arith.constant 0 : i32
    %c0_i32_0 = arith.constant 0 : i32
    %c0_i32_1 = arith.constant 0 : i32
    return %arg0, %c0_i32, %c0_i32_0 : i32, i32, i32
  }
  func.func @transform_1(%arg0: i32) -> (i32, i32, i32) {
    %c0_i32 = arith.constant 0 : i32
    %c0_i32_0 = arith.constant 0 : i32
    %c0_i32_1 = arith.constant 0 : i32
    %c0_i32_2 = arith.constant 0 : i32
    return %c0_i32, %c0_i32_0, %c0_i32_1 : i32, i32, i32
  }
  func.func @transform_2(%arg0: i32) -> (i32, i32) {
    %c0_i32 = arith.constant 0 : i32
    %c0_i32_0 = arith.constant 0 : i32
    %c0_i32_1 = arith.constant 0 : i32
    return %c0_i32, %c0_i32_0 : i32, i32
  }
  func.func @transform_3(%arg0: i32) -> (i32, i32) {
    %c0_i32 = arith.constant 0 : i32
    %c0_i32_0 = arith.constant 0 : i32
    %c0_i32_1 = arith.constant 0 : i32
    return %c0_i32, %c0_i32_0 : i32, i32
  }
  func.func @transform_4(%arg0: i32) -> (i32, i32, i32) {
    %c0_i32 = arith.constant 0 : i32
    %c0_i32_0 = arith.constant 0 : i32
    %c0_i32_1 = arith.constant 0 : i32
    %c0_i32_2 = arith.constant 0 : i32
    return %c0_i32, %c0_i32_0, %c0_i32_1 : i32, i32, i32
  }
  func.func @transform_5(%arg0: i32) -> (i32, i32) {
    %c0_i32 = arith.constant 0 : i32
    %c0_i32_0 = arith.constant 0 : i32
    %c0_i32_1 = arith.constant 0 : i32
    return %c0_i32, %c0_i32_0 : i32, i32
  }
  func.func @transform_6(%arg0: i32) -> (i32, i32, i32) {
    %c0_i32 = arith.constant 0 : i32
    %c0_i32_0 = arith.constant 0 : i32
    %c0_i32_1 = arith.constant 0 : i32
    return %arg0, %c0_i32, %c0_i32_0 : i32, i32, i32
  }
}

</mosaic_0001>

<llo_original>
// kernel: _lambda_.2
$region0: #{_lambda_.2}
  #allocation0 [shape = 'u32[]', space=smem, size = 0x4, offset = 0x4, fixed_abs, tag = 'smem constant byte address 0x4 - core index']
  #allocation1 [shape = 'u32[144,128]{1,0:T(1,128)}', space=vmem, size = 0x12000, scoped, tag = 'internal scratch']
  #allocation2 [shape = 'f32[16,48]{1,0:T(8,128)}', space=vmem, size = 0x2000, scoped, tag = 'scratch operand']
  %s0 = inlined_call_operand.vmem [shape: f32[2,64,64], index: 0, kind: input, shape index: {}]
  %s1 = inlined_call_operand.vmem [shape: f32[9,4,64], index: 1, kind: input, shape index: {}]
  %s2 = inlined_call_operand.vmem [shape: f32[4,1], index: 2, kind: input, shape index: {}]
  %s3 = inlined_call_operand.vmem [shape: f32[4,48], index: 3, kind: input, shape index: {}]
  %s4 = inlined_call_operand.vmem [shape: f32[4,8,16], index: 4, kind: input, shape index: {}]
  %s5 = inlined_call_operand.vmem [shape: f32[8,1], index: 5, kind: input, shape index: {}]
  %s6 = inlined_call_operand.vmem [shape: f32[2,8,32], index: 6, kind: output, shape index: {}]
  %s7 = sld [smem:[#allocation0]]
  $region57: #{_lambda_.2} parent=0
    _
  %s9 = ssub.s32 1, %s7
  %s10 = scalar_select 0, %s9, %s7
  loop: start=0, step=1, limit=4
  $region2: #{_lambda_.2} parent=0 // loop_pre_header
    _
  $region3: #{_lambda_.2} parent=0 // loop_header
    %s12 = sphi 0, %s16
    %p13 = scmp.ge.s32.totalorder %s12, 4
    %s22 = sphi 0, %s24
    %s25 = sphi 0, %s22
    %s26 = sphi 0, %s25
    %s42 = sphi 0, %s26
    %s46 = sphi 0, %s46
    %s48 = sphi 0, %s46
    %s49 = sphi 0, %s48
    %s63 = sphi 0, %s49
    %s67 = sphi 0, %s67
    %s69 = sphi 0, %s67
    %s70 = sphi 0, %s69
    %s84 = sphi 0, %s70
    %s88 = sphi 0, %s88
    %s90 = sphi 0, %s88
    %s91 = sphi 0, %s90
    %s105 = sphi 0, %s91
    %s109 = sphi 0, %s109
    %s111 = sphi 0, %s109
    %s112 = sphi 0, %s111
    %s126 = sphi 0, %s112
    %s130 = sphi 0, %s130
    %s132 = sphi 0, %s130
    %s133 = sphi 0, %s132
    %s147 = sphi 0, %s133
    %s153 = sphi 0, %s155
    %s156 = sphi 0, %s153
    %s157 = sphi 0, %s156
    %s173 = sphi 0, %s157
  $region4: #{_lambda_.2} parent=0 // loop_header_branch
    %15 = sbr.rel (%p13) target = $region8
  $region5: #{_lambda_.2} parent=0 // loop_body
    %s17 = ssub.s32 %s12, 1
    %s18 = ssub.s32 %s12, 2
    %s19 = sadd.s32 %s12, 1
    %s20 = ssub.s32 %s12, %s19
    %p21 = scmp.eq.s32.totalorder %s20, 0
    %s23 = sadd.s32 %s22, 1
    %s24 = scalar_select %p21, %s22, %s23
    %p27 = pneg %p21
    %p28 = scmp.eq.s32.totalorder %s12, 1
    %p29 = por %p27, %p28
    %p30 = scmp.ne.s32.totalorder %s22, %s25
    %p31 = scmp.eq.s32.totalorder %s12, 0
    %p32 = por %p30, %p31
    %p33 = scmp.ne.s32.totalorder %s22, %s25
    %p34 = scmp.eq.s32.totalorder %s17, 1
    %p35 = por %p33, %p34
    %p36 = scmp.ne.s32.totalorder %s25, %s26
    %p37 = scmp.eq.s32.totalorder %s17, 0
    %p38 = por %p36, %p37
    %p39 = scmp.ne.s32.totalorder %s25, %s26
    %p40 = scmp.eq.s32.totalorder %s18, 1
    %p41 = por %p39, %p40
    %p43 = scmp.ne.s32.totalorder %s26, %s42
    %p44 = scmp.eq.s32.totalorder %s18, 0
    %p45 = por %p43, %p44
    %s47 = sadd.s32 %s46, 1
    %p50 = scmp.eq.s32.totalorder %s12, 1
    %p51 = scmp.ne.s32.totalorder %s46, %s48
    %p52 = scmp.eq.s32.totalorder %s12, 0
    %p53 = por %p51, %p52
    %p54 = scmp.ne.s32.totalorder %s46, %s48
    %p55 = scmp.eq.s32.totalorder %s17, 1
    %p56 = por %p54, %p55
    %p57 = scmp.ne.s32.totalorder %s48, %s49
    %p58 = scmp.eq.s32.totalorder %s17, 0
    %p59 = por %p57, %p58
    %p60 = scmp.ne.s32.totalorder %s48, %s49
    %p61 = scmp.eq.s32.totalorder %s18, 1
    %p62 = por %p60, %p61
    %p64 = scmp.ne.s32.totalorder %s49, %s63
    %p65 = scmp.eq.s32.totalorder %s18, 0
    %p66 = por %p64, %p65
    %s68 = sadd.s32 %s67, 1
    %p71 = scmp.eq.s32.totalorder %s12, 1
    %p72 = scmp.ne.s32.totalorder %s67, %s69
    %p73 = scmp.eq.s32.totalorder %s12, 0
    %p74 = por %p72, %p73
    %p75 = scmp.ne.s32.totalorder %s67, %s69
    %p76 = scmp.eq.s32.totalorder %s17, 1
    %p77 = por %p75, %p76
    %p78 = scmp.ne.s32.totalorder %s69, %s70
    %p79 = scmp.eq.s32.totalorder %s17, 0
    %p80 = por %p78, %p79
    %p81 = scmp.ne.s32.totalorder %s69, %s70
    %p82 = scmp.eq.s32.totalorder %s18, 1
    %p83 = por %p81, %p82
    %p85 = scmp.ne.s32.totalorder %s70, %s84
    %p86 = scmp.eq.s32.totalorder %s18, 0
    %p87 = por %p85, %p86
    %s89 = sadd.s32 %s88, 1
    %p92 = scmp.eq.s32.totalorder %s12, 1
    %p93 = scmp.ne.s32.totalorder %s88, %s90
    %p94 = scmp.eq.s32.totalorder %s12, 0
    %p95 = por %p93, %p94
    %p96 = scmp.ne.s32.totalorder %s88, %s90
    %p97 = scmp.eq.s32.totalorder %s17, 1
    %p98 = por %p96, %p97
    %p99 = scmp.ne.s32.totalorder %s90, %s91
    %p100 = scmp.eq.s32.totalorder %s17, 0
    %p101 = por %p99, %p100
    %p102 = scmp.ne.s32.totalorder %s90, %s91
    %p103 = scmp.eq.s32.totalorder %s18, 1
    %p104 = por %p102, %p103
    %p106 = scmp.ne.s32.totalorder %s91, %s105
    %p107 = scmp.eq.s32.totalorder %s18, 0
    %p108 = por %p106, %p107
    %s110 = sadd.s32 %s109, 1
    %p113 = scmp.eq.s32.totalorder %s12, 1
    %p114 = scmp.ne.s32.totalorder %s109, %s111
    %p115 = scmp.eq.s32.totalorder %s12, 0
    %p116 = por %p114, %p115
    %p117 = scmp.ne.s32.totalorder %s109, %s111
    %p118 = scmp.eq.s32.totalorder %s17, 1
    %p119 = por %p117, %p118
    %p120 = scmp.ne.s32.totalorder %s111, %s112
    %p121 = scmp.eq.s32.totalorder %s17, 0
    %p122 = por %p120, %p121
    %p123 = scmp.ne.s32.totalorder %s111, %s112
    %p124 = scmp.eq.s32.totalorder %s18, 1
    %p125 = por %p123, %p124
    %p127 = scmp.ne.s32.totalorder %s112, %s126
    %p128 = scmp.eq.s32.totalorder %s18, 0
    %p129 = por %p127, %p128
    %s131 = sadd.s32 %s130, 1
    %p134 = scmp.eq.s32.totalorder %s12, 1
    %p135 = scmp.ne.s32.totalorder %s130, %s132
    %p136 = scmp.eq.s32.totalorder %s12, 0
    %p137 = por %p135, %p136
    %p138 = scmp.ne.s32.totalorder %s130, %s132
    %p139 = scmp.eq.s32.totalorder %s17, 1
    %p140 = por %p138, %p139
    %p141 = scmp.ne.s32.totalorder %s132, %s133
    %p142 = scmp.eq.s32.totalorder %s17, 0
    %p143 = por %p141, %p142
    %p144 = scmp.ne.s32.totalorder %s132, %s133
    %p145 = scmp.eq.s32.totalorder %s18, 1
    %p146 = por %p144, %p145
    %p148 = scmp.ne.s32.totalorder %s133, %s147
    %p149 = scmp.eq.s32.totalorder %s18, 0
    %p150 = por %p148, %p149
    %s151 = ssub.s32 %s12, %s19
    %p152 = scmp.eq.s32.totalorder %s151, 0
    %s154 = sadd.s32 %s153, 1
    %s155 = scalar_select %p152, %s153, %s154
    %p158 = pneg %p152
    %p159 = scmp.eq.s32.totalorder %s12, 1
    %p160 = por %p158, %p159
    %p161 = scmp.ne.s32.totalorder %s153, %s156
    %p162 = scmp.eq.s32.totalorder %s12, 0
    %p163 = por %p161, %p162
    %p164 = scmp.ne.s32.totalorder %s153, %s156
    %p165 = scmp.eq.s32.totalorder %s17, 1
    %p166 = por %p164, %p165
    %p167 = scmp.ne.s32.totalorder %s156, %s157
    %p168 = scmp.eq.s32.totalorder %s17, 0
    %p169 = por %p167, %p168
    %p170 = scmp.ne.s32.totalorder %s156, %s157
    %p171 = scmp.eq.s32.totalorder %s18, 1
    %p172 = por %p170, %p171
    %p174 = scmp.ne.s32.totalorder %s157, %s173
    %p175 = scmp.eq.s32.totalorder %s18, 0
    %p176 = por %p174, %p175
    %p177 = scmp.le.s32.totalorder 1, %s12
    %p178 = scmp.lt.s32.totalorder %s12, 3
    %p179 = pnand %p177, %p178
    %p180 = pneg %p179
    // Predicated region
    $region9: #{_lambda_.2} parent=5 // pred_check
      _
    $region10: #{_lambda_.2} parent=5 // pred_check_branch
      %182 = sbr.rel (%p179) target = $region12
    $region11: #{_lambda_.2} parent=5 // pred_region
      %s183 = ssub.s32 %s12, 1
      // Predicated region
      $region13: #{_lambda_.2} parent=11 // pred_check
        %p184 = pneg %p59
      $region14: #{_lambda_.2} parent=11 // pred_check_branch
        %186 = sbr.rel (%p184) target = $region16
      $region15: #{_lambda_.2} parent=11 // pred_region
        _
      $region16: #{_lambda_.2} parent=11 // pred_fallthru
        _
      // Predicated region
      $region17: #{_lambda_.2} parent=11 // pred_check
        %p187 = pneg %p80
      $region18: #{_lambda_.2} parent=11 // pred_check_branch
        %189 = sbr.rel (%p187) target = $region20
      $region19: #{_lambda_.2} parent=11 // pred_region
        _
      $region20: #{_lambda_.2} parent=11 // pred_fallthru
        _
      // Predicated region
      $region21: #{_lambda_.2} parent=11 // pred_check
        %p190 = pneg %p101
      $region22: #{_lambda_.2} parent=11 // pred_check_branch
        %192 = sbr.rel (%p190) target = $region24
      $region23: #{_lambda_.2} parent=11 // pred_region
        _
      $region24: #{_lambda_.2} parent=11 // pred_fallthru
        _
      // Predicated region
      $region25: #{_lambda_.2} parent=11 // pred_check
        %p193 = pneg %p122
      $region26: #{_lambda_.2} parent=11 // pred_check_branch
        %195 = sbr.rel (%p193) target = $region28
      $region27: #{_lambda_.2} parent=11 // pred_region
        _
      $region28: #{_lambda_.2} parent=11 // pred_fallthru
        _
      // Predicated region
      $region29: #{_lambda_.2} parent=11 // pred_check
        %p196 = pneg %p143
      $region30: #{_lambda_.2} parent=11 // pred_check_branch
        %198 = sbr.rel (%p196) target = $region32
      $region31: #{_lambda_.2} parent=11 // pred_region
        _
      $region32: #{_lambda_.2} parent=11 // pred_fallthru
        _
    $region12: #{_lambda_.2} parent=5 // pred_fallthru
      _
    %p199 = scmp.lt.s32.totalorder %s12, 2
    // Predicated region
    $region33: #{_lambda_.2} parent=5 // pred_check
      %p200 = pneg %p199
    $region34: #{_lambda_.2} parent=5 // pred_check_branch
      %202 = sbr.rel (%p200) target = $region36
    $region35: #{_lambda_.2} parent=5 // pred_region
      // Predicated region
      $region37: #{_lambda_.2} parent=35 // pred_check
        %p203 = pneg %p32
      $region38: #{_lambda_.2} parent=35 // pred_check_branch
        %205 = sbr.rel (%p203) target = $region40
      $region39: #{_lambda_.2} parent=35 // pred_region
        %p206 = scmp.lt.s32.totalorder %s12, 1
        %s207 = scalar_select %p206, %s12, 1
        %s208 = smul.addr %s207, 8
        %s209 = smul.addr %s208, 8
        %s210 = scalar_lea.vmem %s0, %s209
      $region40: #{_lambda_.2} parent=35 // pred_fallthru
        _
    $region36: #{_lambda_.2} parent=5 // pred_fallthru
      _
    %p211 = scmp.le.s32.totalorder 1, %s12
    %p212 = scmp.lt.s32.totalorder %s12, 3
    %p213 = pnand %p211, %p212
    %p214 = pneg %p213
    // Predicated region
    $region41: #{_lambda_.2} parent=5 // pred_check
      _
    $region42: #{_lambda_.2} parent=5 // pred_check_branch
      %216 = sbr.rel (%p213) target = $region44
    $region43: #{_lambda_.2} parent=5 // pred_region
      %s217 = ssub.s32 %s12, 1
      %p218 = scmp.lt.s32.totalorder %s17, 1
      %s219 = scalar_select %p218, %s17, 1
      %s220 = smul.addr %s219, 8
      %s221 = smul.addr %s220, 8
      %s222 = scalar_lea.vmem %s0, %s221
      %p223 = pneg %p38
      %p224 = pneg %p35
      %p225 = pneg %p59
      %p226 = pneg %p56
      %p227 = pneg %p80
      %p228 = pneg %p77
      %p229 = pneg %p101
      %p230 = pneg %p98
      %p231 = pneg %p122
      %p232 = pneg %p119
      %p233 = pneg %p143
      %p234 = pneg %p140
      %p235 = pneg %p169
      %p236 = pneg %p166
      %p237 = scmp.lt.s32.totalorder %s17, 1
      %s238 = scalar_select %p237, %s17, 1
      %s239 = smul.addr %s238, 8
      %s240 = scalar_lea.vmem %s6, %s239
      %p241 = scmp.lt.s32.totalorder %s17, 1
      %s242 = scalar_select %p241, %s17, 1
      %s243 = smul.addr %s242, 8
      %s244 = smul.addr %s243, 8
      %s245 = scalar_lea.vmem %s0, %s244
      %p246 = scmp.lt.s32.totalorder %s17, 1
      %s247 = scalar_select %p246, %s17, 1
      %s248 = smul.addr %s247, 8
      %s249 = scalar_lea.vmem %s6, %s248
      %v250 = vld [vmem:[%s245] sm:$0xff]
      %v251 = vld [vmem:[%s245 + $0x8] sm:$0xff]
      %v252 = vld [vmem:[%s245 + $0x10] sm:$0xff]
      %v253 = vld [vmem:[%s245 + $0x18] sm:$0xff]
      %v254 = vld [vmem:[%s245 + $0x20] sm:$0xff]
      %v255 = vld [vmem:[%s245 + $0x28] sm:$0xff]
      %v256 = vld [vmem:[%s245 + $0x30] sm:$0xff]
      %v257 = vld [vmem:[%s245 + $0x38] sm:$0xff]
      %v258 = vld [vmem:[%s1] sm:$0xf]
      %v259 = vld [vmem:[%s2] sm:$0xf]
      %261 = vset.pattern.permute.xlu0 0
      %262 = vperm.xlu0 %261, %v259
      %v263 = vpop.permute.xlu0 %262
      %vm265 = vcmask 523264
      %v267 = vsel %vm265, %v258, 0
      %269 = vmatprep.subr.mxu0 0.0
      %270 = vmatpush1.msra.mxu0 %v250
      %271 = vmatprep.subr.mxu0 0.0
      %272 = vmatpush1.msra.mxu0 %v251
      %273 = vmatprep.subr.mxu0 0.0
      %274 = vmatpush1.msra.mxu0 %v252
      %275 = vmatprep.subr.mxu0 0.0
      %276 = vmatpush1.msra.mxu0 %v253
      %277 = vmatprep.subr.mxu0 0.0
      %278 = vmatpush1.msra.mxu0 %v254
      %279 = vmatprep.subr.mxu0 0.0
      %280 = vmatpush1.msra.mxu0 %v255
      %281 = vmatprep.subr.mxu0 0.0
      %282 = vmatpush1.msra.mxu0 %v256
      %283 = vmatprep.subr.mxu0 0.0
      %284 = vmatpush1.msra.mxu0 %v257
      %285 = vmatprep.subr.mxu0 0.0
      %286 = vmatpush1.msra.mxu0 0.0
      %287 = vmatprep.subr.mxu0 0.0
      %288 = vmatpush1.msra.mxu0 0.0
      %289 = vmatprep.subr.mxu0 0.0
      %290 = vmatpush1.msra.mxu0 0.0
      %291 = vmatprep.subr.mxu0 0.0
      %292 = vmatpush1.msra.mxu0 0.0
      %293 = vmatprep.subr.mxu0 0.0
      %294 = vmatpush1.msra.mxu0 0.0
      %295 = vmatprep.subr.mxu0 0.0
      %296 = vmatpush1.msra.mxu0 0.0
      %297 = vmatprep.subr.mxu0 0.0
      %298 = vmatpush1.msra.mxu0 0.0
      %299 = vmatprep.subr.mxu0 0.0
      %300 = vmatpush1.msra.mxu0 0.0
      %301 = vmatprep.subr.mxu0 0.0
      %302 = vmatpush1.msra.mxu0 0.0
      %303 = vmatprep.subr.mxu0 0.0
      %304 = vmatpush1.msra.mxu0 0.0
      %305 = vmatprep.subr.mxu0 0.0
      %306 = vmatpush1.msra.mxu0 0.0
      %307 = vmatprep.subr.mxu0 0.0
      %308 = vmatpush1.msra.mxu0 0.0
      %309 = vmatprep.subr.mxu0 0.0
      %310 = vmatpush1.msra.mxu0 0.0
      %311 = vmatprep.subr.mxu0 0.0
      %312 = vmatpush1.msra.mxu0 0.0
      %313 = vmatprep.subr.mxu0 0.0
      %314 = vmatpush1.msra.mxu0 0.0
      %315 = vmatprep.subr.mxu0 0.0
      %316 = vmatpush1.msra.mxu0 0.0
      %317 = vmatprep.subr.mxu0 0.0
      %318 = vmatpush1.msra.mxu0 0.0
      %319 = vmatprep.subr.mxu0 0.0
      %320 = vmatpush1.msra.mxu0 0.0
      %321 = vmatprep.subr.mxu0 0.0
      %322 = vmatpush1.msra.mxu0 0.0
      %323 = vmatprep.subr.mxu0 0.0
      %324 = vmatpush1.msra.mxu0 0.0
      %325 = vmatprep.subr.mxu0 0.0
      %326 = vmatpush1.msra.mxu0 0.0
      %327 = vmatprep.subr.mxu0 0.0
      %328 = vmatpush1.msra.mxu0 0.0
      %329 = vmatprep.subr.mxu0 0.0
      %330 = vmatpush1.msra.mxu0 0.0
      %331 = vmatprep.subr.mxu0 0.0
      %332 = vmatpush1.msra.mxu0 0.0
      %333 = vmatprep.mubr.f32.mxu0 0.0
      %334 = vmatmul.mubr.f32.gmra.mrb[0].mxu0 %v267
      %v335 = vpop.f32.mrb[0].mxu0
      %v336 = vadd.f32 %v263, %v335
      %v337 = vpop.f32.mrb[0].mxu0
      %338 = vdwg.mxu0
      %v339 = vmax.f32 %v336, 0.0
      %v340 = vld [vmem:[%s3] sm:$0x1]
      %v341 = vlaneseq
      %v342 = vshrl.u32 %v341, 7
      %v343 = vsub.s32 0, %v342
      %v344 = vrot.slane %v340, %v343
      %v345 = vmul.f32 %v339, %v344
      %vm346 = vcmask 388096
      %347 = vst.msk [vmem:[#allocation2] sm:$0xf] %vm346, %v345
      %v348 = vld [vmem:[%s245] sm:$0xff]
      %v349 = vld [vmem:[%s245 + $0x8] sm:$0xff]
      %v350 = vld [vmem:[%s245 + $0x10] sm:$0xff]
      %v351 = vld [vmem:[%s245 + $0x18] sm:$0xff]
      %v352 = vld [vmem:[%s245 + $0x20] sm:$0xff]
      %v353 = vld [vmem:[%s245 + $0x28] sm:$0xff]
      %v354 = vld [vmem:[%s245 + $0x30] sm:$0xff]
      %v355 = vld [vmem:[%s245 + $0x38] sm:$0xff]
      %s356 = scalar_lea.vmem %s1, 4
      %v357 = vld [vmem:[%s356] sm:$0xf]
      %s358 = scalar_lea.vmem %s1, 8
      %v359 = vld [vmem:[%s358] sm:$0xf]
      %368 = vrot.lane.b32.xlu0 %v348, 127
      %v369 = vpop.permute.xlu0 %368
      %370 = vrot.lane.b32.xlu0 %v349, 127
      %v371 = vpop.permute.xlu0 %370
      %372 = vrot.lane.b32.xlu0 %v350, 127
      %v373 = vpop.permute.xlu0 %372
      %374 = vrot.lane.b32.xlu0 %v351, 127
      %v375 = vpop.permute.xlu0 %374
      %376 = vrot.lane.b32.xlu0 %v352, 127
      %v377 = vpop.permute.xlu0 %376
      %378 = vrot.lane.b32.xlu0 %v353, 127
      %v379 = vpop.permute.xlu0 %378
      %380 = vrot.lane.b32.xlu0 %v354, 127
      %v381 = vpop.permute.xlu0 %380
      %382 = vrot.lane.b32.xlu0 %v355, 127
      %v383 = vpop.permute.xlu0 %382
      %v393 = vsel %vm265, %v359, 0
      %395 = vmatprep.subr.mxu0 0.0
      %396 = vmatpush1.msra.mxu0 %v369
      %397 = vmatprep.subr.mxu0 0.0
      %398 = vmatpush1.msra.mxu0 %v371
      %399 = vmatprep.subr.mxu0 0.0
      %400 = vmatpush1.msra.mxu0 %v373
      %401 = vmatprep.subr.mxu0 0.0
      %402 = vmatpush1.msra.mxu0 %v375
      %403 = vmatprep.subr.mxu0 0.0
      %404 = vmatpush1.msra.mxu0 %v377
      %405 = vmatprep.subr.mxu0 0.0
      %406 = vmatpush1.msra.mxu0 %v379
      %407 = vmatprep.subr.mxu0 0.0
      %408 = vmatpush1.msra.mxu0 %v381
      %409 = vmatprep.subr.mxu0 0.0
      %410 = vmatpush1.msra.mxu0 %v383
      %411 = vmatprep.subr.mxu0 0.0
      %412 = vmatpush1.msra.mxu0 0.0
      %413 = vmatprep.subr.mxu0 0.0
      %414 = vmatpush1.msra.mxu0 0.0
      %415 = vmatprep.subr.mxu0 0.0
      %416 = vmatpush1.msra.mxu0 0.0
      %417 = vmatprep.subr.mxu0 0.0
      %418 = vmatpush1.msra.mxu0 0.0
      %419 = vmatprep.subr.mxu0 0.0
      %420 = vmatpush1.msra.mxu0 0.0
      %421 = vmatprep.subr.mxu0 0.0
      %422 = vmatpush1.msra.mxu0 0.0
      %423 = vmatprep.subr.mxu0 0.0
      %424 = vmatpush1.msra.mxu0 0.0
      %425 = vmatprep.subr.mxu0 0.0
      %426 = vmatpush1.msra.mxu0 0.0
      %427 = vmatprep.subr.mxu0 0.0
      %428 = vmatpush1.msra.mxu0 0.0
      %429 = vmatprep.subr.mxu0 0.0
      %430 = vmatpush1.msra.mxu0 0.0
      %431 = vmatprep.subr.mxu0 0.0
      %432 = vmatpush1.msra.mxu0 0.0
      %433 = vmatprep.subr.mxu0 0.0
      %434 = vmatpush1.msra.mxu0 0.0
      %435 = vmatprep.subr.mxu0 0.0
      %436 = vmatpush1.msra.mxu0 0.0
      %437 = vmatprep.subr.mxu0 0.0
      %438 = vmatpush1.msra.mxu0 0.0
      %439 = vmatprep.subr.mxu0 0.0
      %440 = vmatpush1.msra.mxu0 0.0
      %441 = vmatprep.subr.mxu0 0.0
      %442 = vmatpush1.msra.mxu0 0.0
      %443 = vmatprep.subr.mxu0 0.0
      %444 = vmatpush1.msra.mxu0 0.0
      %445 = vmatprep.subr.mxu0 0.0
      %446 = vmatpush1.msra.mxu0 0.0
      %447 = vmatprep.subr.mxu0 0.0
      %448 = vmatpush1.msra.mxu0 0.0
      %449 = vmatprep.subr.mxu0 0.0
      %450 = vmatpush1.msra.mxu0 0.0
      %451 = vmatprep.subr.mxu0 0.0
      %452 = vmatpush1.msra.mxu0 0.0
      %453 = vmatprep.subr.mxu0 0.0
      %454 = vmatpush1.msra.mxu0 0.0
      %455 = vmatprep.subr.mxu0 0.0
      %456 = vmatpush1.msra.mxu0 0.0
      %457 = vmatprep.subr.mxu0 0.0
      %458 = vmatpush1.msra.mxu0 0.0
      %459 = vmatprep.mubr.f32.mxu0 0.0
      %460 = vmatmul.mubr.f32.gmra.mrb[0].mxu0 %v393
      %v461 = vpop.f32.mrb[0].mxu0
      %v462 = vadd.f32 0.0, %v461
      %v463 = vpop.f32.mrb[0].mxu0
      %464 = vdwg.mxu0
      %v466 = vsel %vm265, %v357, 0
      %468 = vmatprep.subr.mxu0 0.0
      %469 = vmatpush1.msra.mxu0 %v348
      %470 = vmatprep.subr.mxu0 0.0
      %471 = vmatpush1.msra.mxu0 %v349
      %472 = vmatprep.subr.mxu0 0.0
      %473 = vmatpush1.msra.mxu0 %v350
      %474 = vmatprep.subr.mxu0 0.0
      %475 = vmatpush1.msra.mxu0 %v351
      %476 = vmatprep.subr.mxu0 0.0
      %477 = vmatpush1.msra.mxu0 %v352
      %478 = vmatprep.subr.mxu0 0.0
      %479 = vmatpush1.msra.mxu0 %v353
      %480 = vmatprep.subr.mxu0 0.0
      %481 = vmatpush1.msra.mxu0 %v354
      %482 = vmatprep.subr.mxu0 0.0
      %483 = vmatpush1.msra.mxu0 %v355
      %484 = vmatprep.subr.mxu0 0.0
      %485 = vmatpush1.msra.mxu0 0.0
      %486 = vmatprep.subr.mxu0 0.0
      %487 = vmatpush1.msra.mxu0 0.0
      %488 = vmatprep.subr.mxu0 0.0
      %489 = vmatpush1.msra.mxu0 0.0
      %490 = vmatprep.subr.mxu0 0.0
      %491 = vmatpush1.msra.mxu0 0.0
      %492 = vmatprep.subr.mxu0 0.0
      %493 = vmatpush1.msra.mxu0 0.0
      %494 = vmatprep.subr.mxu0 0.0
      %495 = vmatpush1.msra.mxu0 0.0
      %496 = vmatprep.subr.mxu0 0.0
      %497 = vmatpush1.msra.mxu0 0.0
      %498 = vmatprep.subr.mxu0 0.0
      %499 = vmatpush1.msra.mxu0 0.0
      %500 = vmatprep.subr.mxu0 0.0
      %501 = vmatpush1.msra.mxu0 0.0
      %502 = vmatprep.subr.mxu0 0.0
      %503 = vmatpush1.msra.mxu0 0.0
      %504 = vmatprep.subr.mxu0 0.0
      %505 = vmatpush1.msra.mxu0 0.0
      %506 = vmatprep.subr.mxu0 0.0
      %507 = vmatpush1.msra.mxu0 0.0
      %508 = vmatprep.subr.mxu0 0.0
      %509 = vmatpush1.msra.mxu0 0.0
      %510 = vmatprep.subr.mxu0 0.0
      %511 = vmatpush1.msra.mxu0 0.0
      %512 = vmatprep.subr.mxu0 0.0
      %513 = vmatpush1.msra.mxu0 0.0
      %514 = vmatprep.subr.mxu0 0.0
      %515 = vmatpush1.msra.mxu0 0.0
      %516 = vmatprep.subr.mxu0 0.0
      %517 = vmatpush1.msra.mxu0 0.0
      %518 = vmatprep.subr.mxu0 0.0
      %519 = vmatpush1.msra.mxu0 0.0
      %520 = vmatprep.subr.mxu0 0.0
      %521 = vmatpush1.msra.mxu0 0.0
      %522 = vmatprep.subr.mxu0 0.0
      %523 = vmatpush1.msra.mxu0 0.0
      %524 = vmatprep.subr.mxu0 0.0
      %525 = vmatpush1.msra.mxu0 0.0
      %526 = vmatprep.subr.mxu0 0.0
      %527 = vmatpush1.msra.mxu0 0.0
      %528 = vmatprep.subr.mxu0 0.0
      %529 = vmatpush1.msra.mxu0 0.0
      %530 = vmatprep.subr.mxu0 0.0
      %531 = vmatpush1.msra.mxu0 0.0
      %532 = vmatprep.mubr.f32.mxu0 0.0
      %533 = vmatmul.mubr.f32.gmra.mrb[0].mxu0 %v466
      %v534 = vpop.f32.mrb[0].mxu0
      %v535 = vadd.f32 %v462, %v534
      %v536 = vpop.f32.mrb[0].mxu0
      %537 = vdwg.mxu0
      %v538 = vld [vmem:[%s2] sm:$0xf]
      %540 = vset.pattern.permute.xlu0 0
      %541 = vperm.xlu0 %540, %v538
      %v542 = vpop.permute.xlu0 %541
      %v544 = vadd.f32 %v535, %v542
      %v545 = vmax.f32 %v544, 0.0
      %v546 = vld [vmem:[%s3 + $0x1] sm:$0x1]
      %v547 = vlaneseq
      %v548 = vshrl.u32 %v547, 7
      %v549 = vsub.s32 0, %v548
      %v550 = vrot.slane %v546, %v549
      %v551 = vmul.f32 %v545, %v550
      %552 = vst.msk [vmem:[#allocation2 + $0x4] sm:$0xf] %vm346, %v551
      %v553 = vld [vmem:[%s245] sm:$0xff]
      %v554 = vld [vmem:[%s245 + $0x8] sm:$0xff]
      %v555 = vld [vmem:[%s245 + $0x10] sm:$0xff]
      %v556 = vld [vmem:[%s245 + $0x18] sm:$0xff]
      %v557 = vld [vmem:[%s245 + $0x20] sm:$0xff]
      %v558 = vld [vmem:[%s245 + $0x28] sm:$0xff]
      %v559 = vld [vmem:[%s245 + $0x30] sm:$0xff]
      %v560 = vld [vmem:[%s245 + $0x38] sm:$0xff]
      %s561 = scalar_lea.vmem %s1, 12
      %v562 = vld [vmem:[%s561] sm:$0xf]
      %s563 = scalar_lea.vmem %s1, 16
      %v564 = vld [vmem:[%s563] sm:$0xf]
      %573 = vrot.lane.b32.xlu0 %v553, 120
      %v574 = vpop.permute.xlu0 %573
      %575 = vrot.lane.b32.xlu0 %v554, 120
      %v576 = vpop.permute.xlu0 %575
      %577 = vrot.lane.b32.xlu0 %v555, 120
      %v578 = vpop.permute.xlu0 %577
      %579 = vrot.lane.b32.xlu0 %v556, 120
      %v580 = vpop.permute.xlu0 %579
      %581 = vrot.lane.b32.xlu0 %v557, 120
      %v582 = vpop.permute.xlu0 %581
      %583 = vrot.lane.b32.xlu0 %v558, 120
      %v584 = vpop.permute.xlu0 %583
      %585 = vrot.lane.b32.xlu0 %v559, 120
      %v586 = vpop.permute.xlu0 %585
      %587 = vrot.lane.b32.xlu0 %v560, 120
      %v588 = vpop.permute.xlu0 %587
      %v598 = vsel %vm265, %v564, 0
      %600 = vmatprep.subr.mxu0 0.0
      %601 = vmatpush1.msra.mxu0 %v574
      %602 = vmatprep.subr.mxu0 0.0
      %603 = vmatpush1.msra.mxu0 %v576
      %604 = vmatprep.subr.mxu0 0.0
      %605 = vmatpush1.msra.mxu0 %v578
      %606 = vmatprep.subr.mxu0 0.0
      %607 = vmatpush1.msra.mxu0 %v580
      %608 = vmatprep.subr.mxu0 0.0
      %609 = vmatpush1.msra.mxu0 %v582
      %610 = vmatprep.subr.mxu0 0.0
      %611 = vmatpush1.msra.mxu0 %v584
      %612 = vmatprep.subr.mxu0 0.0
      %613 = vmatpush1.msra.mxu0 %v586
      %614 = vmatprep.subr.mxu0 0.0
      %615 = vmatpush1.msra.mxu0 %v588
      %616 = vmatprep.subr.mxu0 0.0
      %617 = vmatpush1.msra.mxu0 0.0
      %618 = vmatprep.subr.mxu0 0.0
      %619 = vmatpush1.msra.mxu0 0.0
      %620 = vmatprep.subr.mxu0 0.0
      %621 = vmatpush1.msra.mxu0 0.0
      %622 = vmatprep.subr.mxu0 0.0
      %623 = vmatpush1.msra.mxu0 0.0
      %624 = vmatprep.subr.mxu0 0.0
      %625 = vmatpush1.msra.mxu0 0.0
      %626 = vmatprep.subr.mxu0 0.0
      %627 = vmatpush1.msra.mxu0 0.0
      %628 = vmatprep.subr.mxu0 0.0
      %629 = vmatpush1.msra.mxu0 0.0
      %630 = vmatprep.subr.mxu0 0.0
      %631 = vmatpush1.msra.mxu0 0.0
      %632 = vmatprep.subr.mxu0 0.0
      %633 = vmatpush1.msra.mxu0 0.0
      %634 = vmatprep.subr.mxu0 0.0
      %635 = vmatpush1.msra.mxu0 0.0
      %636 = vmatprep.subr.mxu0 0.0
      %637 = vmatpush1.msra.mxu0 0.0
      %638 = vmatprep.subr.mxu0 0.0
      %639 = vmatpush1.msra.mxu0 0.0
      %640 = vmatprep.subr.mxu0 0.0
      %641 = vmatpush1.msra.mxu0 0.0
      %642 = vmatprep.subr.mxu0 0.0
      %643 = vmatpush1.msra.mxu0 0.0
      %644 = vmatprep.subr.mxu0 0.0
      %645 = vmatpush1.msra.mxu0 0.0
      %646 = vmatprep.subr.mxu0 0.0
      %647 = vmatpush1.msra.mxu0 0.0
      %648 = vmatprep.subr.mxu0 0.0
      %649 = vmatpush1.msra.mxu0 0.0
      %650 = vmatprep.subr.mxu0 0.0
      %651 = vmatpush1.msra.mxu0 0.0
      %652 = vmatprep.subr.mxu0 0.0
      %653 = vmatpush1.msra.mxu0 0.0
      %654 = vmatprep.subr.mxu0 0.0
      %655 = vmatpush1.msra.mxu0 0.0
      %656 = vmatprep.subr.mxu0 0.0
      %657 = vmatpush1.msra.mxu0 0.0
      %658 = vmatprep.subr.mxu0 0.0
      %659 = vmatpush1.msra.mxu0 0.0
      %660 = vmatprep.subr.mxu0 0.0
      %661 = vmatpush1.msra.mxu0 0.0
      %662 = vmatprep.subr.mxu0 0.0
      %663 = vmatpush1.msra.mxu0 0.0
      %664 = vmatprep.mubr.f32.mxu0 0.0
      %665 = vmatmul.mubr.f32.gmra.mrb[0].mxu0 %v598
      %v666 = vpop.f32.mrb[0].mxu0
      %v667 = vadd.f32 0.0, %v666
      %v668 = vpop.f32.mrb[0].mxu0
      %669 = vdwg.mxu0
      %v671 = vsel %vm265, %v562, 0
      %673 = vmatprep.subr.mxu0 0.0
      %674 = vmatpush1.msra.mxu0 %v553
      %675 = vmatprep.subr.mxu0 0.0
      %676 = vmatpush1.msra.mxu0 %v554
      %677 = vmatprep.subr.mxu0 0.0
      %678 = vmatpush1.msra.mxu0 %v555
      %679 = vmatprep.subr.mxu0 0.0
      %680 = vmatpush1.msra.mxu0 %v556
      %681 = vmatprep.subr.mxu0 0.0
      %682 = vmatpush1.msra.mxu0 %v557
      %683 = vmatprep.subr.mxu0 0.0
      %684 = vmatpush1.msra.mxu0 %v558
      %685 = vmatprep.subr.mxu0 0.0
      %686 = vmatpush1.msra.mxu0 %v559
      %687 = vmatprep.subr.mxu0 0.0
      %688 = vmatpush1.msra.mxu0 %v560
      %689 = vmatprep.subr.mxu0 0.0
      %690 = vmatpush1.msra.mxu0 0.0
      %691 = vmatprep.subr.mxu0 0.0
      %692 = vmatpush1.msra.mxu0 0.0
      %693 = vmatprep.subr.mxu0 0.0
      %694 = vmatpush1.msra.mxu0 0.0
      %695 = vmatprep.subr.mxu0 0.0
      %696 = vmatpush1.msra.mxu0 0.0
      %697 = vmatprep.subr.mxu0 0.0
      %698 = vmatpush1.msra.mxu0 0.0
      %699 = vmatprep.subr.mxu0 0.0
      %700 = vmatpush1.msra.mxu0 0.0
      %701 = vmatprep.subr.mxu0 0.0
      %702 = vmatpush1.msra.mxu0 0.0
      %703 = vmatprep.subr.mxu0 0.0
      %704 = vmatpush1.msra.mxu0 0.0
      %705 = vmatprep.subr.mxu0 0.0
      %706 = vmatpush1.msra.mxu0 0.0
      %707 = vmatprep.subr.mxu0 0.0
      %708 = vmatpush1.msra.mxu0 0.0
      %709 = vmatprep.subr.mxu0 0.0
      %710 = vmatpush1.msra.mxu0 0.0
      %711 = vmatprep.subr.mxu0 0.0
      %712 = vmatpush1.msra.mxu0 0.0
      %713 = vmatprep.subr.mxu0 0.0
      %714 = vmatpush1.msra.mxu0 0.0
      %715 = vmatprep.subr.mxu0 0.0
      %716 = vmatpush1.msra.mxu0 0.0
      %717 = vmatprep.subr.mxu0 0.0
      %718 = vmatpush1.msra.mxu0 0.0
      %719 = vmatprep.subr.mxu0 0.0
      %720 = vmatpush1.msra.mxu0 0.0
      %721 = vmatprep.subr.mxu0 0.0
      %722 = vmatpush1.msra.mxu0 0.0
      %723 = vmatprep.subr.mxu0 0.0
      %724 = vmatpush1.msra.mxu0 0.0
      %725 = vmatprep.subr.mxu0 0.0
      %726 = vmatpush1.msra.mxu0 0.0
      %727 = vmatprep.subr.mxu0 0.0
      %728 = vmatpush1.msra.mxu0 0.0
      %729 = vmatprep.subr.mxu0 0.0
      %730 = vmatpush1.msra.mxu0 0.0
      %731 = vmatprep.subr.mxu0 0.0
      %732 = vmatpush1.msra.mxu0 0.0
      %733 = vmatprep.subr.mxu0 0.0
      %734 = vmatpush1.msra.mxu0 0.0
      %735 = vmatprep.subr.mxu0 0.0
      %736 = vmatpush1.msra.mxu0 0.0
      %737 = vmatprep.mubr.f32.mxu0 0.0
      %738 = vmatmul.mubr.f32.gmra.mrb[0].mxu0 %v671
      %v739 = vpop.f32.mrb[0].mxu0
      %v740 = vadd.f32 %v667, %v739
      %v741 = vpop.f32.mrb[0].mxu0
      %742 = vdwg.mxu0
      %v743 = vld [vmem:[%s2] sm:$0xf]
      %745 = vset.pattern.permute.xlu0 0
      %746 = vperm.xlu0 %745, %v743
      %v747 = vpop.permute.xlu0 %746
      %v749 = vadd.f32 %v740, %v747
      %v750 = vmax.f32 %v749, 0.0
      %v751 = vld [vmem:[%s3 + $0x2] sm:$0x1]
      %v752 = vlaneseq
      %v753 = vshrl.u32 %v752, 7
      %v754 = vsub.s32 0, %v753
      %v755 = vrot.slane %v751, %v754
      %v756 = vmul.f32 %v750, %v755
      %757 = vst.msk [vmem:[#allocation2 + $0x8] sm:$0xf] %vm346, %v756
      %v758 = vld [vmem:[%s245] sm:$0xff]
      %v759 = vld [vmem:[%s245 + $0x8] sm:$0xff]
      %v760 = vld [vmem:[%s245 + $0x10] sm:$0xff]
      %v761 = vld [vmem:[%s245 + $0x18] sm:$0xff]
      %v762 = vld [vmem:[%s245 + $0x20] sm:$0xff]
      %v763 = vld [vmem:[%s245 + $0x28] sm:$0xff]
      %v764 = vld [vmem:[%s245 + $0x30] sm:$0xff]
      %v765 = vld [vmem:[%s245 + $0x38] sm:$0xff]
      %s766 = scalar_lea.vmem %s1, 20
      %v767 = vld [vmem:[%s766] sm:$0xf]
      %s768 = scalar_lea.vmem %s1, 24
      %v769 = vld [vmem:[%s768] sm:$0xf]
      %778 = vrot.lane.b32.xlu0 %v758, 127
      %v779 = vpop.permute.xlu0 %778
      %780 = vrot.lane.b32.xlu0 %v759, 127
      %v781 = vpop.permute.xlu0 %780
      %782 = vrot.lane.b32.xlu0 %v760, 127
      %v783 = vpop.permute.xlu0 %782
      %784 = vrot.lane.b32.xlu0 %v761, 127
      %v785 = vpop.permute.xlu0 %784
      %786 = vrot.lane.b32.xlu0 %v762, 127
      %v787 = vpop.permute.xlu0 %786
      %788 = vrot.lane.b32.xlu0 %v763, 127
      %v789 = vpop.permute.xlu0 %788
      %790 = vrot.lane.b32.xlu0 %v764, 127
      %v791 = vpop.permute.xlu0 %790
      %792 = vrot.lane.b32.xlu0 %v765, 127
      %v793 = vpop.permute.xlu0 %792
      %v803 = vsel %vm265, %v769, 0
      %805 = vmatprep.subr.mxu0 0.0
      %806 = vmatpush1.msra.mxu0 %v779
      %807 = vmatprep.subr.mxu0 0.0
      %808 = vmatpush1.msra.mxu0 %v781
      %809 = vmatprep.subr.mxu0 0.0
      %810 = vmatpush1.msra.mxu0 %v783
      %811 = vmatprep.subr.mxu0 0.0
      %812 = vmatpush1.msra.mxu0 %v785
      %813 = vmatprep.subr.mxu0 0.0
      %814 = vmatpush1.msra.mxu0 %v787
      %815 = vmatprep.subr.mxu0 0.0
      %816 = vmatpush1.msra.mxu0 %v789
      %817 = vmatprep.subr.mxu0 0.0
      %818 = vmatpush1.msra.mxu0 %v791
      %819 = vmatprep.subr.mxu0 0.0
      %820 = vmatpush1.msra.mxu0 %v793
      %821 = vmatprep.subr.mxu0 0.0
      %822 = vmatpush1.msra.mxu0 0.0
      %823 = vmatprep.subr.mxu0 0.0
      %824 = vmatpush1.msra.mxu0 0.0
      %825 = vmatprep.subr.mxu0 0.0
      %826 = vmatpush1.msra.mxu0 0.0
      %827 = vmatprep.subr.mxu0 0.0
      %828 = vmatpush1.msra.mxu0 0.0
      %829 = vmatprep.subr.mxu0 0.0
      %830 = vmatpush1.msra.mxu0 0.0
      %831 = vmatprep.subr.mxu0 0.0
      %832 = vmatpush1.msra.mxu0 0.0
      %833 = vmatprep.subr.mxu0 0.0
      %834 = vmatpush1.msra.mxu0 0.0
      %835 = vmatprep.subr.mxu0 0.0
      %836 = vmatpush1.msra.mxu0 0.0
      %837 = vmatprep.subr.mxu0 0.0
      %838 = vmatpush1.msra.mxu0 0.0
      %839 = vmatprep.subr.mxu0 0.0
      %840 = vmatpush1.msra.mxu0 0.0
      %841 = vmatprep.subr.mxu0 0.0
      %842 = vmatpush1.msra.mxu0 0.0
      %843 = vmatprep.subr.mxu0 0.0
      %844 = vmatpush1.msra.mxu0 0.0
      %845 = vmatprep.subr.mxu0 0.0
      %846 = vmatpush1.msra.mxu0 0.0
      %847 = vmatprep.subr.mxu0 0.0
      %848 = vmatpush1.msra.mxu0 0.0
      %849 = vmatprep.subr.mxu0 0.0
      %850 = vmatpush1.msra.mxu0 0.0
      %851 = vmatprep.subr.mxu0 0.0
      %852 = vmatpush1.msra.mxu0 0.0
      %853 = vmatprep.subr.mxu0 0.0
      %854 = vmatpush1.msra.mxu0 0.0
      %855 = vmatprep.subr.mxu0 0.0
      %856 = vmatpush1.msra.mxu0 0.0
      %857 = vmatprep.subr.mxu0 0.0
      %858 = vmatpush1.msra.mxu0 0.0
      %859 = vmatprep.subr.mxu0 0.0
      %860 = vmatpush1.msra.mxu0 0.0
      %861 = vmatprep.subr.mxu0 0.0
      %862 = vmatpush1.msra.mxu0 0.0
      %863 = vmatprep.subr.mxu0 0.0
      %864 = vmatpush1.msra.mxu0 0.0
      %865 = vmatprep.subr.mxu0 0.0
      %866 = vmatpush1.msra.mxu0 0.0
      %867 = vmatprep.subr.mxu0 0.0
      %868 = vmatpush1.msra.mxu0 0.0
      %869 = vmatprep.mubr.f32.mxu0 0.0
      %870 = vmatmul.mubr.f32.gmra.mrb[0].mxu0 %v803
      %v871 = vpop.f32.mrb[0].mxu0
      %v872 = vadd.f32 0.0, %v871
      %v873 = vpop.f32.mrb[0].mxu0
      %874 = vdwg.mxu0
      %v876 = vsel %vm265, %v767, 0
      %878 = vmatprep.subr.mxu0 0.0
      %879 = vmatpush1.msra.mxu0 %v758
      %880 = vmatprep.subr.mxu0 0.0
      %881 = vmatpush1.msra.mxu0 %v759
      %882 = vmatprep.subr.mxu0 0.0
      %883 = vmatpush1.msra.mxu0 %v760
      %884 = vmatprep.subr.mxu0 0.0
      %885 = vmatpush1.msra.mxu0 %v761
      %886 = vmatprep.subr.mxu0 0.0
      %887 = vmatpush1.msra.mxu0 %v762
      %888 = vmatprep.subr.mxu0 0.0
      %889 = vmatpush1.msra.mxu0 %v763
      %890 = vmatprep.subr.mxu0 0.0
      %891 = vmatpush1.msra.mxu0 %v764
      %892 = vmatprep.subr.mxu0 0.0
      %893 = vmatpush1.msra.mxu0 %v765
      %894 = vmatprep.subr.mxu0 0.0
      %895 = vmatpush1.msra.mxu0 0.0
      %896 = vmatprep.subr.mxu0 0.0
      %897 = vmatpush1.msra.mxu0 0.0
      %898 = vmatprep.subr.mxu0 0.0
      %899 = vmatpush1.msra.mxu0 0.0
      %900 = vmatprep.subr.mxu0 0.0
      %901 = vmatpush1.msra.mxu0 0.0
      %902 = vmatprep.subr.mxu0 0.0
      %903 = vmatpush1.msra.mxu0 0.0
      %904 = vmatprep.subr.mxu0 0.0
      %905 = vmatpush1.msra.mxu0 0.0
      %906 = vmatprep.subr.mxu0 0.0
      %907 = vmatpush1.msra.mxu0 0.0
      %908 = vmatprep.subr.mxu0 0.0
      %909 = vmatpush1.msra.mxu0 0.0
      %910 = vmatprep.subr.mxu0 0.0
      %911 = vmatpush1.msra.mxu0 0.0
      %912 = vmatprep.subr.mxu0 0.0
      %913 = vmatpush1.msra.mxu0 0.0
      %914 = vmatprep.subr.mxu0 0.0
      %915 = vmatpush1.msra.mxu0 0.0
      %916 = vmatprep.subr.mxu0 0.0
      %917 = vmatpush1.msra.mxu0 0.0
      %918 = vmatprep.subr.mxu0 0.0
      %919 = vmatpush1.msra.mxu0 0.0
      %920 = vmatprep.subr.mxu0 0.0
      %921 = vmatpush1.msra.mxu0 0.0
      %922 = vmatprep.subr.mxu0 0.0
      %923 = vmatpush1.msra.mxu0 0.0
      %924 = vmatprep.subr.mxu0 0.0
      %925 = vmatpush1.msra.mxu0 0.0
      %926 = vmatprep.subr.mxu0 0.0
      %927 = vmatpush1.msra.mxu0 0.0
      %928 = vmatprep.subr.mxu0 0.0
      %929 = vmatpush1.msra.mxu0 0.0
      %930 = vmatprep.subr.mxu0 0.0
      %931 = vmatpush1.msra.mxu0 0.0
      %932 = vmatprep.subr.mxu0 0.0
      %933 = vmatpush1.msra.mxu0 0.0
      %934 = vmatprep.subr.mxu0 0.0
      %935 = vmatpush1.msra.mxu0 0.0
      %936 = vmatprep.subr.mxu0 0.0
      %937 = vmatpush1.msra.mxu0 0.0
      %938 = vmatprep.subr.mxu0 0.0
      %939 = vmatpush1.msra.mxu0 0.0
      %940 = vmatprep.subr.mxu0 0.0
      %941 = vmatpush1.msra.mxu0 0.0
      %942 = vmatprep.mubr.f32.mxu0 0.0
      %943 = vmatmul.mubr.f32.gmra.mrb[0].mxu0 %v876
      %v944 = vpop.f32.mrb[0].mxu0
      %v945 = vadd.f32 %v872, %v944
      %v946 = vpop.f32.mrb[0].mxu0
      %947 = vdwg.mxu0
      %s948 = scalar_lea.vmem %s1, 28
      %v949 = vld [vmem:[%s948] sm:$0xf]
      %950 = vrot.lane.b32.xlu0 %v758, 120
      %v951 = vpop.permute.xlu0 %950
      %952 = vrot.lane.b32.xlu0 %v759, 120
      %v953 = vpop.permute.xlu0 %952
      %954 = vrot.lane.b32.xlu0 %v760, 120
      %v955 = vpop.permute.xlu0 %954
      %956 = vrot.lane.b32.xlu0 %v761, 120
      %v957 = vpop.permute.xlu0 %956
      %958 = vrot.lane.b32.xlu0 %v762, 120
      %v959 = vpop.permute.xlu0 %958
      %960 = vrot.lane.b32.xlu0 %v763, 120
      %v961 = vpop.permute.xlu0 %960
      %962 = vrot.lane.b32.xlu0 %v764, 120
      %v963 = vpop.permute.xlu0 %962
      %964 = vrot.lane.b32.xlu0 %v765, 120
      %v965 = vpop.permute.xlu0 %964
      %v975 = vsel %vm265, %v949, 0
      %977 = vmatprep.subr.mxu0 0.0
      %978 = vmatpush1.msra.mxu0 %v951
      %979 = vmatprep.subr.mxu0 0.0
      %980 = vmatpush1.msra.mxu0 %v953
      %981 = vmatprep.subr.mxu0 0.0
      %982 = vmatpush1.msra.mxu0 %v955
      %983 = vmatprep.subr.mxu0 0.0
      %984 = vmatpush1.msra.mxu0 %v957
      %985 = vmatprep.subr.mxu0 0.0
      %986 = vmatpush1.msra.mxu0 %v959
      %987 = vmatprep.subr.mxu0 0.0
      %988 = vmatpush1.msra.mxu0 %v961
      %989 = vmatprep.subr.mxu0 0.0
      %990 = vmatpush1.msra.mxu0 %v963
      %991 = vmatprep.subr.mxu0 0.0
      %992 = vmatpush1.msra.mxu0 %v965
      %993 = vmatprep.subr.mxu0 0.0
      %994 = vmatpush1.msra.mxu0 0.0
      %995 = vmatprep.subr.mxu0 0.0
      %996 = vmatpush1.msra.mxu0 0.0
      %997 = vmatprep.subr.mxu0 0.0
      %998 = vmatpush1.msra.mxu0 0.0
      %999 = vmatprep.subr.mxu0 0.0
      %1000 = vmatpush1.msra.mxu0 0.0
      %1001 = vmatprep.subr.mxu0 0.0
      %1002 = vmatpush1.msra.mxu0 0.0
      %1003 = vmatprep.subr.mxu0 0.0
      %1004 = vmatpush1.msra.mxu0 0.0
      %1005 = vmatprep.subr.mxu0 0.0
      %1006 = vmatpush1.msra.mxu0 0.0
      %1007 = vmatprep.subr.mxu0 0.0
      %1008 = vmatpush1.msra.mxu0 0.0
      %1009 = vmatprep.subr.mxu0 0.0
      %1010 = vmatpush1.msra.mxu0 0.0
      %1011 = vmatprep.subr.mxu0 0.0
      %1012 = vmatpush1.msra.mxu0 0.0
      %1013 = vmatprep.subr.mxu0 0.0
      %1014 = vmatpush1.msra.mxu0 0.0
      %1015 = vmatprep.subr.mxu0 0.0
      %1016 = vmatpush1.msra.mxu0 0.0
      %1017 = vmatprep.subr.mxu0 0.0
      %1018 = vmatpush1.msra.mxu0 0.0
      %1019 = vmatprep.subr.mxu0 0.0
      %1020 = vmatpush1.msra.mxu0 0.0
      %1021 = vmatprep.subr.mxu0 0.0
      %1022 = vmatpush1.msra.mxu0 0.0
      %1023 = vmatprep.subr.mxu0 0.0
      %1024 = vmatpush1.msra.mxu0 0.0
      %1025 = vmatprep.subr.mxu0 0.0
      %1026 = vmatpush1.msra.mxu0 0.0
      %1027 = vmatprep.subr.mxu0 0.0
      %1028 = vmatpush1.msra.mxu0 0.0
      %1029 = vmatprep.subr.mxu0 0.0
      %1030 = vmatpush1.msra.mxu0 0.0
      %1031 = vmatprep.subr.mxu0 0.0
      %1032 = vmatpush1.msra.mxu0 0.0
      %1033 = vmatprep.subr.mxu0 0.0
      %1034 = vmatpush1.msra.mxu0 0.0
      %1035 = vmatprep.subr.mxu0 0.0
      %1036 = vmatpush1.msra.mxu0 0.0
      %1037 = vmatprep.subr.mxu0 0.0
      %1038 = vmatpush1.msra.mxu0 0.0
      %1039 = vmatprep.subr.mxu0 0.0
      %1040 = vmatpush1.msra.mxu0 0.0
      %1041 = vmatprep.mubr.f32.mxu0 0.0
      %1042 = vmatmul.mubr.f32.gmra.mrb[0].mxu0 %v975
      %v1043 = vpop.f32.mrb[0].mxu0
      %v1044 = vadd.f32 0.0, %v1043
      %v1045 = vpop.f32.mrb[0].mxu0
      %1046 = vdwg.mxu0
      %v1047 = vadd.f32 %v945, %v1044
      %s1048 = scalar_lea.vmem %s1, 32
      %v1049 = vld [vmem:[%s1048] sm:$0xf]
      %1050 = vrot.lane.b32.xlu0 %v758, 119
      %v1051 = vpop.permute.xlu0 %1050
      %1052 = vrot.lane.b32.xlu0 %v759, 119
      %v1053 = vpop.permute.xlu0 %1052
      %1054 = vrot.lane.b32.xlu0 %v760, 119
      %v1055 = vpop.permute.xlu0 %1054
      %1056 = vrot.lane.b32.xlu0 %v761, 119
      %v1057 = vpop.permute.xlu0 %1056
      %1058 = vrot.lane.b32.xlu0 %v762, 119
      %v1059 = vpop.permute.xlu0 %1058
      %1060 = vrot.lane.b32.xlu0 %v763, 119
      %v1061 = vpop.permute.xlu0 %1060
      %1062 = vrot.lane.b32.xlu0 %v764, 119
      %v1063 = vpop.permute.xlu0 %1062
      %1064 = vrot.lane.b32.xlu0 %v765, 119
      %v1065 = vpop.permute.xlu0 %1064
      %v1075 = vsel %vm265, %v1049, 0
      %1077 = vmatprep.subr.mxu0 0.0
      %1078 = vmatpush1.msra.mxu0 %v1051
      %1079 = vmatprep.subr.mxu0 0.0
      %1080 = vmatpush1.msra.mxu0 %v1053
      %1081 = vmatprep.subr.mxu0 0.0
      %1082 = vmatpush1.msra.mxu0 %v1055
      %1083 = vmatprep.subr.mxu0 0.0
      %1084 = vmatpush1.msra.mxu0 %v1057
      %1085 = vmatprep.subr.mxu0 0.0
      %1086 = vmatpush1.msra.mxu0 %v1059
      %1087 = vmatprep.subr.mxu0 0.0
      %1088 = vmatpush1.msra.mxu0 %v1061
      %1089 = vmatprep.subr.mxu0 0.0
      %1090 = vmatpush1.msra.mxu0 %v1063
      %1091 = vmatprep.subr.mxu0 0.0
      %1092 = vmatpush1.msra.mxu0 %v1065
      %1093 = vmatprep.subr.mxu0 0.0
      %1094 = vmatpush1.msra.mxu0 0.0
      %1095 = vmatprep.subr.mxu0 0.0
      %1096 = vmatpush1.msra.mxu0 0.0
      %1097 = vmatprep.subr.mxu0 0.0
      %1098 = vmatpush1.msra.mxu0 0.0
      %1099 = vmatprep.subr.mxu0 0.0
      %1100 = vmatpush1.msra.mxu0 0.0
      %1101 = vmatprep.subr.mxu0 0.0
      %1102 = vmatpush1.msra.mxu0 0.0
      %1103 = vmatprep.subr.mxu0 0.0
      %1104 = vmatpush1.msra.mxu0 0.0
      %1105 = vmatprep.subr.mxu0 0.0
      %1106 = vmatpush1.msra.mxu0 0.0
      %1107 = vmatprep.subr.mxu0 0.0
      %1108 = vmatpush1.msra.mxu0 0.0
      %1109 = vmatprep.subr.mxu0 0.0
      %1110 = vmatpush1.msra.mxu0 0.0
      %1111 = vmatprep.subr.mxu0 0.0
      %1112 = vmatpush1.msra.mxu0 0.0
      %1113 = vmatprep.subr.mxu0 0.0
      %1114 = vmatpush1.msra.mxu0 0.0
      %1115 = vmatprep.subr.mxu0 0.0
      %1116 = vmatpush1.msra.mxu0 0.0
      %1117 = vmatprep.subr.mxu0 0.0
      %1118 = vmatpush1.msra.mxu0 0.0
      %1119 = vmatprep.subr.mxu0 0.0
      %1120 = vmatpush1.msra.mxu0 0.0
      %1121 = vmatprep.subr.mxu0 0.0
      %1122 = vmatpush1.msra.mxu0 0.0
      %1123 = vmatprep.subr.mxu0 0.0
      %1124 = vmatpush1.msra.mxu0 0.0
      %1125 = vmatprep.subr.mxu0 0.0
      %1126 = vmatpush1.msra.mxu0 0.0
      %1127 = vmatprep.subr.mxu0 0.0
      %1128 = vmatpush1.msra.mxu0 0.0
      %1129 = vmatprep.subr.mxu0 0.0
      %1130 = vmatpush1.msra.mxu0 0.0
      %1131 = vmatprep.subr.mxu0 0.0
      %1132 = vmatpush1.msra.mxu0 0.0
      %1133 = vmatprep.subr.mxu0 0.0
      %1134 = vmatpush1.msra.mxu0 0.0
      %1135 = vmatprep.subr.mxu0 0.0
      %1136 = vmatpush1.msra.mxu0 0.0
      %1137 = vmatprep.subr.mxu0 0.0
      %1138 = vmatpush1.msra.mxu0 0.0
      %1139 = vmatprep.subr.mxu0 0.0
      %1140 = vmatpush1.msra.mxu0 0.0
      %1141 = vmatprep.mubr.f32.mxu0 0.0
      %1142 = vmatmul.mubr.f32.gmra.mrb[0].mxu0 %v1075
      %v1143 = vpop.f32.mrb[0].mxu0
      %v1144 = vadd.f32 0.0, %v1143
      %v1145 = vpop.f32.mrb[0].mxu0
      %1146 = vdwg.mxu0
      %v1147 = vadd.f32 %v1047, %v1144
      %v1148 = vld [vmem:[%s2] sm:$0xf]
      %1150 = vset.pattern.permute.xlu0 0
      %1151 = vperm.xlu0 %1150, %v1148
      %v1152 = vpop.permute.xlu0 %1151
      %v1154 = vadd.f32 %v1147, %v1152
      %v1155 = vmax.f32 %v1154, 0.0
      %v1156 = vld [vmem:[%s3 + $0x3] sm:$0x1]
      %v1157 = vlaneseq
      %v1158 = vshrl.u32 %v1157, 7
      %v1159 = vsub.s32 0, %v1158
      %v1160 = vrot.slane %v1156, %v1159
      %v1161 = vmul.f32 %v1155, %v1160
      %1162 = vst.msk [vmem:[#allocation2 + $0xc] sm:$0xf] %vm346, %v1161
      %v1163 = vld [vmem:[#allocation2] sm:$0xff]
      %v1164 = vld [vmem:[#allocation2 + $0x8] sm:$0xff]
      %v1165 = vld [vmem:[%s4] sm:$0xff]
      %s1166 = scalar_lea.vmem %s4, 8
      %v1167 = vld [vmem:[%s1166] sm:$0xff]
      %1170 = vrot.lane.b32.xlu0 %v1163, 127
      %v1171 = vpop.permute.xlu0 %1170
      %1172 = vrot.lane.b32.xlu0 %v1164, 127
      %v1173 = vpop.permute.xlu0 %1172
      %vm1176 = vcmask 130048
      %v1178 = vsel %vm1176, %v1167, 0
      %1180 = vmatprep.subr.mxu0 0.0
      %1181 = vmatpush1.msra.mxu0 %v1171
      %1182 = vmatprep.subr.mxu0 0.0
      %1183 = vmatpush1.msra.mxu0 %v1173
      %1184 = vmatprep.subr.mxu0 0.0
      %1185 = vmatpush1.msra.mxu0 0.0
      %1186 = vmatprep.subr.mxu0 0.0
      %1187 = vmatpush1.msra.mxu0 0.0
      %1188 = vmatprep.subr.mxu0 0.0
      %1189 = vmatpush1.msra.mxu0 0.0
      %1190 = vmatprep.subr.mxu0 0.0
      %1191 = vmatpush1.msra.mxu0 0.0
      %1192 = vmatprep.subr.mxu0 0.0
      %1193 = vmatpush1.msra.mxu0 0.0
      %1194 = vmatprep.subr.mxu0 0.0
      %1195 = vmatpush1.msra.mxu0 0.0
      %1196 = vmatprep.subr.mxu0 0.0
      %1197 = vmatpush1.msra.mxu0 0.0
      %1198 = vmatprep.subr.mxu0 0.0
      %1199 = vmatpush1.msra.mxu0 0.0
      %1200 = vmatprep.subr.mxu0 0.0
      %1201 = vmatpush1.msra.mxu0 0.0
      %1202 = vmatprep.subr.mxu0 0.0
      %1203 = vmatpush1.msra.mxu0 0.0
      %1204 = vmatprep.subr.mxu0 0.0
      %1205 = vmatpush1.msra.mxu0 0.0
      %1206 = vmatprep.subr.mxu0 0.0
      %1207 = vmatpush1.msra.mxu0 0.0
      %1208 = vmatprep.subr.mxu0 0.0
      %1209 = vmatpush1.msra.mxu0 0.0
      %1210 = vmatprep.subr.mxu0 0.0
      %1211 = vmatpush1.msra.mxu0 0.0
      %1212 = vmatprep.subr.mxu0 0.0
      %1213 = vmatpush1.msra.mxu0 0.0
      %1214 = vmatprep.subr.mxu0 0.0
      %1215 = vmatpush1.msra.mxu0 0.0
      %1216 = vmatprep.subr.mxu0 0.0
      %1217 = vmatpush1.msra.mxu0 0.0
      %1218 = vmatprep.subr.mxu0 0.0
      %1219 = vmatpush1.msra.mxu0 0.0
      %1220 = vmatprep.subr.mxu0 0.0
      %1221 = vmatpush1.msra.mxu0 0.0
      %1222 = vmatprep.subr.mxu0 0.0
      %1223 = vmatpush1.msra.mxu0 0.0
      %1224 = vmatprep.subr.mxu0 0.0
      %1225 = vmatpush1.msra.mxu0 0.0
      %1226 = vmatprep.subr.mxu0 0.0
      %1227 = vmatpush1.msra.mxu0 0.0
      %1228 = vmatprep.subr.mxu0 0.0
      %1229 = vmatpush1.msra.mxu0 0.0
      %1230 = vmatprep.subr.mxu0 0.0
      %1231 = vmatpush1.msra.mxu0 0.0
      %1232 = vmatprep.subr.mxu0 0.0
      %1233 = vmatpush1.msra.mxu0 0.0
      %1234 = vmatprep.subr.mxu0 0.0
      %1235 = vmatpush1.msra.mxu0 0.0
      %1236 = vmatprep.subr.mxu0 0.0
      %1237 = vmatpush1.msra.mxu0 0.0
      %1238 = vmatprep.subr.mxu0 0.0
      %1239 = vmatpush1.msra.mxu0 0.0
      %1240 = vmatprep.subr.mxu0 0.0
      %1241 = vmatpush1.msra.mxu0 0.0
      %1242 = vmatprep.subr.mxu0 0.0
      %1243 = vmatpush1.msra.mxu0 0.0
      %1244 = vmatprep.mubr.f32.mxu0 0.0
      %1245 = vmatmul.mubr.f32.gmra.mrb[0].mxu0 %v1178
      %v1246 = vpop.f32.mrb[0].mxu0
      %v1247 = vadd.f32 0.0, %v1246
      %v1248 = vpop.f32.mrb[0].mxu0
      %1249 = vdwg.mxu0
      %v1251 = vsel %vm1176, %v1165, 0
      %1253 = vmatprep.subr.mxu0 0.0
      %1254 = vmatpush1.msra.mxu0 %v1163
      %1255 = vmatprep.subr.mxu0 0.0
      %1256 = vmatpush1.msra.mxu0 %v1164
      %1257 = vmatprep.subr.mxu0 0.0
      %1258 = vmatpush1.msra.mxu0 0.0
      %1259 = vmatprep.subr.mxu0 0.0
      %1260 = vmatpush1.msra.mxu0 0.0
      %1261 = vmatprep.subr.mxu0 0.0
      %1262 = vmatpush1.msra.mxu0 0.0
      %1263 = vmatprep.subr.mxu0 0.0
      %1264 = vmatpush1.msra.mxu0 0.0
      %1265 = vmatprep.subr.mxu0 0.0
      %1266 = vmatpush1.msra.mxu0 0.0
      %1267 = vmatprep.subr.mxu0 0.0
      %1268 = vmatpush1.msra.mxu0 0.0
      %1269 = vmatprep.subr.mxu0 0.0
      %1270 = vmatpush1.msra.mxu0 0.0
      %1271 = vmatprep.subr.mxu0 0.0
      %1272 = vmatpush1.msra.mxu0 0.0
      %1273 = vmatprep.subr.mxu0 0.0
      %1274 = vmatpush1.msra.mxu0 0.0
      %1275 = vmatprep.subr.mxu0 0.0
      %1276 = vmatpush1.msra.mxu0 0.0
      %1277 = vmatprep.subr.mxu0 0.0
      %1278 = vmatpush1.msra.mxu0 0.0
      %1279 = vmatprep.subr.mxu0 0.0
      %1280 = vmatpush1.msra.mxu0 0.0
      %1281 = vmatprep.subr.mxu0 0.0
      %1282 = vmatpush1.msra.mxu0 0.0
      %1283 = vmatprep.subr.mxu0 0.0
      %1284 = vmatpush1.msra.mxu0 0.0
      %1285 = vmatprep.subr.mxu0 0.0
      %1286 = vmatpush1.msra.mxu0 0.0
      %1287 = vmatprep.subr.mxu0 0.0
      %1288 = vmatpush1.msra.mxu0 0.0
      %1289 = vmatprep.subr.mxu0 0.0
      %1290 = vmatpush1.msra.mxu0 0.0
      %1291 = vmatprep.subr.mxu0 0.0
      %1292 = vmatpush1.msra.mxu0 0.0
      %1293 = vmatprep.subr.mxu0 0.0
      %1294 = vmatpush1.msra.mxu0 0.0
      %1295 = vmatprep.subr.mxu0 0.0
      %1296 = vmatpush1.msra.mxu0 0.0
      %1297 = vmatprep.subr.mxu0 0.0
      %1298 = vmatpush1.msra.mxu0 0.0
      %1299 = vmatprep.subr.mxu0 0.0
      %1300 = vmatpush1.msra.mxu0 0.0
      %1301 = vmatprep.subr.mxu0 0.0
      %1302 = vmatpush1.msra.mxu0 0.0
      %1303 = vmatprep.subr.mxu0 0.0
      %1304 = vmatpush1.msra.mxu0 0.0
      %1305 = vmatprep.subr.mxu0 0.0
      %1306 = vmatpush1.msra.mxu0 0.0
      %1307 = vmatprep.subr.mxu0 0.0
      %1308 = vmatpush1.msra.mxu0 0.0
      %1309 = vmatprep.subr.mxu0 0.0
      %1310 = vmatpush1.msra.mxu0 0.0
      %1311 = vmatprep.subr.mxu0 0.0
      %1312 = vmatpush1.msra.mxu0 0.0
      %1313 = vmatprep.subr.mxu0 0.0
      %1314 = vmatpush1.msra.mxu0 0.0
      %1315 = vmatprep.subr.mxu0 0.0
      %1316 = vmatpush1.msra.mxu0 0.0
      %1317 = vmatprep.mubr.f32.mxu0 0.0
      %1318 = vmatmul.mubr.f32.gmra.mrb[0].mxu0 %v1251
      %v1319 = vpop.f32.mrb[0].mxu0
      %v1320 = vadd.f32 %v1247, %v1319
      %v1321 = vpop.f32.mrb[0].mxu0
      %1322 = vdwg.mxu0
      %s1323 = scalar_lea.vmem %s4, 16
      %v1324 = vld [vmem:[%s1323] sm:$0xff]
      %1325 = vrot.lane.b32.xlu0 %v1163, 120
      %v1326 = vpop.permute.xlu0 %1325
      %1327 = vrot.lane.b32.xlu0 %v1164, 120
      %v1328 = vpop.permute.xlu0 %1327
      %v1332 = vsel %vm1176, %v1324, 0
      %1334 = vmatprep.subr.mxu0 0.0
      %1335 = vmatpush1.msra.mxu0 %v1326
      %1336 = vmatprep.subr.mxu0 0.0
      %1337 = vmatpush1.msra.mxu0 %v1328
      %1338 = vmatprep.subr.mxu0 0.0
      %1339 = vmatpush1.msra.mxu0 0.0
      %1340 = vmatprep.subr.mxu0 0.0
      %1341 = vmatpush1.msra.mxu0 0.0
      %1342 = vmatprep.subr.mxu0 0.0
      %1343 = vmatpush1.msra.mxu0 0.0
      %1344 = vmatprep.subr.mxu0 0.0
      %1345 = vmatpush1.msra.mxu0 0.0
      %1346 = vmatprep.subr.mxu0 0.0
      %1347 = vmatpush1.msra.mxu0 0.0
      %1348 = vmatprep.subr.mxu0 0.0
      %1349 = vmatpush1.msra.mxu0 0.0
      %1350 = vmatprep.subr.mxu0 0.0
      %1351 = vmatpush1.msra.mxu0 0.0
      %1352 = vmatprep.subr.mxu0 0.0
      %1353 = vmatpush1.msra.mxu0 0.0
      %1354 = vmatprep.subr.mxu0 0.0
      %1355 = vmatpush1.msra.mxu0 0.0
      %1356 = vmatprep.subr.mxu0 0.0
      %1357 = vmatpush1.msra.mxu0 0.0
      %1358 = vmatprep.subr.mxu0 0.0
      %1359 = vmatpush1.msra.mxu0 0.0
      %1360 = vmatprep.subr.mxu0 0.0
      %1361 = vmatpush1.msra.mxu0 0.0
      %1362 = vmatprep.subr.mxu0 0.0
      %1363 = vmatpush1.msra.mxu0 0.0
      %1364 = vmatprep.subr.mxu0 0.0
      %1365 = vmatpush1.msra.mxu0 0.0
      %1366 = vmatprep.subr.mxu0 0.0
      %1367 = vmatpush1.msra.mxu0 0.0
      %1368 = vmatprep.subr.mxu0 0.0
      %1369 = vmatpush1.msra.mxu0 0.0
      %1370 = vmatprep.subr.mxu0 0.0
      %1371 = vmatpush1.msra.mxu0 0.0
      %1372 = vmatprep.subr.mxu0 0.0
      %1373 = vmatpush1.msra.mxu0 0.0
      %1374 = vmatprep.subr.mxu0 0.0
      %1375 = vmatpush1.msra.mxu0 0.0
      %1376 = vmatprep.subr.mxu0 0.0
      %1377 = vmatpush1.msra.mxu0 0.0
      %1378 = vmatprep.subr.mxu0 0.0
      %1379 = vmatpush1.msra.mxu0 0.0
      %1380 = vmatprep.subr.mxu0 0.0
      %1381 = vmatpush1.msra.mxu0 0.0
      %1382 = vmatprep.subr.mxu0 0.0
      %1383 = vmatpush1.msra.mxu0 0.0
      %1384 = vmatprep.subr.mxu0 0.0
      %1385 = vmatpush1.msra.mxu0 0.0
      %1386 = vmatprep.subr.mxu0 0.0
      %1387 = vmatpush1.msra.mxu0 0.0
      %1388 = vmatprep.subr.mxu0 0.0
      %1389 = vmatpush1.msra.mxu0 0.0
      %1390 = vmatprep.subr.mxu0 0.0
      %1391 = vmatpush1.msra.mxu0 0.0
      %1392 = vmatprep.subr.mxu0 0.0
      %1393 = vmatpush1.msra.mxu0 0.0
      %1394 = vmatprep.subr.mxu0 0.0
      %1395 = vmatpush1.msra.mxu0 0.0
      %1396 = vmatprep.subr.mxu0 0.0
      %1397 = vmatpush1.msra.mxu0 0.0
      %1398 = vmatprep.mubr.f32.mxu0 0.0
      %1399 = vmatmul.mubr.f32.gmra.mrb[0].mxu0 %v1332
      %v1400 = vpop.f32.mrb[0].mxu0
      %v1401 = vadd.f32 0.0, %v1400
      %v1402 = vpop.f32.mrb[0].mxu0
      %1403 = vdwg.mxu0
      %v1404 = vadd.f32 %v1320, %v1401
      %s1405 = scalar_lea.vmem %s4, 24
      %v1406 = vld [vmem:[%s1405] sm:$0xff]
      %1407 = vrot.lane.b32.xlu0 %v1163, 119
      %v1408 = vpop.permute.xlu0 %1407
      %1409 = vrot.lane.b32.xlu0 %v1164, 119
      %v1410 = vpop.permute.xlu0 %1409
      %v1414 = vsel %vm1176, %v1406, 0
      %1416 = vmatprep.subr.mxu0 0.0
      %1417 = vmatpush1.msra.mxu0 %v1408
      %1418 = vmatprep.subr.mxu0 0.0
      %1419 = vmatpush1.msra.mxu0 %v1410
      %1420 = vmatprep.subr.mxu0 0.0
      %1421 = vmatpush1.msra.mxu0 0.0
      %1422 = vmatprep.subr.mxu0 0.0
      %1423 = vmatpush1.msra.mxu0 0.0
      %1424 = vmatprep.subr.mxu0 0.0
      %1425 = vmatpush1.msra.mxu0 0.0
      %1426 = vmatprep.subr.mxu0 0.0
      %1427 = vmatpush1.msra.mxu0 0.0
      %1428 = vmatprep.subr.mxu0 0.0
      %1429 = vmatpush1.msra.mxu0 0.0
      %1430 = vmatprep.subr.mxu0 0.0
      %1431 = vmatpush1.msra.mxu0 0.0
      %1432 = vmatprep.subr.mxu0 0.0
      %1433 = vmatpush1.msra.mxu0 0.0
      %1434 = vmatprep.subr.mxu0 0.0
      %1435 = vmatpush1.msra.mxu0 0.0
      %1436 = vmatprep.subr.mxu0 0.0
      %1437 = vmatpush1.msra.mxu0 0.0
      %1438 = vmatprep.subr.mxu0 0.0
      %1439 = vmatpush1.msra.mxu0 0.0
      %1440 = vmatprep.subr.mxu0 0.0
      %1441 = vmatpush1.msra.mxu0 0.0
      %1442 = vmatprep.subr.mxu0 0.0
      %1443 = vmatpush1.msra.mxu0 0.0
      %1444 = vmatprep.subr.mxu0 0.0
      %1445 = vmatpush1.msra.mxu0 0.0
      %1446 = vmatprep.subr.mxu0 0.0
      %1447 = vmatpush1.msra.mxu0 0.0
      %1448 = vmatprep.subr.mxu0 0.0
      %1449 = vmatpush1.msra.mxu0 0.0
      %1450 = vmatprep.subr.mxu0 0.0
      %1451 = vmatpush1.msra.mxu0 0.0
      %1452 = vmatprep.subr.mxu0 0.0
      %1453 = vmatpush1.msra.mxu0 0.0
      %1454 = vmatprep.subr.mxu0 0.0
      %1455 = vmatpush1.msra.mxu0 0.0
      %1456 = vmatprep.subr.mxu0 0.0
      %1457 = vmatpush1.msra.mxu0 0.0
      %1458 = vmatprep.subr.mxu0 0.0
      %1459 = vmatpush1.msra.mxu0 0.0
      %1460 = vmatprep.subr.mxu0 0.0
      %1461 = vmatpush1.msra.mxu0 0.0
      %1462 = vmatprep.subr.mxu0 0.0
      %1463 = vmatpush1.msra.mxu0 0.0
      %1464 = vmatprep.subr.mxu0 0.0
      %1465 = vmatpush1.msra.mxu0 0.0
      %1466 = vmatprep.subr.mxu0 0.0
      %1467 = vmatpush1.msra.mxu0 0.0
      %1468 = vmatprep.subr.mxu0 0.0
      %1469 = vmatpush1.msra.mxu0 0.0
      %1470 = vmatprep.subr.mxu0 0.0
      %1471 = vmatpush1.msra.mxu0 0.0
      %1472 = vmatprep.subr.mxu0 0.0
      %1473 = vmatpush1.msra.mxu0 0.0
      %1474 = vmatprep.subr.mxu0 0.0
      %1475 = vmatpush1.msra.mxu0 0.0
      %1476 = vmatprep.subr.mxu0 0.0
      %1477 = vmatpush1.msra.mxu0 0.0
      %1478 = vmatprep.subr.mxu0 0.0
      %1479 = vmatpush1.msra.mxu0 0.0
      %1480 = vmatprep.mubr.f32.mxu0 0.0
      %1481 = vmatmul.mubr.f32.gmra.mrb[0].mxu0 %v1414
      %v1482 = vpop.f32.mrb[0].mxu0
      %v1483 = vadd.f32 0.0, %v1482
      %v1484 = vpop.f32.mrb[0].mxu0
      %1485 = vdwg.mxu0
      %v1486 = vadd.f32 %v1404, %v1483
      %v1487 = vld [vmem:[%s5] sm:$0xff]
      %1489 = vset.pattern.permute.xlu0 0
      %1490 = vperm.xlu0 %1489, %v1487
      %v1491 = vpop.permute.xlu0 %1490
      %v1493 = vadd.f32 %v1486, %v1491
      %v1494 = vmax.f32 %v1493, 0.0
      %vm1495 = vcmask 261120
      %1496 = vst.msk [vmem:[%s249] sm:$0xff] %vm1495, %v1494
      %p1497 = scmp.lt.s32.totalorder %s17, 1
      %s1498 = scalar_select %p1497, %s17, 1
      %s1499 = smul.addr %s1498, 8
      %s1500 = scalar_lea.vmem %s6, %s1499
      // Predicated region
      $region45: #{_lambda_.2} parent=43 // pred_check
        %p1501 = pneg %p166
      $region46: #{_lambda_.2} parent=43 // pred_check_branch
        %1503 = sbr.rel (%p1501) target = $region48
      $region47: #{_lambda_.2} parent=43 // pred_region
        _
      $region48: #{_lambda_.2} parent=43 // pred_fallthru
        _
    $region44: #{_lambda_.2} parent=5 // pred_fallthru
      _
    %p1504 = scmp.le.s32.totalorder 2, %s12
    // Predicated region
    $region49: #{_lambda_.2} parent=5 // pred_check
      %p1505 = pneg %p1504
    $region50: #{_lambda_.2} parent=5 // pred_check_branch
      %1507 = sbr.rel (%p1505) target = $region52
    $region51: #{_lambda_.2} parent=5 // pred_region
      %s1508 = ssub.s32 %s12, 2
      // Predicated region
      $region53: #{_lambda_.2} parent=51 // pred_check
        %p1509 = pneg %p172
      $region54: #{_lambda_.2} parent=51 // pred_check_branch
        %1511 = sbr.rel (%p1509) target = $region56
      $region55: #{_lambda_.2} parent=51 // pred_region
        %p1512 = scmp.lt.s32.totalorder %s18, 1
        %s1513 = scalar_select %p1512, %s18, 1
        %s1514 = smul.addr %s1513, 8
        %s1515 = scalar_lea.vmem %s6, %s1514
      $region56: #{_lambda_.2} parent=51 // pred_fallthru
        _
    $region52: #{_lambda_.2} parent=5 // pred_fallthru
      _
  $region6: #{_lambda_.2} parent=0 // loop_footer
    %s16 = sadd.s32 1, %s12
  $region7: #{_lambda_.2} parent=0 // loop_footer_branch
    %11 = sbr.rel target = $region3
  $region8: #{_lambda_.2} parent=0 // loop_exit
    _

// kernel: _lambda_.3
$region0: #{_lambda_.3}
  #allocation0 [shape = 'u32[]', space=smem, size = 0x4, offset = 0x4, fixed_abs, tag = 'smem constant byte address 0x4 - core index']
  #allocation1 [shape = 'u32[144,128]{1,0:T(1,128)}', space=vmem, size = 0x12000, scoped, tag = 'internal scratch']
  #allocation2 [shape = 'f32[64,24]{1,0:T(8,128)}', space=vmem, size = 0x8000, scoped, tag = 'scratch operand']
  %s0 = inlined_call_operand.vmem [shape: f32[2,128,40], index: 0, kind: input, shape index: {}]
  %s1 = inlined_call_operand.vmem [shape: f32[9,16,128], index: 1, kind: input, shape index: {}]
  %s2 = inlined_call_operand.vmem [shape: f32[16,1], index: 2, kind: input, shape index: {}]
  %s3 = inlined_call_operand.vmem [shape: f32[4,24], index: 3, kind: input, shape index: {}]
  %s4 = inlined_call_operand.vmem [shape: f32[4,32,64], index: 4, kind: input, shape index: {}]
  %s5 = inlined_call_operand.vmem [shape: f32[32,1], index: 5, kind: input, shape index: {}]
  %s6 = inlined_call_operand.vmem [shape: f32[2,32,8], index: 6, kind: output, shape index: {}]
  %s7 = sld [smem:[#allocation0]]
  $region57: #{_lambda_.3} parent=0
    _
  %s9 = ssub.s32 1, %s7
  %s10 = scalar_select 0, %s9, %s7
  loop: start=0, step=1, limit=4
  $region2: #{_lambda_.3} parent=0 // loop_pre_header
    _
  $region3: #{_lambda_.3} parent=0 // loop_header
    %s12 = sphi 0, %s16
    %p13 = scmp.ge.s32.totalorder %s12, 4
    %s22 = sphi 0, %s24
    %s25 = sphi 0, %s22
    %s26 = sphi 0, %s25
    %s42 = sphi 0, %s26
    %s46 = sphi 0, %s46
    %s48 = sphi 0, %s46
    %s49 = sphi 0, %s48
    %s63 = sphi 0, %s49
    %s67 = sphi 0, %s67
    %s69 = sphi 0, %s67
    %s70 = sphi 0, %s69
    %s84 = sphi 0, %s70
    %s88 = sphi 0, %s88
    %s90 = sphi 0, %s88
    %s91 = sphi 0, %s90
    %s105 = sphi 0, %s91
    %s109 = sphi 0, %s109
    %s111 = sphi 0, %s109
    %s112 = sphi 0, %s111
    %s126 = sphi 0, %s112
    %s130 = sphi 0, %s130
    %s132 = sphi 0, %s130
    %s133 = sphi 0, %s132
    %s147 = sphi 0, %s133
    %s153 = sphi 0, %s155
    %s156 = sphi 0, %s153
    %s157 = sphi 0, %s156
    %s173 = sphi 0, %s157
  $region4: #{_lambda_.3} parent=0 // loop_header_branch
    %15 = sbr.rel (%p13) target = $region8
  $region5: #{_lambda_.3} parent=0 // loop_body
    %s17 = ssub.s32 %s12, 1
    %s18 = ssub.s32 %s12, 2
    %s19 = sadd.s32 %s12, 1
    %s20 = ssub.s32 %s12, %s19
    %p21 = scmp.eq.s32.totalorder %s20, 0
    %s23 = sadd.s32 %s22, 1
    %s24 = scalar_select %p21, %s22, %s23
    %p27 = pneg %p21
    %p28 = scmp.eq.s32.totalorder %s12, 1
    %p29 = por %p27, %p28
    %p30 = scmp.ne.s32.totalorder %s22, %s25
    %p31 = scmp.eq.s32.totalorder %s12, 0
    %p32 = por %p30, %p31
    %p33 = scmp.ne.s32.totalorder %s22, %s25
    %p34 = scmp.eq.s32.totalorder %s17, 1
    %p35 = por %p33, %p34
    %p36 = scmp.ne.s32.totalorder %s25, %s26
    %p37 = scmp.eq.s32.totalorder %s17, 0
    %p38 = por %p36, %p37
    %p39 = scmp.ne.s32.totalorder %s25, %s26
    %p40 = scmp.eq.s32.totalorder %s18, 1
    %p41 = por %p39, %p40
    %p43 = scmp.ne.s32.totalorder %s26, %s42
    %p44 = scmp.eq.s32.totalorder %s18, 0
    %p45 = por %p43, %p44
    %s47 = sadd.s32 %s46, 1
    %p50 = scmp.eq.s32.totalorder %s12, 1
    %p51 = scmp.ne.s32.totalorder %s46, %s48
    %p52 = scmp.eq.s32.totalorder %s12, 0
    %p53 = por %p51, %p52
    %p54 = scmp.ne.s32.totalorder %s46, %s48
    %p55 = scmp.eq.s32.totalorder %s17, 1
    %p56 = por %p54, %p55
    %p57 = scmp.ne.s32.totalorder %s48, %s49
    %p58 = scmp.eq.s32.totalorder %s17, 0
    %p59 = por %p57, %p58
    %p60 = scmp.ne.s32.totalorder %s48, %s49
    %p61 = scmp.eq.s32.totalorder %s18, 1
    %p62 = por %p60, %p61
    %p64 = scmp.ne.s32.totalorder %s49, %s63
    %p65 = scmp.eq.s32.totalorder %s18, 0
    %p66 = por %p64, %p65
    %s68 = sadd.s32 %s67, 1
    %p71 = scmp.eq.s32.totalorder %s12, 1
    %p72 = scmp.ne.s32.totalorder %s67, %s69
    %p73 = scmp.eq.s32.totalorder %s12, 0
    %p74 = por %p72, %p73
    %p75 = scmp.ne.s32.totalorder %s67, %s69
    %p76 = scmp.eq.s32.totalorder %s17, 1
    %p77 = por %p75, %p76
    %p78 = scmp.ne.s32.totalorder %s69, %s70
    %p79 = scmp.eq.s32.totalorder %s17, 0
    %p80 = por %p78, %p79
    %p81 = scmp.ne.s32.totalorder %s69, %s70
    %p82 = scmp.eq.s32.totalorder %s18, 1
    %p83 = por %p81, %p82
    %p85 = scmp.ne.s32.totalorder %s70, %s84
    %p86 = scmp.eq.s32.totalorder %s18, 0
    %p87 = por %p85, %p86
    %s89 = sadd.s32 %s88, 1
    %p92 = scmp.eq.s32.totalorder %s12, 1
    %p93 = scmp.ne.s32.totalorder %s88, %s90
    %p94 = scmp.eq.s32.totalorder %s12, 0
    %p95 = por %p93, %p94
    %p96 = scmp.ne.s32.totalorder %s88, %s90
    %p97 = scmp.eq.s32.totalorder %s17, 1
    %p98 = por %p96, %p97
    %p99 = scmp.ne.s32.totalorder %s90, %s91
    %p100 = scmp.eq.s32.totalorder %s17, 0
    %p101 = por %p99, %p100
    %p102 = scmp.ne.s32.totalorder %s90, %s91
    %p103 = scmp.eq.s32.totalorder %s18, 1
    %p104 = por %p102, %p103
    %p106 = scmp.ne.s32.totalorder %s91, %s105
    %p107 = scmp.eq.s32.totalorder %s18, 0
    %p108 = por %p106, %p107
    %s110 = sadd.s32 %s109, 1
    %p113 = scmp.eq.s32.totalorder %s12, 1
    %p114 = scmp.ne.s32.totalorder %s109, %s111
    %p115 = scmp.eq.s32.totalorder %s12, 0
    %p116 = por %p114, %p115
    %p117 = scmp.ne.s32.totalorder %s109, %s111
    %p118 = scmp.eq.s32.totalorder %s17, 1
    %p119 = por %p117, %p118
    %p120 = scmp.ne.s32.totalorder %s111, %s112
    %p121 = scmp.eq.s32.totalorder %s17, 0
    %p122 = por %p120, %p121
    %p123 = scmp.ne.s32.totalorder %s111, %s112
    %p124 = scmp.eq.s32.totalorder %s18, 1
    %p125 = por %p123, %p124
    %p127 = scmp.ne.s32.totalorder %s112, %s126
    %p128 = scmp.eq.s32.totalorder %s18, 0
    %p129 = por %p127, %p128
    %s131 = sadd.s32 %s130, 1
    %p134 = scmp.eq.s32.totalorder %s12, 1
    %p135 = scmp.ne.s32.totalorder %s130, %s132
    %p136 = scmp.eq.s32.totalorder %s12, 0
    %p137 = por %p135, %p136
    %p138 = scmp.ne.s32.totalorder %s130, %s132
    %p139 = scmp.eq.s32.totalorder %s17, 1
    %p140 = por %p138, %p139
    %p141 = scmp.ne.s32.totalorder %s132, %s133
    %p142 = scmp.eq.s32.totalorder %s17, 0
    %p143 = por %p141, %p142
    %p144 = scmp.ne.s32.totalorder %s132, %s133
    %p145 = scmp.eq.s32.totalorder %s18, 1
    %p146 = por %p144, %p145
    %p148 = scmp.ne.s32.totalorder %s133, %s147
    %p149 = scmp.eq.s32.totalorder %s18, 0
    %p150 = por %p148, %p149
    %s151 = ssub.s32 %s12, %s19
    %p152 = scmp.eq.s32.totalorder %s151, 0
    %s154 = sadd.s32 %s153, 1
    %s155 = scalar_select %p152, %s153, %s154
    %p158 = pneg %p152
    %p159 = scmp.eq.s32.totalorder %s12, 1
    %p160 = por %p158, %p159
    %p161 = scmp.ne.s32.totalorder %s153, %s156
    %p162 = scmp.eq.s32.totalorder %s12, 0
    %p163 = por %p161, %p162
    %p164 = scmp.ne.s32.totalorder %s153, %s156
    %p165 = scmp.eq.s32.totalorder %s17, 1
    %p166 = por %p164, %p165
    %p167 = scmp.ne.s32.totalorder %s156, %s157
    %p168 = scmp.eq.s32.totalorder %s17, 0
    %p169 = por %p167, %p168
    %p170 = scmp.ne.s32.totalorder %s156, %s157
    %p171 = scmp.eq.s32.totalorder %s18, 1
    %p172 = por %p170, %p171
    %p174 = scmp.ne.s32.totalorder %s157, %s173
    %p175 = scmp.eq.s32.totalorder %s18, 0
    %p176 = por %p174, %p175
    %p177 = scmp.le.s32.totalorder 1, %s12
    %p178 = scmp.lt.s32.totalorder %s12, 3
    %p179 = pnand %p177, %p178
    %p180 = pneg %p179
    // Predicated region
    $region9: #{_lambda_.3} parent=5 // pred_check
      _
    $region10: #{_lambda_.3} parent=5 // pred_check_branch
      %182 = sbr.rel (%p179) target = $region12
    $region11: #{_lambda_.3} parent=5 // pred_region
      %s183 = ssub.s32 %s12, 1
      // Predicated region
      $region13: #{_lambda_.3} parent=11 // pred_check
        %p184 = pneg %p59
      $region14: #{_lambda_.3} parent=11 // pred_check_branch
        %186 = sbr.rel (%p184) target = $region16
      $region15: #{_lambda_.3} parent=11 // pred_region
        _
      $region16: #{_lambda_.3} parent=11 // pred_fallthru
        _
      // Predicated region
      $region17: #{_lambda_.3} parent=11 // pred_check
        %p187 = pneg %p80
      $region18: #{_lambda_.3} parent=11 // pred_check_branch
        %189 = sbr.rel (%p187) target = $region20
      $region19: #{_lambda_.3} parent=11 // pred_region
        _
      $region20: #{_lambda_.3} parent=11 // pred_fallthru
        _
      // Predicated region
      $region21: #{_lambda_.3} parent=11 // pred_check
        %p190 = pneg %p101
      $region22: #{_lambda_.3} parent=11 // pred_check_branch
        %192 = sbr.rel (%p190) target = $region24
      $region23: #{_lambda_.3} parent=11 // pred_region
        _
      $region24: #{_lambda_.3} parent=11 // pred_fallthru
        _
      // Predicated region
      $region25: #{_lambda_.3} parent=11 // pred_check
        %p193 = pneg %p122
      $region26: #{_lambda_.3} parent=11 // pred_check_branch
        %195 = sbr.rel (%p193) target = $region28
      $region27: #{_lambda_.3} parent=11 // pred_region
        _
      $region28: #{_lambda_.3} parent=11 // pred_fallthru
        _
      // Predicated region
      $region29: #{_lambda_.3} parent=11 // pred_check
        %p196 = pneg %p143
      $region30: #{_lambda_.3} parent=11 // pred_check_branch
        %198 = sbr.rel (%p196) target = $region32
      $region31: #{_lambda_.3} parent=11 // pred_region
        _
      $region32: #{_lambda_.3} parent=11 // pred_fallthru
        _
    $region12: #{_lambda_.3} parent=5 // pred_fallthru
      _
    %p199 = scmp.lt.s32.totalorder %s12, 2
    // Predicated region
    $region33: #{_lambda_.3} parent=5 // pred_check
      %p200 = pneg %p199
    $region34: #{_lambda_.3} parent=5 // pred_check_branch
      %202 = sbr.rel (%p200) target = $region36
    $region35: #{_lambda_.3} parent=5 // pred_region
      // Predicated region
      $region37: #{_lambda_.3} parent=35 // pred_check
        %p203 = pneg %p32
      $region38: #{_lambda_.3} parent=35 // pred_check_branch
        %205 = sbr.rel (%p203) target = $region40
      $region39: #{_lambda_.3} parent=35 // pred_region
        %p206 = scmp.lt.s32.totalorder %s12, 1
        %s207 = scalar_select %p206, %s12, 1
        %s208 = smul.addr %s207, 16
        %s209 = smul.addr %s208, 8
        %s210 = scalar_lea.vmem %s0, %s209
      $region40: #{_lambda_.3} parent=35 // pred_fallthru
        _
    $region36: #{_lambda_.3} parent=5 // pred_fallthru
      _
    %p211 = scmp.le.s32.totalorder 1, %s12
    %p212 = scmp.lt.s32.totalorder %s12, 3
    %p213 = pnand %p211, %p212
    %p214 = pneg %p213
    // Predicated region
    $region41: #{_lambda_.3} parent=5 // pred_check
      _
    $region42: #{_lambda_.3} parent=5 // pred_check_branch
      %216 = sbr.rel (%p213) target = $region44
    $region43: #{_lambda_.3} parent=5 // pred_region
      %s217 = ssub.s32 %s12, 1
      %p218 = scmp.lt.s32.totalorder %s17, 1
      %s219 = scalar_select %p218, %s17, 1
      %s220 = smul.addr %s219, 16
      %s221 = smul.addr %s220, 8
      %s222 = scalar_lea.vmem %s0, %s221
      %p223 = pneg %p38
      %p224 = pneg %p35
      %p225 = pneg %p59
      %p226 = pneg %p56
      %p227 = pneg %p80
      %p228 = pneg %p77
      %p229 = pneg %p101
      %p230 = pneg %p98
      %p231 = pneg %p122
      %p232 = pneg %p119
      %p233 = pneg %p143
      %p234 = pneg %p140
      %p235 = pneg %p169
      %p236 = pneg %p166
      %p237 = scmp.lt.s32.totalorder %s17, 1
      %s238 = scalar_select %p237, %s17, 1
      %s239 = smul.addr %s238, 4
      %s240 = smul.addr %s239, 8
      %s241 = scalar_lea.vmem %s6, %s240
      %p242 = scmp.lt.s32.totalorder %s17, 1
      %s243 = scalar_select %p242, %s17, 1
      %s244 = smul.addr %s243, 16
      %s245 = smul.addr %s244, 8
      %s246 = scalar_lea.vmem %s0, %s245
      %p247 = scmp.lt.s32.totalorder %s17, 1
      %s248 = scalar_select %p247, %s17, 1
      %s249 = smul.addr %s248, 4
      %s250 = smul.addr %s249, 8
      %s251 = scalar_lea.vmem %s6, %s250
      %v252 = vld [vmem:[%s246] sm:$0xff]
      %v253 = vld [vmem:[%s246 + $0x8] sm:$0xff]
      %v254 = vld [vmem:[%s246 + $0x10] sm:$0xff]
      %v255 = vld [vmem:[%s246 + $0x18] sm:$0xff]
      %v256 = vld [vmem:[%s246 + $0x20] sm:$0xff]
      %v257 = vld [vmem:[%s246 + $0x28] sm:$0xff]
      %v258 = vld [vmem:[%s246 + $0x30] sm:$0xff]
      %v259 = vld [vmem:[%s246 + $0x38] sm:$0xff]
      %v260 = vld [vmem:[%s246 + $0x40] sm:$0xff]
      %v261 = vld [vmem:[%s246 + $0x48] sm:$0xff]
      %v262 = vld [vmem:[%s246 + $0x50] sm:$0xff]
      %v263 = vld [vmem:[%s246 + $0x58] sm:$0xff]
      %v264 = vld [vmem:[%s246 + $0x60] sm:$0xff]
      %v265 = vld [vmem:[%s246 + $0x68] sm:$0xff]
      %v266 = vld [vmem:[%s246 + $0x70] sm:$0xff]
      %v267 = vld [vmem:[%s246 + $0x78] sm:$0xff]
      %v268 = vld [vmem:[%s1] sm:$0xff]
      %v269 = vld [vmem:[%s1 + $0x8] sm:$0xff]
      %v270 = vld [vmem:[%s2] sm:$0xff]
      %v271 = vld [vmem:[%s2 + $0x8] sm:$0xff]
      %273 = vset.pattern.permute.xlu0 0
      %274 = vperm.xlu0 %273, %v270
      %v275 = vpop.permute.xlu0 %274
      %278 = vset.pattern.permute.xlu0 0
      %279 = vperm.xlu0 %278, %v271
      %v280 = vpop.permute.xlu0 %279
      %282 = vmatprep.subr.mxu0 0.0
      %283 = vmatpush1.msra.mxu0 %v252
      %284 = vmatprep.subr.mxu0 0.0
      %285 = vmatpush1.msra.mxu0 %v253
      %286 = vmatprep.subr.mxu0 0.0
      %287 = vmatpush1.msra.mxu0 %v254
      %288 = vmatprep.subr.mxu0 0.0
      %289 = vmatpush1.msra.mxu0 %v255
      %290 = vmatprep.subr.mxu0 0.0
      %291 = vmatpush1.msra.mxu0 %v256
      %292 = vmatprep.subr.mxu0 0.0
      %293 = vmatpush1.msra.mxu0 %v257
      %294 = vmatprep.subr.mxu0 0.0
      %295 = vmatpush1.msra.mxu0 %v258
      %296 = vmatprep.subr.mxu0 0.0
      %297 = vmatpush1.msra.mxu0 %v259
      %298 = vmatprep.subr.mxu0 0.0
      %299 = vmatpush1.msra.mxu0 %v260
      %300 = vmatprep.subr.mxu0 0.0
      %301 = vmatpush1.msra.mxu0 %v261
      %302 = vmatprep.subr.mxu0 0.0
      %303 = vmatpush1.msra.mxu0 %v262
      %304 = vmatprep.subr.mxu0 0.0
      %305 = vmatpush1.msra.mxu0 %v263
      %306 = vmatprep.subr.mxu0 0.0
      %307 = vmatpush1.msra.mxu0 %v264
      %308 = vmatprep.subr.mxu0 0.0
      %309 = vmatpush1.msra.mxu0 %v265
      %310 = vmatprep.subr.mxu0 0.0
      %311 = vmatpush1.msra.mxu0 %v266
      %312 = vmatprep.subr.mxu0 0.0
      %313 = vmatpush1.msra.mxu0 %v267
      %314 = vmatprep.subr.mxu0 0.0
      %315 = vmatpush1.msra.mxu0 0.0
      %316 = vmatprep.subr.mxu0 0.0
      %317 = vmatpush1.msra.mxu0 0.0
      %318 = vmatprep.subr.mxu0 0.0
      %319 = vmatpush1.msra.mxu0 0.0
      %320 = vmatprep.subr.mxu0 0.0
      %321 = vmatpush1.msra.mxu0 0.0
      %322 = vmatprep.subr.mxu0 0.0
      %323 = vmatpush1.msra.mxu0 0.0
      %324 = vmatprep.subr.mxu0 0.0
      %325 = vmatpush1.msra.mxu0 0.0
      %326 = vmatprep.subr.mxu0 0.0
      %327 = vmatpush1.msra.mxu0 0.0
      %328 = vmatprep.subr.mxu0 0.0
      %329 = vmatpush1.msra.mxu0 0.0
      %330 = vmatprep.subr.mxu0 0.0
      %331 = vmatpush1.msra.mxu0 0.0
      %332 = vmatprep.subr.mxu0 0.0
      %333 = vmatpush1.msra.mxu0 0.0
      %334 = vmatprep.subr.mxu0 0.0
      %335 = vmatpush1.msra.mxu0 0.0
      %336 = vmatprep.subr.mxu0 0.0
      %337 = vmatpush1.msra.mxu0 0.0
      %338 = vmatprep.subr.mxu0 0.0
      %339 = vmatpush1.msra.mxu0 0.0
      %340 = vmatprep.subr.mxu0 0.0
      %341 = vmatpush1.msra.mxu0 0.0
      %342 = vmatprep.subr.mxu0 0.0
      %343 = vmatpush1.msra.mxu0 0.0
      %344 = vmatprep.subr.mxu0 0.0
      %345 = vmatpush1.msra.mxu0 0.0
      %346 = vmatprep.mubr.f32.mxu0 0.0
      %347 = vmatmul.mubr.f32.gmra.mrb[0].mxu0 %v268
      %v348 = vpop.f32.mrb[0].mxu0
      %v349 = vadd.f32 %v275, %v348
      %v350 = vpop.f32.mrb[0].mxu0
      %351 = vmatprep.mubr.f32.mxu0 0.0
      %352 = vmatmul.mubr.f32.gmra.mrb[0].mxu0 %v269
      %v353 = vpop.f32.mrb[0].mxu0
      %v354 = vadd.f32 %v280, %v353
      %v355 = vpop.f32.mrb[0].mxu0
      %356 = vdwg.mxu0
      %v357 = vmax.f32 %v349, 0.0
      %v358 = vmax.f32 %v354, 0.0
      %v359 = vld [vmem:[%s3] sm:$0x1]
      %v360 = vlaneseq
      %v361 = vshrl.u32 %v360, 7
      %v362 = vsub.s32 0, %v361
      %v363 = vrot.slane %v359, %v362
      %v364 = vmul.f32 %v357, %v363
      %v365 = vmul.f32 %v358, %v363
      %vm366 = vcmask 195584
      %367 = vst.msk [vmem:[#allocation2] sm:$0xff] %vm366, %v364
      %368 = vst.msk [vmem:[#allocation2 + $0x8] sm:$0xff] %vm366, %v365
      %v369 = vld [vmem:[%s246] sm:$0xff]
      %v370 = vld [vmem:[%s246 + $0x8] sm:$0xff]
      %v371 = vld [vmem:[%s246 + $0x10] sm:$0xff]
      %v372 = vld [vmem:[%s246 + $0x18] sm:$0xff]
      %v373 = vld [vmem:[%s246 + $0x20] sm:$0xff]
      %v374 = vld [vmem:[%s246 + $0x28] sm:$0xff]
      %v375 = vld [vmem:[%s246 + $0x30] sm:$0xff]
      %v376 = vld [vmem:[%s246 + $0x38] sm:$0xff]
      %v377 = vld [vmem:[%s246 + $0x40] sm:$0xff]
      %v378 = vld [vmem:[%s246 + $0x48] sm:$0xff]
      %v379 = vld [vmem:[%s246 + $0x50] sm:$0xff]
      %v380 = vld [vmem:[%s246 + $0x58] sm:$0xff]
      %v381 = vld [vmem:[%s246 + $0x60] sm:$0xff]
      %v382 = vld [vmem:[%s246 + $0x68] sm:$0xff]
      %v383 = vld [vmem:[%s246 + $0x70] sm:$0xff]
      %v384 = vld [vmem:[%s246 + $0x78] sm:$0xff]
      %s385 = scalar_lea.vmem %s1, 16
      %v386 = vld [vmem:[%s385] sm:$0xff]
      %v387 = vld [vmem:[%s385 + $0x8] sm:$0xff]
      %s388 = scalar_lea.vmem %s1, 32
      %v389 = vld [vmem:[%s388] sm:$0xff]
      %v390 = vld [vmem:[%s388 + $0x8] sm:$0xff]
      %407 = vrot.lane.b32.xlu0 %v369, 127
      %v408 = vpop.permute.xlu0 %407
      %409 = vrot.lane.b32.xlu0 %v370, 127
      %v410 = vpop.permute.xlu0 %409
      %411 = vrot.lane.b32.xlu0 %v371, 127
      %v412 = vpop.permute.xlu0 %411
      %413 = vrot.lane.b32.xlu0 %v372, 127
      %v414 = vpop.permute.xlu0 %413
      %415 = vrot.lane.b32.xlu0 %v373, 127
      %v416 = vpop.permute.xlu0 %415
      %417 = vrot.lane.b32.xlu0 %v374, 127
      %v418 = vpop.permute.xlu0 %417
      %419 = vrot.lane.b32.xlu0 %v375, 127
      %v420 = vpop.permute.xlu0 %419
      %421 = vrot.lane.b32.xlu0 %v376, 127
      %v422 = vpop.permute.xlu0 %421
      %423 = vrot.lane.b32.xlu0 %v377, 127
      %v424 = vpop.permute.xlu0 %423
      %425 = vrot.lane.b32.xlu0 %v378, 127
      %v426 = vpop.permute.xlu0 %425
      %427 = vrot.lane.b32.xlu0 %v379, 127
      %v428 = vpop.permute.xlu0 %427
      %429 = vrot.lane.b32.xlu0 %v380, 127
      %v430 = vpop.permute.xlu0 %429
      %431 = vrot.lane.b32.xlu0 %v381, 127
      %v432 = vpop.permute.xlu0 %431
      %433 = vrot.lane.b32.xlu0 %v382, 127
      %v434 = vpop.permute.xlu0 %433
      %435 = vrot.lane.b32.xlu0 %v383, 127
      %v436 = vpop.permute.xlu0 %435
      %437 = vrot.lane.b32.xlu0 %v384, 127
      %v438 = vpop.permute.xlu0 %437
      %455 = vmatprep.subr.mxu0 0.0
      %456 = vmatpush1.msra.mxu0 %v408
      %457 = vmatprep.subr.mxu0 0.0
      %458 = vmatpush1.msra.mxu0 %v410
      %459 = vmatprep.subr.mxu0 0.0
      %460 = vmatpush1.msra.mxu0 %v412
      %461 = vmatprep.subr.mxu0 0.0
      %462 = vmatpush1.msra.mxu0 %v414
      %463 = vmatprep.subr.mxu0 0.0
      %464 = vmatpush1.msra.mxu0 %v416
      %465 = vmatprep.subr.mxu0 0.0
      %466 = vmatpush1.msra.mxu0 %v418
      %467 = vmatprep.subr.mxu0 0.0
      %468 = vmatpush1.msra.mxu0 %v420
      %469 = vmatprep.subr.mxu0 0.0
      %470 = vmatpush1.msra.mxu0 %v422
      %471 = vmatprep.subr.mxu0 0.0
      %472 = vmatpush1.msra.mxu0 %v424
      %473 = vmatprep.subr.mxu0 0.0
      %474 = vmatpush1.msra.mxu0 %v426
      %475 = vmatprep.subr.mxu0 0.0
      %476 = vmatpush1.msra.mxu0 %v428
      %477 = vmatprep.subr.mxu0 0.0
      %478 = vmatpush1.msra.mxu0 %v430
      %479 = vmatprep.subr.mxu0 0.0
      %480 = vmatpush1.msra.mxu0 %v432
      %481 = vmatprep.subr.mxu0 0.0
      %482 = vmatpush1.msra.mxu0 %v434
      %483 = vmatprep.subr.mxu0 0.0
      %484 = vmatpush1.msra.mxu0 %v436
      %485 = vmatprep.subr.mxu0 0.0
      %486 = vmatpush1.msra.mxu0 %v438
      %487 = vmatprep.subr.mxu0 0.0
      %488 = vmatpush1.msra.mxu0 0.0
      %489 = vmatprep.subr.mxu0 0.0
      %490 = vmatpush1.msra.mxu0 0.0
      %491 = vmatprep.subr.mxu0 0.0
      %492 = vmatpush1.msra.mxu0 0.0
      %493 = vmatprep.subr.mxu0 0.0
      %494 = vmatpush1.msra.mxu0 0.0
      %495 = vmatprep.subr.mxu0 0.0
      %496 = vmatpush1.msra.mxu0 0.0
      %497 = vmatprep.subr.mxu0 0.0
      %498 = vmatpush1.msra.mxu0 0.0
      %499 = vmatprep.subr.mxu0 0.0
      %500 = vmatpush1.msra.mxu0 0.0
      %501 = vmatprep.subr.mxu0 0.0
      %502 = vmatpush1.msra.mxu0 0.0
      %503 = vmatprep.subr.mxu0 0.0
      %504 = vmatpush1.msra.mxu0 0.0
      %505 = vmatprep.subr.mxu0 0.0
      %506 = vmatpush1.msra.mxu0 0.0
      %507 = vmatprep.subr.mxu0 0.0
      %508 = vmatpush1.msra.mxu0 0.0
      %509 = vmatprep.subr.mxu0 0.0
      %510 = vmatpush1.msra.mxu0 0.0
      %511 = vmatprep.subr.mxu0 0.0
      %512 = vmatpush1.msra.mxu0 0.0
      %513 = vmatprep.subr.mxu0 0.0
      %514 = vmatpush1.msra.mxu0 0.0
      %515 = vmatprep.subr.mxu0 0.0
      %516 = vmatpush1.msra.mxu0 0.0
      %517 = vmatprep.subr.mxu0 0.0
      %518 = vmatpush1.msra.mxu0 0.0
      %519 = vmatprep.mubr.f32.mxu0 0.0
      %520 = vmatmul.mubr.f32.gmra.mrb[0].mxu0 %v389
      %v521 = vpop.f32.mrb[0].mxu0
      %v522 = vadd.f32 0.0, %v521
      %v523 = vpop.f32.mrb[0].mxu0
      %524 = vmatprep.mubr.f32.mxu0 0.0
      %525 = vmatmul.mubr.f32.gmra.mrb[0].mxu0 %v390
      %v526 = vpop.f32.mrb[0].mxu0
      %v527 = vadd.f32 0.0, %v526
      %v528 = vpop.f32.mrb[0].mxu0
      %529 = vdwg.mxu0
      %530 = vmatprep.subr.mxu0 0.0
      %531 = vmatpush1.msra.mxu0 %v369
      %532 = vmatprep.subr.mxu0 0.0
      %533 = vmatpush1.msra.mxu0 %v370
      %534 = vmatprep.subr.mxu0 0.0
      %535 = vmatpush1.msra.mxu0 %v371
      %536 = vmatprep.subr.mxu0 0.0
      %537 = vmatpush1.msra.mxu0 %v372
      %538 = vmatprep.subr.mxu0 0.0
      %539 = vmatpush1.msra.mxu0 %v373
      %540 = vmatprep.subr.mxu0 0.0
      %541 = vmatpush1.msra.mxu0 %v374
      %542 = vmatprep.subr.mxu0 0.0
      %543 = vmatpush1.msra.mxu0 %v375
      %544 = vmatprep.subr.mxu0 0.0
      %545 = vmatpush1.msra.mxu0 %v376
      %546 = vmatprep.subr.mxu0 0.0
      %547 = vmatpush1.msra.mxu0 %v377
      %548 = vmatprep.subr.mxu0 0.0
      %549 = vmatpush1.msra.mxu0 %v378
      %550 = vmatprep.subr.mxu0 0.0
      %551 = vmatpush1.msra.mxu0 %v379
      %552 = vmatprep.subr.mxu0 0.0
      %553 = vmatpush1.msra.mxu0 %v380
      %554 = vmatprep.subr.mxu0 0.0
      %555 = vmatpush1.msra.mxu0 %v381
      %556 = vmatprep.subr.mxu0 0.0
      %557 = vmatpush1.msra.mxu0 %v382
      %558 = vmatprep.subr.mxu0 0.0
      %559 = vmatpush1.msra.mxu0 %v383
      %560 = vmatprep.subr.mxu0 0.0
      %561 = vmatpush1.msra.mxu0 %v384
      %562 = vmatprep.subr.mxu0 0.0
      %563 = vmatpush1.msra.mxu0 0.0
      %564 = vmatprep.subr.mxu0 0.0
      %565 = vmatpush1.msra.mxu0 0.0
      %566 = vmatprep.subr.mxu0 0.0
      %567 = vmatpush1.msra.mxu0 0.0
      %568 = vmatprep.subr.mxu0 0.0
      %569 = vmatpush1.msra.mxu0 0.0
      %570 = vmatprep.subr.mxu0 0.0
      %571 = vmatpush1.msra.mxu0 0.0
      %572 = vmatprep.subr.mxu0 0.0
      %573 = vmatpush1.msra.mxu0 0.0
      %574 = vmatprep.subr.mxu0 0.0
      %575 = vmatpush1.msra.mxu0 0.0
      %576 = vmatprep.subr.mxu0 0.0
      %577 = vmatpush1.msra.mxu0 0.0
      %578 = vmatprep.subr.mxu0 0.0
      %579 = vmatpush1.msra.mxu0 0.0
      %580 = vmatprep.subr.mxu0 0.0
      %581 = vmatpush1.msra.mxu0 0.0
      %582 = vmatprep.subr.mxu0 0.0
      %583 = vmatpush1.msra.mxu0 0.0
      %584 = vmatprep.subr.mxu0 0.0
      %585 = vmatpush1.msra.mxu0 0.0
      %586 = vmatprep.subr.mxu0 0.0
      %587 = vmatpush1.msra.mxu0 0.0
      %588 = vmatprep.subr.mxu0 0.0
      %589 = vmatpush1.msra.mxu0 0.0
      %590 = vmatprep.subr.mxu0 0.0
      %591 = vmatpush1.msra.mxu0 0.0
      %592 = vmatprep.subr.mxu0 0.0
      %593 = vmatpush1.msra.mxu0 0.0
      %594 = vmatprep.mubr.f32.mxu0 0.0
      %595 = vmatmul.mubr.f32.gmra.mrb[0].mxu0 %v386
      %v596 = vpop.f32.mrb[0].mxu0
      %v597 = vadd.f32 %v522, %v596
      %v598 = vpop.f32.mrb[0].mxu0
      %599 = vmatprep.mubr.f32.mxu0 0.0
      %600 = vmatmul.mubr.f32.gmra.mrb[0].mxu0 %v387
      %v601 = vpop.f32.mrb[0].mxu0
      %v602 = vadd.f32 %v527, %v601
      %v603 = vpop.f32.mrb[0].mxu0
      %604 = vdwg.mxu0
      %v605 = vld [vmem:[%s2] sm:$0xff]
      %v606 = vld [vmem:[%s2 + $0x8] sm:$0xff]
      %608 = vset.pattern.permute.xlu0 0
      %609 = vperm.xlu0 %608, %v605
      %v610 = vpop.permute.xlu0 %609
      %613 = vset.pattern.permute.xlu0 0
      %614 = vperm.xlu0 %613, %v606
      %v615 = vpop.permute.xlu0 %614
      %v617 = vadd.f32 %v597, %v610
      %v618 = vadd.f32 %v602, %v615
      %v619 = vmax.f32 %v617, 0.0
      %v620 = vmax.f32 %v618, 0.0
      %v621 = vld [vmem:[%s3 + $0x1] sm:$0x1]
      %v622 = vlaneseq
      %v623 = vshrl.u32 %v622, 7
      %v624 = vsub.s32 0, %v623
      %v625 = vrot.slane %v621, %v624
      %v626 = vmul.f32 %v619, %v625
      %v627 = vmul.f32 %v620, %v625
      %628 = vst.msk [vmem:[#allocation2 + $0x10] sm:$0xff] %vm366, %v626
      %629 = vst.msk [vmem:[#allocation2 + $0x18] sm:$0xff] %vm366, %v627
      %v630 = vld [vmem:[%s246] sm:$0xff]
      %v631 = vld [vmem:[%s246 + $0x8] sm:$0xff]
      %v632 = vld [vmem:[%s246 + $0x10] sm:$0xff]
      %v633 = vld [vmem:[%s246 + $0x18] sm:$0xff]
      %v634 = vld [vmem:[%s246 + $0x20] sm:$0xff]
      %v635 = vld [vmem:[%s246 + $0x28] sm:$0xff]
      %v636 = vld [vmem:[%s246 + $0x30] sm:$0xff]
      %v637 = vld [vmem:[%s246 + $0x38] sm:$0xff]
      %v638 = vld [vmem:[%s246 + $0x40] sm:$0xff]
      %v639 = vld [vmem:[%s246 + $0x48] sm:$0xff]
      %v640 = vld [vmem:[%s246 + $0x50] sm:$0xff]
      %v641 = vld [vmem:[%s246 + $0x58] sm:$0xff]
      %v642 = vld [vmem:[%s246 + $0x60] sm:$0xff]
      %v643 = vld [vmem:[%s246 + $0x68] sm:$0xff]
      %v644 = vld [vmem:[%s246 + $0x70] sm:$0xff]
      %v645 = vld [vmem:[%s246 + $0x78] sm:$0xff]
      %s646 = scalar_lea.vmem %s1, 48
      %v647 = vld [vmem:[%s646] sm:$0xff]
      %v648 = vld [vmem:[%s646 + $0x8] sm:$0xff]
      %s649 = scalar_lea.vmem %s1, 64
      %v650 = vld [vmem:[%s649] sm:$0xff]
      %v651 = vld [vmem:[%s649 + $0x8] sm:$0xff]
      %668 = vrot.lane.b32.xlu0 %v630, 120
      %v669 = vpop.permute.xlu0 %668
      %670 = vrot.lane.b32.xlu0 %v631, 120
      %v671 = vpop.permute.xlu0 %670
      %672 = vrot.lane.b32.xlu0 %v632, 120
      %v673 = vpop.permute.xlu0 %672
      %674 = vrot.lane.b32.xlu0 %v633, 120
      %v675 = vpop.permute.xlu0 %674
      %676 = vrot.lane.b32.xlu0 %v634, 120
      %v677 = vpop.permute.xlu0 %676
      %678 = vrot.lane.b32.xlu0 %v635, 120
      %v679 = vpop.permute.xlu0 %678
      %680 = vrot.lane.b32.xlu0 %v636, 120
      %v681 = vpop.permute.xlu0 %680
      %682 = vrot.lane.b32.xlu0 %v637, 120
      %v683 = vpop.permute.xlu0 %682
      %684 = vrot.lane.b32.xlu0 %v638, 120
      %v685 = vpop.permute.xlu0 %684
      %686 = vrot.lane.b32.xlu0 %v639, 120
      %v687 = vpop.permute.xlu0 %686
      %688 = vrot.lane.b32.xlu0 %v640, 120
      %v689 = vpop.permute.xlu0 %688
      %690 = vrot.lane.b32.xlu0 %v641, 120
      %v691 = vpop.permute.xlu0 %690
      %692 = vrot.lane.b32.xlu0 %v642, 120
      %v693 = vpop.permute.xlu0 %692
      %694 = vrot.lane.b32.xlu0 %v643, 120
      %v695 = vpop.permute.xlu0 %694
      %696 = vrot.lane.b32.xlu0 %v644, 120
      %v697 = vpop.permute.xlu0 %696
      %698 = vrot.lane.b32.xlu0 %v645, 120
      %v699 = vpop.permute.xlu0 %698
      %716 = vmatprep.subr.mxu0 0.0
      %717 = vmatpush1.msra.mxu0 %v669
      %718 = vmatprep.subr.mxu0 0.0
      %719 = vmatpush1.msra.mxu0 %v671
      %720 = vmatprep.subr.mxu0 0.0
      %721 = vmatpush1.msra.mxu0 %v673
      %722 = vmatprep.subr.mxu0 0.0
      %723 = vmatpush1.msra.mxu0 %v675
      %724 = vmatprep.subr.mxu0 0.0
      %725 = vmatpush1.msra.mxu0 %v677
      %726 = vmatprep.subr.mxu0 0.0
      %727 = vmatpush1.msra.mxu0 %v679
      %728 = vmatprep.subr.mxu0 0.0
      %729 = vmatpush1.msra.mxu0 %v681
      %730 = vmatprep.subr.mxu0 0.0
      %731 = vmatpush1.msra.mxu0 %v683
      %732 = vmatprep.subr.mxu0 0.0
      %733 = vmatpush1.msra.mxu0 %v685
      %734 = vmatprep.subr.mxu0 0.0
      %735 = vmatpush1.msra.mxu0 %v687
      %736 = vmatprep.subr.mxu0 0.0
      %737 = vmatpush1.msra.mxu0 %v689
      %738 = vmatprep.subr.mxu0 0.0
      %739 = vmatpush1.msra.mxu0 %v691
      %740 = vmatprep.subr.mxu0 0.0
      %741 = vmatpush1.msra.mxu0 %v693
      %742 = vmatprep.subr.mxu0 0.0
      %743 = vmatpush1.msra.mxu0 %v695
      %744 = vmatprep.subr.mxu0 0.0
      %745 = vmatpush1.msra.mxu0 %v697
      %746 = vmatprep.subr.mxu0 0.0
      %747 = vmatpush1.msra.mxu0 %v699
      %748 = vmatprep.subr.mxu0 0.0
      %749 = vmatpush1.msra.mxu0 0.0
      %750 = vmatprep.subr.mxu0 0.0
      %751 = vmatpush1.msra.mxu0 0.0
      %752 = vmatprep.subr.mxu0 0.0
      %753 = vmatpush1.msra.mxu0 0.0
      %754 = vmatprep.subr.mxu0 0.0
      %755 = vmatpush1.msra.mxu0 0.0
      %756 = vmatprep.subr.mxu0 0.0
      %757 = vmatpush1.msra.mxu0 0.0
      %758 = vmatprep.subr.mxu0 0.0
      %759 = vmatpush1.msra.mxu0 0.0
      %760 = vmatprep.subr.mxu0 0.0
      %761 = vmatpush1.msra.mxu0 0.0
      %762 = vmatprep.subr.mxu0 0.0
      %763 = vmatpush1.msra.mxu0 0.0
      %764 = vmatprep.subr.mxu0 0.0
      %765 = vmatpush1.msra.mxu0 0.0
      %766 = vmatprep.subr.mxu0 0.0
      %767 = vmatpush1.msra.mxu0 0.0
      %768 = vmatprep.subr.mxu0 0.0
      %769 = vmatpush1.msra.mxu0 0.0
      %770 = vmatprep.subr.mxu0 0.0
      %771 = vmatpush1.msra.mxu0 0.0
      %772 = vmatprep.subr.mxu0 0.0
      %773 = vmatpush1.msra.mxu0 0.0
      %774 = vmatprep.subr.mxu0 0.0
      %775 = vmatpush1.msra.mxu0 0.0
      %776 = vmatprep.subr.mxu0 0.0
      %777 = vmatpush1.msra.mxu0 0.0
      %778 = vmatprep.subr.mxu0 0.0
      %779 = vmatpush1.msra.mxu0 0.0
      %780 = vmatprep.mubr.f32.mxu0 0.0
      %781 = vmatmul.mubr.f32.gmra.mrb[0].mxu0 %v650
      %v782 = vpop.f32.mrb[0].mxu0
      %v783 = vadd.f32 0.0, %v782
      %v784 = vpop.f32.mrb[0].mxu0
      %785 = vmatprep.mubr.f32.mxu0 0.0
      %786 = vmatmul.mubr.f32.gmra.mrb[0].mxu0 %v651
      %v787 = vpop.f32.mrb[0].mxu0
      %v788 = vadd.f32 0.0, %v787
      %v789 = vpop.f32.mrb[0].mxu0
      %790 = vdwg.mxu0
      %791 = vmatprep.subr.mxu0 0.0
      %792 = vmatpush1.msra.mxu0 %v630
      %793 = vmatprep.subr.mxu0 0.0
      %794 = vmatpush1.msra.mxu0 %v631
      %795 = vmatprep.subr.mxu0 0.0
      %796 = vmatpush1.msra.mxu0 %v632
      %797 = vmatprep.subr.mxu0 0.0
      %798 = vmatpush1.msra.mxu0 %v633
      %799 = vmatprep.subr.mxu0 0.0
      %800 = vmatpush1.msra.mxu0 %v634
      %801 = vmatprep.subr.mxu0 0.0
      %802 = vmatpush1.msra.mxu0 %v635
      %803 = vmatprep.subr.mxu0 0.0
      %804 = vmatpush1.msra.mxu0 %v636
      %805 = vmatprep.subr.mxu0 0.0
      %806 = vmatpush1.msra.mxu0 %v637
      %807 = vmatprep.subr.mxu0 0.0
      %808 = vmatpush1.msra.mxu0 %v638
      %809 = vmatprep.subr.mxu0 0.0
      %810 = vmatpush1.msra.mxu0 %v639
      %811 = vmatprep.subr.mxu0 0.0
      %812 = vmatpush1.msra.mxu0 %v640
      %813 = vmatprep.subr.mxu0 0.0
      %814 = vmatpush1.msra.mxu0 %v641
      %815 = vmatprep.subr.mxu0 0.0
      %816 = vmatpush1.msra.mxu0 %v642
      %817 = vmatprep.subr.mxu0 0.0
      %818 = vmatpush1.msra.mxu0 %v643
      %819 = vmatprep.subr.mxu0 0.0
      %820 = vmatpush1.msra.mxu0 %v644
      %821 = vmatprep.subr.mxu0 0.0
      %822 = vmatpush1.msra.mxu0 %v645
      %823 = vmatprep.subr.mxu0 0.0
      %824 = vmatpush1.msra.mxu0 0.0
      %825 = vmatprep.subr.mxu0 0.0
      %826 = vmatpush1.msra.mxu0 0.0
      %827 = vmatprep.subr.mxu0 0.0
      %828 = vmatpush1.msra.mxu0 0.0
      %829 = vmatprep.subr.mxu0 0.0
      %830 = vmatpush1.msra.mxu0 0.0
      %831 = vmatprep.subr.mxu0 0.0
      %832 = vmatpush1.msra.mxu0 0.0
      %833 = vmatprep.subr.mxu0 0.0
      %834 = vmatpush1.msra.mxu0 0.0
      %835 = vmatprep.subr.mxu0 0.0
      %836 = vmatpush1.msra.mxu0 0.0
      %837 = vmatprep.subr.mxu0 0.0
      %838 = vmatpush1.msra.mxu0 0.0
      %839 = vmatprep.subr.mxu0 0.0
      %840 = vmatpush1.msra.mxu0 0.0
      %841 = vmatprep.subr.mxu0 0.0
      %842 = vmatpush1.msra.mxu0 0.0
      %843 = vmatprep.subr.mxu0 0.0
      %844 = vmatpush1.msra.mxu0 0.0
      %845 = vmatprep.subr.mxu0 0.0
      %846 = vmatpush1.msra.mxu0 0.0
      %847 = vmatprep.subr.mxu0 0.0
      %848 = vmatpush1.msra.mxu0 0.0
      %849 = vmatprep.subr.mxu0 0.0
      %850 = vmatpush1.msra.mxu0 0.0
      %851 = vmatprep.subr.mxu0 0.0
      %852 = vmatpush1.msra.mxu0 0.0
      %853 = vmatprep.subr.mxu0 0.0
      %854 = vmatpush1.msra.mxu0 0.0
      %855 = vmatprep.mubr.f32.mxu0 0.0
      %856 = vmatmul.mubr.f32.gmra.mrb[0].mxu0 %v647
      %v857 = vpop.f32.mrb[0].mxu0
      %v858 = vadd.f32 %v783, %v857
      %v859 = vpop.f32.mrb[0].mxu0
      %860 = vmatprep.mubr.f32.mxu0 0.0
      %861 = vmatmul.mubr.f32.gmra.mrb[0].mxu0 %v648
      %v862 = vpop.f32.mrb[0].mxu0
      %v863 = vadd.f32 %v788, %v862
      %v864 = vpop.f32.mrb[0].mxu0
      %865 = vdwg.mxu0
      %v866 = vld [vmem:[%s2] sm:$0xff]
      %v867 = vld [vmem:[%s2 + $0x8] sm:$0xff]
      %869 = vset.pattern.permute.xlu0 0
      %870 = vperm.xlu0 %869, %v866
      %v871 = vpop.permute.xlu0 %870
      %874 = vset.pattern.permute.xlu0 0
      %875 = vperm.xlu0 %874, %v867
      %v876 = vpop.permute.xlu0 %875
      %v878 = vadd.f32 %v858, %v871
      %v879 = vadd.f32 %v863, %v876
      %v880 = vmax.f32 %v878, 0.0
      %v881 = vmax.f32 %v879, 0.0
      %v882 = vld [vmem:[%s3 + $0x2] sm:$0x1]
      %v883 = vlaneseq
      %v884 = vshrl.u32 %v883, 7
      %v885 = vsub.s32 0, %v884
      %v886 = vrot.slane %v882, %v885
      %v887 = vmul.f32 %v880, %v886
      %v888 = vmul.f32 %v881, %v886
      %889 = vst.msk [vmem:[#allocation2 + $0x20] sm:$0xff] %vm366, %v887
      %890 = vst.msk [vmem:[#allocation2 + $0x28] sm:$0xff] %vm366, %v888
      %v891 = vld [vmem:[%s246] sm:$0xff]
      %v892 = vld [vmem:[%s246 + $0x8] sm:$0xff]
      %v893 = vld [vmem:[%s246 + $0x10] sm:$0xff]
      %v894 = vld [vmem:[%s246 + $0x18] sm:$0xff]
      %v895 = vld [vmem:[%s246 + $0x20] sm:$0xff]
      %v896 = vld [vmem:[%s246 + $0x28] sm:$0xff]
      %v897 = vld [vmem:[%s246 + $0x30] sm:$0xff]
      %v898 = vld [vmem:[%s246 + $0x38] sm:$0xff]
      %v899 = vld [vmem:[%s246 + $0x40] sm:$0xff]
      %v900 = vld [vmem:[%s246 + $0x48] sm:$0xff]
      %v901 = vld [vmem:[%s246 + $0x50] sm:$0xff]
      %v902 = vld [vmem:[%s246 + $0x58] sm:$0xff]
      %v903 = vld [vmem:[%s246 + $0x60] sm:$0xff]
      %v904 = vld [vmem:[%s246 + $0x68] sm:$0xff]
      %v905 = vld [vmem:[%s246 + $0x70] sm:$0xff]
      %v906 = vld [vmem:[%s246 + $0x78] sm:$0xff]
      %s907 = scalar_lea.vmem %s1, 80
      %v908 = vld [vmem:[%s907] sm:$0xff]
      %v909 = vld [vmem:[%s907 + $0x8] sm:$0xff]
      %s910 = scalar_lea.vmem %s1, 96
      %v911 = vld [vmem:[%s910] sm:$0xff]
      %v912 = vld [vmem:[%s910 + $0x8] sm:$0xff]
      %929 = vrot.lane.b32.xlu0 %v891, 127
      %v930 = vpop.permute.xlu0 %929
      %931 = vrot.lane.b32.xlu0 %v892, 127
      %v932 = vpop.permute.xlu0 %931
      %933 = vrot.lane.b32.xlu0 %v893, 127
      %v934 = vpop.permute.xlu0 %933
      %935 = vrot.lane.b32.xlu0 %v894, 127
      %v936 = vpop.permute.xlu0 %935
      %937 = vrot.lane.b32.xlu0 %v895, 127
      %v938 = vpop.permute.xlu0 %937
      %939 = vrot.lane.b32.xlu0 %v896, 127
      %v940 = vpop.permute.xlu0 %939
      %941 = vrot.lane.b32.xlu0 %v897, 127
      %v942 = vpop.permute.xlu0 %941
      %943 = vrot.lane.b32.xlu0 %v898, 127
      %v944 = vpop.permute.xlu0 %943
      %945 = vrot.lane.b32.xlu0 %v899, 127
      %v946 = vpop.permute.xlu0 %945
      %947 = vrot.lane.b32.xlu0 %v900, 127
      %v948 = vpop.permute.xlu0 %947
      %949 = vrot.lane.b32.xlu0 %v901, 127
      %v950 = vpop.permute.xlu0 %949
      %951 = vrot.lane.b32.xlu0 %v902, 127
      %v952 = vpop.permute.xlu0 %951
      %953 = vrot.lane.b32.xlu0 %v903, 127
      %v954 = vpop.permute.xlu0 %953
      %955 = vrot.lane.b32.xlu0 %v904, 127
      %v956 = vpop.permute.xlu0 %955
      %957 = vrot.lane.b32.xlu0 %v905, 127
      %v958 = vpop.permute.xlu0 %957
      %959 = vrot.lane.b32.xlu0 %v906, 127
      %v960 = vpop.permute.xlu0 %959
      %977 = vmatprep.subr.mxu0 0.0
      %978 = vmatpush1.msra.mxu0 %v930
      %979 = vmatprep.subr.mxu0 0.0
      %980 = vmatpush1.msra.mxu0 %v932
      %981 = vmatprep.subr.mxu0 0.0
      %982 = vmatpush1.msra.mxu0 %v934
      %983 = vmatprep.subr.mxu0 0.0
      %984 = vmatpush1.msra.mxu0 %v936
      %985 = vmatprep.subr.mxu0 0.0
      %986 = vmatpush1.msra.mxu0 %v938
      %987 = vmatprep.subr.mxu0 0.0
      %988 = vmatpush1.msra.mxu0 %v940
      %989 = vmatprep.subr.mxu0 0.0
      %990 = vmatpush1.msra.mxu0 %v942
      %991 = vmatprep.subr.mxu0 0.0
      %992 = vmatpush1.msra.mxu0 %v944
      %993 = vmatprep.subr.mxu0 0.0
      %994 = vmatpush1.msra.mxu0 %v946
      %995 = vmatprep.subr.mxu0 0.0
      %996 = vmatpush1.msra.mxu0 %v948
      %997 = vmatprep.subr.mxu0 0.0
      %998 = vmatpush1.msra.mxu0 %v950
      %999 = vmatprep.subr.mxu0 0.0
      %1000 = vmatpush1.msra.mxu0 %v952
      %1001 = vmatprep.subr.mxu0 0.0
      %1002 = vmatpush1.msra.mxu0 %v954
      %1003 = vmatprep.subr.mxu0 0.0
      %1004 = vmatpush1.msra.mxu0 %v956
      %1005 = vmatprep.subr.mxu0 0.0
      %1006 = vmatpush1.msra.mxu0 %v958
      %1007 = vmatprep.subr.mxu0 0.0
      %1008 = vmatpush1.msra.mxu0 %v960
      %1009 = vmatprep.subr.mxu0 0.0
      %1010 = vmatpush1.msra.mxu0 0.0
      %1011 = vmatprep.subr.mxu0 0.0
      %1012 = vmatpush1.msra.mxu0 0.0
      %1013 = vmatprep.subr.mxu0 0.0
      %1014 = vmatpush1.msra.mxu0 0.0
      %1015 = vmatprep.subr.mxu0 0.0
      %1016 = vmatpush1.msra.mxu0 0.0
      %1017 = vmatprep.subr.mxu0 0.0
      %1018 = vmatpush1.msra.mxu0 0.0
      %1019 = vmatprep.subr.mxu0 0.0
      %1020 = vmatpush1.msra.mxu0 0.0
      %1021 = vmatprep.subr.mxu0 0.0
      %1022 = vmatpush1.msra.mxu0 0.0
      %1023 = vmatprep.subr.mxu0 0.0
      %1024 = vmatpush1.msra.mxu0 0.0
      %1025 = vmatprep.subr.mxu0 0.0
      %1026 = vmatpush1.msra.mxu0 0.0
      %1027 = vmatprep.subr.mxu0 0.0
      %1028 = vmatpush1.msra.mxu0 0.0
      %1029 = vmatprep.subr.mxu0 0.0
      %1030 = vmatpush1.msra.mxu0 0.0
      %1031 = vmatprep.subr.mxu0 0.0
      %1032 = vmatpush1.msra.mxu0 0.0
      %1033 = vmatprep.subr.mxu0 0.0
      %1034 = vmatpush1.msra.mxu0 0.0
      %1035 = vmatprep.subr.mxu0 0.0
      %1036 = vmatpush1.msra.mxu0 0.0
      %1037 = vmatprep.subr.mxu0 0.0
      %1038 = vmatpush1.msra.mxu0 0.0
      %1039 = vmatprep.subr.mxu0 0.0
      %1040 = vmatpush1.msra.mxu0 0.0
      %1041 = vmatprep.mubr.f32.mxu0 0.0
      %1042 = vmatmul.mubr.f32.gmra.mrb[0].mxu0 %v911
      %v1043 = vpop.f32.mrb[0].mxu0
      %v1044 = vadd.f32 0.0, %v1043
      %v1045 = vpop.f32.mrb[0].mxu0
      %1046 = vmatprep.mubr.f32.mxu0 0.0
      %1047 = vmatmul.mubr.f32.gmra.mrb[0].mxu0 %v912
      %v1048 = vpop.f32.mrb[0].mxu0
      %v1049 = vadd.f32 0.0, %v1048
      %v1050 = vpop.f32.mrb[0].mxu0
      %1051 = vdwg.mxu0
      %1052 = vmatprep.subr.mxu0 0.0
      %1053 = vmatpush1.msra.mxu0 %v891
      %1054 = vmatprep.subr.mxu0 0.0
      %1055 = vmatpush1.msra.mxu0 %v892
      %1056 = vmatprep.subr.mxu0 0.0
      %1057 = vmatpush1.msra.mxu0 %v893
      %1058 = vmatprep.subr.mxu0 0.0
      %1059 = vmatpush1.msra.mxu0 %v894
      %1060 = vmatprep.subr.mxu0 0.0
      %1061 = vmatpush1.msra.mxu0 %v895
      %1062 = vmatprep.subr.mxu0 0.0
      %1063 = vmatpush1.msra.mxu0 %v896
      %1064 = vmatprep.subr.mxu0 0.0
      %1065 = vmatpush1.msra.mxu0 %v897
      %1066 = vmatprep.subr.mxu0 0.0
      %1067 = vmatpush1.msra.mxu0 %v898
      %1068 = vmatprep.subr.mxu0 0.0
      %1069 = vmatpush1.msra.mxu0 %v899
      %1070 = vmatprep.subr.mxu0 0.0
      %1071 = vmatpush1.msra.mxu0 %v900
      %1072 = vmatprep.subr.mxu0 0.0
      %1073 = vmatpush1.msra.mxu0 %v901
      %1074 = vmatprep.subr.mxu0 0.0
      %1075 = vmatpush1.msra.mxu0 %v902
      %1076 = vmatprep.subr.mxu0 0.0
      %1077 = vmatpush1.msra.mxu0 %v903
      %1078 = vmatprep.subr.mxu0 0.0
      %1079 = vmatpush1.msra.mxu0 %v904
      %1080 = vmatprep.subr.mxu0 0.0
      %1081 = vmatpush1.msra.mxu0 %v905
      %1082 = vmatprep.subr.mxu0 0.0
      %1083 = vmatpush1.msra.mxu0 %v906
      %1084 = vmatprep.subr.mxu0 0.0
      %1085 = vmatpush1.msra.mxu0 0.0
      %1086 = vmatprep.subr.mxu0 0.0
      %1087 = vmatpush1.msra.mxu0 0.0
      %1088 = vmatprep.subr.mxu0 0.0
      %1089 = vmatpush1.msra.mxu0 0.0
      %1090 = vmatprep.subr.mxu0 0.0
      %1091 = vmatpush1.msra.mxu0 0.0
      %1092 = vmatprep.subr.mxu0 0.0
      %1093 = vmatpush1.msra.mxu0 0.0
      %1094 = vmatprep.subr.mxu0 0.0
      %1095 = vmatpush1.msra.mxu0 0.0
      %1096 = vmatprep.subr.mxu0 0.0
      %1097 = vmatpush1.msra.mxu0 0.0
      %1098 = vmatprep.subr.mxu0 0.0
      %1099 = vmatpush1.msra.mxu0 0.0
      %1100 = vmatprep.subr.mxu0 0.0
      %1101 = vmatpush1.msra.mxu0 0.0
      %1102 = vmatprep.subr.mxu0 0.0
      %1103 = vmatpush1.msra.mxu0 0.0
      %1104 = vmatprep.subr.mxu0 0.0
      %1105 = vmatpush1.msra.mxu0 0.0
      %1106 = vmatprep.subr.mxu0 0.0
      %1107 = vmatpush1.msra.mxu0 0.0
      %1108 = vmatprep.subr.mxu0 0.0
      %1109 = vmatpush1.msra.mxu0 0.0
      %1110 = vmatprep.subr.mxu0 0.0
      %1111 = vmatpush1.msra.mxu0 0.0
      %1112 = vmatprep.subr.mxu0 0.0
      %1113 = vmatpush1.msra.mxu0 0.0
      %1114 = vmatprep.subr.mxu0 0.0
      %1115 = vmatpush1.msra.mxu0 0.0
      %1116 = vmatprep.mubr.f32.mxu0 0.0
      %1117 = vmatmul.mubr.f32.gmra.mrb[0].mxu0 %v908
      %v1118 = vpop.f32.mrb[0].mxu0
      %v1119 = vadd.f32 %v1044, %v1118
      %v1120 = vpop.f32.mrb[0].mxu0
      %1121 = vmatprep.mubr.f32.mxu0 0.0
      %1122 = vmatmul.mubr.f32.gmra.mrb[0].mxu0 %v909
      %v1123 = vpop.f32.mrb[0].mxu0
      %v1124 = vadd.f32 %v1049, %v1123
      %v1125 = vpop.f32.mrb[0].mxu0
      %1126 = vdwg.mxu0
      %s1127 = scalar_lea.vmem %s1, 112
      %v1128 = vld [vmem:[%s1127] sm:$0xff]
      %v1129 = vld [vmem:[%s1127 + $0x8] sm:$0xff]
      %1130 = vrot.lane.b32.xlu0 %v891, 120
      %v1131 = vpop.permute.xlu0 %1130
      %1132 = vrot.lane.b32.xlu0 %v892, 120
      %v1133 = vpop.permute.xlu0 %1132
      %1134 = vrot.lane.b32.xlu0 %v893, 120
      %v1135 = vpop.permute.xlu0 %1134
      %1136 = vrot.lane.b32.xlu0 %v894, 120
      %v1137 = vpop.permute.xlu0 %1136
      %1138 = vrot.lane.b32.xlu0 %v895, 120
      %v1139 = vpop.permute.xlu0 %1138
      %1140 = vrot.lane.b32.xlu0 %v896, 120
      %v1141 = vpop.permute.xlu0 %1140
      %1142 = vrot.lane.b32.xlu0 %v897, 120
      %v1143 = vpop.permute.xlu0 %1142
      %1144 = vrot.lane.b32.xlu0 %v898, 120
      %v1145 = vpop.permute.xlu0 %1144
      %1146 = vrot.lane.b32.xlu0 %v899, 120
      %v1147 = vpop.permute.xlu0 %1146
      %1148 = vrot.lane.b32.xlu0 %v900, 120
      %v1149 = vpop.permute.xlu0 %1148
      %1150 = vrot.lane.b32.xlu0 %v901, 120
      %v1151 = vpop.permute.xlu0 %1150
      %1152 = vrot.lane.b32.xlu0 %v902, 120
      %v1153 = vpop.permute.xlu0 %1152
      %1154 = vrot.lane.b32.xlu0 %v903, 120
      %v1155 = vpop.permute.xlu0 %1154
      %1156 = vrot.lane.b32.xlu0 %v904, 120
      %v1157 = vpop.permute.xlu0 %1156
      %1158 = vrot.lane.b32.xlu0 %v905, 120
      %v1159 = vpop.permute.xlu0 %1158
      %1160 = vrot.lane.b32.xlu0 %v906, 120
      %v1161 = vpop.permute.xlu0 %1160
      %1178 = vmatprep.subr.mxu0 0.0
      %1179 = vmatpush1.msra.mxu0 %v1131
      %1180 = vmatprep.subr.mxu0 0.0
      %1181 = vmatpush1.msra.mxu0 %v1133
      %1182 = vmatprep.subr.mxu0 0.0
      %1183 = vmatpush1.msra.mxu0 %v1135
      %1184 = vmatprep.subr.mxu0 0.0
      %1185 = vmatpush1.msra.mxu0 %v1137
      %1186 = vmatprep.subr.mxu0 0.0
      %1187 = vmatpush1.msra.mxu0 %v1139
      %1188 = vmatprep.subr.mxu0 0.0
      %1189 = vmatpush1.msra.mxu0 %v1141
      %1190 = vmatprep.subr.mxu0 0.0
      %1191 = vmatpush1.msra.mxu0 %v1143
      %1192 = vmatprep.subr.mxu0 0.0
      %1193 = vmatpush1.msra.mxu0 %v1145
      %1194 = vmatprep.subr.mxu0 0.0
      %1195 = vmatpush1.msra.mxu0 %v1147
      %1196 = vmatprep.subr.mxu0 0.0
      %1197 = vmatpush1.msra.mxu0 %v1149
      %1198 = vmatprep.subr.mxu0 0.0
      %1199 = vmatpush1.msra.mxu0 %v1151
      %1200 = vmatprep.subr.mxu0 0.0
      %1201 = vmatpush1.msra.mxu0 %v1153
      %1202 = vmatprep.subr.mxu0 0.0
      %1203 = vmatpush1.msra.mxu0 %v1155
      %1204 = vmatprep.subr.mxu0 0.0
      %1205 = vmatpush1.msra.mxu0 %v1157
      %1206 = vmatprep.subr.mxu0 0.0
      %1207 = vmatpush1.msra.mxu0 %v1159
      %1208 = vmatprep.subr.mxu0 0.0
      %1209 = vmatpush1.msra.mxu0 %v1161
      %1210 = vmatprep.subr.mxu0 0.0
      %1211 = vmatpush1.msra.mxu0 0.0
      %1212 = vmatprep.subr.mxu0 0.0
      %1213 = vmatpush1.msra.mxu0 0.0
      %1214 = vmatprep.subr.mxu0 0.0
      %1215 = vmatpush1.msra.mxu0 0.0
      %1216 = vmatprep.subr.mxu0 0.0
      %1217 = vmatpush1.msra.mxu0 0.0
      %1218 = vmatprep.subr.mxu0 0.0
      %1219 = vmatpush1.msra.mxu0 0.0
      %1220 = vmatprep.subr.mxu0 0.0
      %1221 = vmatpush1.msra.mxu0 0.0
      %1222 = vmatprep.subr.mxu0 0.0
      %1223 = vmatpush1.msra.mxu0 0.0
      %1224 = vmatprep.subr.mxu0 0.0
      %1225 = vmatpush1.msra.mxu0 0.0
      %1226 = vmatprep.subr.mxu0 0.0
      %1227 = vmatpush1.msra.mxu0 0.0
      %1228 = vmatprep.subr.mxu0 0.0
      %1229 = vmatpush1.msra.mxu0 0.0
      %1230 = vmatprep.subr.mxu0 0.0
      %1231 = vmatpush1.msra.mxu0 0.0
      %1232 = vmatprep.subr.mxu0 0.0
      %1233 = vmatpush1.msra.mxu0 0.0
      %1234 = vmatprep.subr.mxu0 0.0
      %1235 = vmatpush1.msra.mxu0 0.0
      %1236 = vmatprep.subr.mxu0 0.0
      %1237 = vmatpush1.msra.mxu0 0.0
      %1238 = vmatprep.subr.mxu0 0.0
      %1239 = vmatpush1.msra.mxu0 0.0
      %1240 = vmatprep.subr.mxu0 0.0
      %1241 = vmatpush1.msra.mxu0 0.0
      %1242 = vmatprep.mubr.f32.mxu0 0.0
      %1243 = vmatmul.mubr.f32.gmra.mrb[0].mxu0 %v1128
      %v1244 = vpop.f32.mrb[0].mxu0
      %v1245 = vadd.f32 0.0, %v1244
      %v1246 = vpop.f32.mrb[0].mxu0
      %1247 = vmatprep.mubr.f32.mxu0 0.0
      %1248 = vmatmul.mubr.f32.gmra.mrb[0].mxu0 %v1129
      %v1249 = vpop.f32.mrb[0].mxu0
      %v1250 = vadd.f32 0.0, %v1249
      %v1251 = vpop.f32.mrb[0].mxu0
      %1252 = vdwg.mxu0
      %v1253 = vadd.f32 %v1119, %v1245
      %v1254 = vadd.f32 %v1124, %v1250
      %s1255 = scalar_lea.vmem %s1, 128
      %v1256 = vld [vmem:[%s1255] sm:$0xff]
      %v1257 = vld [vmem:[%s1255 + $0x8] sm:$0xff]
      %1258 = vrot.lane.b32.xlu0 %v891, 119
      %v1259 = vpop.permute.xlu0 %1258
      %1260 = vrot.lane.b32.xlu0 %v892, 119
      %v1261 = vpop.permute.xlu0 %1260
      %1262 = vrot.lane.b32.xlu0 %v893, 119
      %v1263 = vpop.permute.xlu0 %1262
      %1264 = vrot.lane.b32.xlu0 %v894, 119
      %v1265 = vpop.permute.xlu0 %1264
      %1266 = vrot.lane.b32.xlu0 %v895, 119
      %v1267 = vpop.permute.xlu0 %1266
      %1268 = vrot.lane.b32.xlu0 %v896, 119
      %v1269 = vpop.permute.xlu0 %1268
      %1270 = vrot.lane.b32.xlu0 %v897, 119
      %v1271 = vpop.permute.xlu0 %1270
      %1272 = vrot.lane.b32.xlu0 %v898, 119
      %v1273 = vpop.permute.xlu0 %1272
      %1274 = vrot.lane.b32.xlu0 %v899, 119
      %v1275 = vpop.permute.xlu0 %1274
      %1276 = vrot.lane.b32.xlu0 %v900, 119
      %v1277 = vpop.permute.xlu0 %1276
      %1278 = vrot.lane.b32.xlu0 %v901, 119
      %v1279 = vpop.permute.xlu0 %1278
      %1280 = vrot.lane.b32.xlu0 %v902, 119
      %v1281 = vpop.permute.xlu0 %1280
      %1282 = vrot.lane.b32.xlu0 %v903, 119
      %v1283 = vpop.permute.xlu0 %1282
      %1284 = vrot.lane.b32.xlu0 %v904, 119
      %v1285 = vpop.permute.xlu0 %1284
      %1286 = vrot.lane.b32.xlu0 %v905, 119
      %v1287 = vpop.permute.xlu0 %1286
      %1288 = vrot.lane.b32.xlu0 %v906, 119
      %v1289 = vpop.permute.xlu0 %1288
      %1306 = vmatprep.subr.mxu0 0.0
      %1307 = vmatpush1.msra.mxu0 %v1259
      %1308 = vmatprep.subr.mxu0 0.0
      %1309 = vmatpush1.msra.mxu0 %v1261
      %1310 = vmatprep.subr.mxu0 0.0
      %1311 = vmatpush1.msra.mxu0 %v1263
      %1312 = vmatprep.subr.mxu0 0.0
      %1313 = vmatpush1.msra.mxu0 %v1265
      %1314 = vmatprep.subr.mxu0 0.0
      %1315 = vmatpush1.msra.mxu0 %v1267
      %1316 = vmatprep.subr.mxu0 0.0
      %1317 = vmatpush1.msra.mxu0 %v1269
      %1318 = vmatprep.subr.mxu0 0.0
      %1319 = vmatpush1.msra.mxu0 %v1271
      %1320 = vmatprep.subr.mxu0 0.0
      %1321 = vmatpush1.msra.mxu0 %v1273
      %1322 = vmatprep.subr.mxu0 0.0
      %1323 = vmatpush1.msra.mxu0 %v1275
      %1324 = vmatprep.subr.mxu0 0.0
      %1325 = vmatpush1.msra.mxu0 %v1277
      %1326 = vmatprep.subr.mxu0 0.0
      %1327 = vmatpush1.msra.mxu0 %v1279
      %1328 = vmatprep.subr.mxu0 0.0
      %1329 = vmatpush1.msra.mxu0 %v1281
      %1330 = vmatprep.subr.mxu0 0.0
      %1331 = vmatpush1.msra.mxu0 %v1283
      %1332 = vmatprep.subr.mxu0 0.0
      %1333 = vmatpush1.msra.mxu0 %v1285
      %1334 = vmatprep.subr.mxu0 0.0
      %1335 = vmatpush1.msra.mxu0 %v1287
      %1336 = vmatprep.subr.mxu0 0.0
      %1337 = vmatpush1.msra.mxu0 %v1289
      %1338 = vmatprep.subr.mxu0 0.0
      %1339 = vmatpush1.msra.mxu0 0.0
      %1340 = vmatprep.subr.mxu0 0.0
      %1341 = vmatpush1.msra.mxu0 0.0
      %1342 = vmatprep.subr.mxu0 0.0
      %1343 = vmatpush1.msra.mxu0 0.0
      %1344 = vmatprep.subr.mxu0 0.0
      %1345 = vmatpush1.msra.mxu0 0.0
      %1346 = vmatprep.subr.mxu0 0.0
      %1347 = vmatpush1.msra.mxu0 0.0
      %1348 = vmatprep.subr.mxu0 0.0
      %1349 = vmatpush1.msra.mxu0 0.0
      %1350 = vmatprep.subr.mxu0 0.0
      %1351 = vmatpush1.msra.mxu0 0.0
      %1352 = vmatprep.subr.mxu0 0.0
      %1353 = vmatpush1.msra.mxu0 0.0
      %1354 = vmatprep.subr.mxu0 0.0
      %1355 = vmatpush1.msra.mxu0 0.0
      %1356 = vmatprep.subr.mxu0 0.0
      %1357 = vmatpush1.msra.mxu0 0.0
      %1358 = vmatprep.subr.mxu0 0.0
      %1359 = vmatpush1.msra.mxu0 0.0
      %1360 = vmatprep.subr.mxu0 0.0
      %1361 = vmatpush1.msra.mxu0 0.0
      %1362 = vmatprep.subr.mxu0 0.0
      %1363 = vmatpush1.msra.mxu0 0.0
      %1364 = vmatprep.subr.mxu0 0.0
      %1365 = vmatpush1.msra.mxu0 0.0
      %1366 = vmatprep.subr.mxu0 0.0
      %1367 = vmatpush1.msra.mxu0 0.0
      %1368 = vmatprep.subr.mxu0 0.0
      %1369 = vmatpush1.msra.mxu0 0.0
      %1370 = vmatprep.mubr.f32.mxu0 0.0
      %1371 = vmatmul.mubr.f32.gmra.mrb[0].mxu0 %v1256
      %v1372 = vpop.f32.mrb[0].mxu0
      %v1373 = vadd.f32 0.0, %v1372
      %v1374 = vpop.f32.mrb[0].mxu0
      %1375 = vmatprep.mubr.f32.mxu0 0.0
      %1376 = vmatmul.mubr.f32.gmra.mrb[0].mxu0 %v1257
      %v1377 = vpop.f32.mrb[0].mxu0
      %v1378 = vadd.f32 0.0, %v1377
      %v1379 = vpop.f32.mrb[0].mxu0
      %1380 = vdwg.mxu0
      %v1381 = vadd.f32 %v1253, %v1373
      %v1382 = vadd.f32 %v1254, %v1378
      %v1383 = vld [vmem:[%s2] sm:$0xff]
      %v1384 = vld [vmem:[%s2 + $0x8] sm:$0xff]
      %1386 = vset.pattern.permute.xlu0 0
      %1387 = vperm.xlu0 %1386, %v1383
      %v1388 = vpop.permute.xlu0 %1387
      %1391 = vset.pattern.permute.xlu0 0
      %1392 = vperm.xlu0 %1391, %v1384
      %v1393 = vpop.permute.xlu0 %1392
      %v1395 = vadd.f32 %v1381, %v1388
      %v1396 = vadd.f32 %v1382, %v1393
      %v1397 = vmax.f32 %v1395, 0.0
      %v1398 = vmax.f32 %v1396, 0.0
      %v1399 = vld [vmem:[%s3 + $0x3] sm:$0x1]
      %v1400 = vlaneseq
      %v1401 = vshrl.u32 %v1400, 7
      %v1402 = vsub.s32 0, %v1401
      %v1403 = vrot.slane %v1399, %v1402
      %v1404 = vmul.f32 %v1397, %v1403
      %v1405 = vmul.f32 %v1398, %v1403
      %1406 = vst.msk [vmem:[#allocation2 + $0x30] sm:$0xff] %vm366, %v1404
      %1407 = vst.msk [vmem:[#allocation2 + $0x38] sm:$0xff] %vm366, %v1405
      %v1408 = vld [vmem:[#allocation2] sm:$0xff]
      %v1409 = vld [vmem:[#allocation2 + $0x8] sm:$0xff]
      %v1410 = vld [vmem:[#allocation2 + $0x10] sm:$0xff]
      %v1411 = vld [vmem:[#allocation2 + $0x18] sm:$0xff]
      %v1412 = vld [vmem:[#allocation2 + $0x20] sm:$0xff]
      %v1413 = vld [vmem:[#allocation2 + $0x28] sm:$0xff]
      %v1414 = vld [vmem:[#allocation2 + $0x30] sm:$0xff]
      %v1415 = vld [vmem:[#allocation2 + $0x38] sm:$0xff]
      %v1416 = vld [vmem:[%s4] sm:$0xff]
      %v1417 = vld [vmem:[%s4 + $0x8] sm:$0xff]
      %v1418 = vld [vmem:[%s4 + $0x10] sm:$0xff]
      %v1419 = vld [vmem:[%s4 + $0x18] sm:$0xff]
      %s1420 = scalar_lea.vmem %s4, 32
      %v1421 = vld [vmem:[%s1420] sm:$0xff]
      %v1422 = vld [vmem:[%s1420 + $0x8] sm:$0xff]
      %v1423 = vld [vmem:[%s1420 + $0x10] sm:$0xff]
      %v1424 = vld [vmem:[%s1420 + $0x18] sm:$0xff]
      %1433 = vrot.lane.b32.xlu0 %v1408, 127
      %v1434 = vpop.permute.xlu0 %1433
      %1435 = vrot.lane.b32.xlu0 %v1409, 127
      %v1436 = vpop.permute.xlu0 %1435
      %1437 = vrot.lane.b32.xlu0 %v1410, 127
      %v1438 = vpop.permute.xlu0 %1437
      %1439 = vrot.lane.b32.xlu0 %v1411, 127
      %v1440 = vpop.permute.xlu0 %1439
      %1441 = vrot.lane.b32.xlu0 %v1412, 127
      %v1442 = vpop.permute.xlu0 %1441
      %1443 = vrot.lane.b32.xlu0 %v1413, 127
      %v1444 = vpop.permute.xlu0 %1443
      %1445 = vrot.lane.b32.xlu0 %v1414, 127
      %v1446 = vpop.permute.xlu0 %1445
      %1447 = vrot.lane.b32.xlu0 %v1415, 127
      %v1448 = vpop.permute.xlu0 %1447
      %vm1457 = vcmask 523264
      %v1459 = vsel %vm1457, %v1421, 0
      %v1462 = vsel %vm1457, %v1422, 0
      %v1465 = vsel %vm1457, %v1423, 0
      %v1468 = vsel %vm1457, %v1424, 0
      %1470 = vmatprep.subr.mxu0 0.0
      %1471 = vmatpush1.msra.mxu0 %v1434
      %1472 = vmatprep.subr.mxu0 0.0
      %1473 = vmatpush1.msra.mxu0 %v1436
      %1474 = vmatprep.subr.mxu0 0.0
      %1475 = vmatpush1.msra.mxu0 %v1438
      %1476 = vmatprep.subr.mxu0 0.0
      %1477 = vmatpush1.msra.mxu0 %v1440
      %1478 = vmatprep.subr.mxu0 0.0
      %1479 = vmatpush1.msra.mxu0 %v1442
      %1480 = vmatprep.subr.mxu0 0.0
      %1481 = vmatpush1.msra.mxu0 %v1444
      %1482 = vmatprep.subr.mxu0 0.0
      %1483 = vmatpush1.msra.mxu0 %v1446
      %1484 = vmatprep.subr.mxu0 0.0
      %1485 = vmatpush1.msra.mxu0 %v1448
      %1486 = vmatprep.subr.mxu0 0.0
      %1487 = vmatpush1.msra.mxu0 0.0
      %1488 = vmatprep.subr.mxu0 0.0
      %1489 = vmatpush1.msra.mxu0 0.0
      %1490 = vmatprep.subr.mxu0 0.0
      %1491 = vmatpush1.msra.mxu0 0.0
      %1492 = vmatprep.subr.mxu0 0.0
      %1493 = vmatpush1.msra.mxu0 0.0
      %1494 = vmatprep.subr.mxu0 0.0
      %1495 = vmatpush1.msra.mxu0 0.0
      %1496 = vmatprep.subr.mxu0 0.0
      %1497 = vmatpush1.msra.mxu0 0.0
      %1498 = vmatprep.subr.mxu0 0.0
      %1499 = vmatpush1.msra.mxu0 0.0
      %1500 = vmatprep.subr.mxu0 0.0
      %1501 = vmatpush1.msra.mxu0 0.0
      %1502 = vmatprep.subr.mxu0 0.0
      %1503 = vmatpush1.msra.mxu0 0.0
      %1504 = vmatprep.subr.mxu0 0.0
      %1505 = vmatpush1.msra.mxu0 0.0
      %1506 = vmatprep.subr.mxu0 0.0
      %1507 = vmatpush1.msra.mxu0 0.0
      %1508 = vmatprep.subr.mxu0 0.0
      %1509 = vmatpush1.msra.mxu0 0.0
      %1510 = vmatprep.subr.mxu0 0.0
      %1511 = vmatpush1.msra.mxu0 0.0
      %1512 = vmatprep.subr.mxu0 0.0
      %1513 = vmatpush1.msra.mxu0 0.0
      %1514 = vmatprep.subr.mxu0 0.0
      %1515 = vmatpush1.msra.mxu0 0.0
      %1516 = vmatprep.subr.mxu0 0.0
      %1517 = vmatpush1.msra.mxu0 0.0
      %1518 = vmatprep.subr.mxu0 0.0
      %1519 = vmatpush1.msra.mxu0 0.0
      %1520 = vmatprep.subr.mxu0 0.0
      %1521 = vmatpush1.msra.mxu0 0.0
      %1522 = vmatprep.subr.mxu0 0.0
      %1523 = vmatpush1.msra.mxu0 0.0
      %1524 = vmatprep.subr.mxu0 0.0
      %1525 = vmatpush1.msra.mxu0 0.0
      %1526 = vmatprep.subr.mxu0 0.0
      %1527 = vmatpush1.msra.mxu0 0.0
      %1528 = vmatprep.subr.mxu0 0.0
      %1529 = vmatpush1.msra.mxu0 0.0
      %1530 = vmatprep.subr.mxu0 0.0
      %1531 = vmatpush1.msra.mxu0 0.0
      %1532 = vmatprep.subr.mxu0 0.0
      %1533 = vmatpush1.msra.mxu0 0.0
      %1534 = vmatprep.mubr.f32.mxu0 0.0
      %1535 = vmatmul.mubr.f32.gmra.mrb[0].mxu0 %v1459
      %v1536 = vpop.f32.mrb[0].mxu0
      %v1537 = vadd.f32 0.0, %v1536
      %v1538 = vpop.f32.mrb[0].mxu0
      %1539 = vmatprep.mubr.f32.mxu0 0.0
      %1540 = vmatmul.mubr.f32.gmra.mrb[0].mxu0 %v1462
      %v1541 = vpop.f32.mrb[0].mxu0
      %v1542 = vadd.f32 0.0, %v1541
      %v1543 = vpop.f32.mrb[0].mxu0
      %1544 = vmatprep.mubr.f32.mxu0 0.0
      %1545 = vmatmul.mubr.f32.gmra.mrb[0].mxu0 %v1465
      %v1546 = vpop.f32.mrb[0].mxu0
      %v1547 = vadd.f32 0.0, %v1546
      %v1548 = vpop.f32.mrb[0].mxu0
      %1549 = vmatprep.mubr.f32.mxu0 0.0
      %1550 = vmatmul.mubr.f32.gmra.mrb[0].mxu0 %v1468
      %v1551 = vpop.f32.mrb[0].mxu0
      %v1552 = vadd.f32 0.0, %v1551
      %v1553 = vpop.f32.mrb[0].mxu0
      %1554 = vdwg.mxu0
      %v1556 = vsel %vm1457, %v1416, 0
      %v1559 = vsel %vm1457, %v1417, 0
      %v1562 = vsel %vm1457, %v1418, 0
      %v1565 = vsel %vm1457, %v1419, 0
      %1567 = vmatprep.subr.mxu0 0.0
      %1568 = vmatpush1.msra.mxu0 %v1408
      %1569 = vmatprep.subr.mxu0 0.0
      %1570 = vmatpush1.msra.mxu0 %v1409
      %1571 = vmatprep.subr.mxu0 0.0
      %1572 = vmatpush1.msra.mxu0 %v1410
      %1573 = vmatprep.subr.mxu0 0.0
      %1574 = vmatpush1.msra.mxu0 %v1411
      %1575 = vmatprep.subr.mxu0 0.0
      %1576 = vmatpush1.msra.mxu0 %v1412
      %1577 = vmatprep.subr.mxu0 0.0
      %1578 = vmatpush1.msra.mxu0 %v1413
      %1579 = vmatprep.subr.mxu0 0.0
      %1580 = vmatpush1.msra.mxu0 %v1414
      %1581 = vmatprep.subr.mxu0 0.0
      %1582 = vmatpush1.msra.mxu0 %v1415
      %1583 = vmatprep.subr.mxu0 0.0
      %1584 = vmatpush1.msra.mxu0 0.0
      %1585 = vmatprep.subr.mxu0 0.0
      %1586 = vmatpush1.msra.mxu0 0.0
      %1587 = vmatprep.subr.mxu0 0.0
      %1588 = vmatpush1.msra.mxu0 0.0
      %1589 = vmatprep.subr.mxu0 0.0
      %1590 = vmatpush1.msra.mxu0 0.0
      %1591 = vmatprep.subr.mxu0 0.0
      %1592 = vmatpush1.msra.mxu0 0.0
      %1593 = vmatprep.subr.mxu0 0.0
      %1594 = vmatpush1.msra.mxu0 0.0
      %1595 = vmatprep.subr.mxu0 0.0
      %1596 = vmatpush1.msra.mxu0 0.0
      %1597 = vmatprep.subr.mxu0 0.0
      %1598 = vmatpush1.msra.mxu0 0.0
      %1599 = vmatprep.subr.mxu0 0.0
      %1600 = vmatpush1.msra.mxu0 0.0
      %1601 = vmatprep.subr.mxu0 0.0
      %1602 = vmatpush1.msra.mxu0 0.0
      %1603 = vmatprep.subr.mxu0 0.0
      %1604 = vmatpush1.msra.mxu0 0.0
      %1605 = vmatprep.subr.mxu0 0.0
      %1606 = vmatpush1.msra.mxu0 0.0
      %1607 = vmatprep.subr.mxu0 0.0
      %1608 = vmatpush1.msra.mxu0 0.0
      %1609 = vmatprep.subr.mxu0 0.0
      %1610 = vmatpush1.msra.mxu0 0.0
      %1611 = vmatprep.subr.mxu0 0.0
      %1612 = vmatpush1.msra.mxu0 0.0
      %1613 = vmatprep.subr.mxu0 0.0
      %1614 = vmatpush1.msra.mxu0 0.0
      %1615 = vmatprep.subr.mxu0 0.0
      %1616 = vmatpush1.msra.mxu0 0.0
      %1617 = vmatprep.subr.mxu0 0.0
      %1618 = vmatpush1.msra.mxu0 0.0
      %1619 = vmatprep.subr.mxu0 0.0
      %1620 = vmatpush1.msra.mxu0 0.0
      %1621 = vmatprep.subr.mxu0 0.0
      %1622 = vmatpush1.msra.mxu0 0.0
      %1623 = vmatprep.subr.mxu0 0.0
      %1624 = vmatpush1.msra.mxu0 0.0
      %1625 = vmatprep.subr.mxu0 0.0
      %1626 = vmatpush1.msra.mxu0 0.0
      %1627 = vmatprep.subr.mxu0 0.0
      %1628 = vmatpush1.msra.mxu0 0.0
      %1629 = vmatprep.subr.mxu0 0.0
      %1630 = vmatpush1.msra.mxu0 0.0
      %1631 = vmatprep.mubr.f32.mxu0 0.0
      %1632 = vmatmul.mubr.f32.gmra.mrb[0].mxu0 %v1556
      %v1633 = vpop.f32.mrb[0].mxu0
      %v1634 = vadd.f32 %v1537, %v1633
      %v1635 = vpop.f32.mrb[0].mxu0
      %1636 = vmatprep.mubr.f32.mxu0 0.0
      %1637 = vmatmul.mubr.f32.gmra.mrb[0].mxu0 %v1559
      %v1638 = vpop.f32.mrb[0].mxu0
      %v1639 = vadd.f32 %v1542, %v1638
      %v1640 = vpop.f32.mrb[0].mxu0
      %1641 = vmatprep.mubr.f32.mxu0 0.0
      %1642 = vmatmul.mubr.f32.gmra.mrb[0].mxu0 %v1562
      %v1643 = vpop.f32.mrb[0].mxu0
      %v1644 = vadd.f32 %v1547, %v1643
      %v1645 = vpop.f32.mrb[0].mxu0
      %1646 = vmatprep.mubr.f32.mxu0 0.0
      %1647 = vmatmul.mubr.f32.gmra.mrb[0].mxu0 %v1565
      %v1648 = vpop.f32.mrb[0].mxu0
      %v1649 = vadd.f32 %v1552, %v1648
      %v1650 = vpop.f32.mrb[0].mxu0
      %1651 = vdwg.mxu0
      %s1652 = scalar_lea.vmem %s4, 64
      %v1653 = vld [vmem:[%s1652] sm:$0xff]
      %v1654 = vld [vmem:[%s1652 + $0x8] sm:$0xff]
      %v1655 = vld [vmem:[%s1652 + $0x10] sm:$0xff]
      %v1656 = vld [vmem:[%s1652 + $0x18] sm:$0xff]
      %1657 = vrot.lane.b32.xlu0 %v1408, 120
      %v1658 = vpop.permute.xlu0 %1657
      %1659 = vrot.lane.b32.xlu0 %v1409, 120
      %v1660 = vpop.permute.xlu0 %1659
      %1661 = vrot.lane.b32.xlu0 %v1410, 120
      %v1662 = vpop.permute.xlu0 %1661
      %1663 = vrot.lane.b32.xlu0 %v1411, 120
      %v1664 = vpop.permute.xlu0 %1663
      %1665 = vrot.lane.b32.xlu0 %v1412, 120
      %v1666 = vpop.permute.xlu0 %1665
      %1667 = vrot.lane.b32.xlu0 %v1413, 120
      %v1668 = vpop.permute.xlu0 %1667
      %1669 = vrot.lane.b32.xlu0 %v1414, 120
      %v1670 = vpop.permute.xlu0 %1669
      %1671 = vrot.lane.b32.xlu0 %v1415, 120
      %v1672 = vpop.permute.xlu0 %1671
      %v1682 = vsel %vm1457, %v1653, 0
      %v1685 = vsel %vm1457, %v1654, 0
      %v1688 = vsel %vm1457, %v1655, 0
      %v1691 = vsel %vm1457, %v1656, 0
      %1693 = vmatprep.subr.mxu0 0.0
      %1694 = vmatpush1.msra.mxu0 %v1658
      %1695 = vmatprep.subr.mxu0 0.0
      %1696 = vmatpush1.msra.mxu0 %v1660
      %1697 = vmatprep.subr.mxu0 0.0
      %1698 = vmatpush1.msra.mxu0 %v1662
      %1699 = vmatprep.subr.mxu0 0.0
      %1700 = vmatpush1.msra.mxu0 %v1664
      %1701 = vmatprep.subr.mxu0 0.0
      %1702 = vmatpush1.msra.mxu0 %v1666
      %1703 = vmatprep.subr.mxu0 0.0
      %1704 = vmatpush1.msra.mxu0 %v1668
      %1705 = vmatprep.subr.mxu0 0.0
      %1706 = vmatpush1.msra.mxu0 %v1670
      %1707 = vmatprep.subr.mxu0 0.0
      %1708 = vmatpush1.msra.mxu0 %v1672
      %1709 = vmatprep.subr.mxu0 0.0
      %1710 = vmatpush1.msra.mxu0 0.0
      %1711 = vmatprep.subr.mxu0 0.0
      %1712 = vmatpush1.msra.mxu0 0.0
      %1713 = vmatprep.subr.mxu0 0.0
      %1714 = vmatpush1.msra.mxu0 0.0
      %1715 = vmatprep.subr.mxu0 0.0
      %1716 = vmatpush1.msra.mxu0 0.0
      %1717 = vmatprep.subr.mxu0 0.0
      %1718 = vmatpush1.msra.mxu0 0.0
      %1719 = vmatprep.subr.mxu0 0.0
      %1720 = vmatpush1.msra.mxu0 0.0
      %1721 = vmatprep.subr.mxu0 0.0
      %1722 = vmatpush1.msra.mxu0 0.0
      %1723 = vmatprep.subr.mxu0 0.0
      %1724 = vmatpush1.msra.mxu0 0.0
      %1725 = vmatprep.subr.mxu0 0.0
      %1726 = vmatpush1.msra.mxu0 0.0
      %1727 = vmatprep.subr.mxu0 0.0
      %1728 = vmatpush1.msra.mxu0 0.0
      %1729 = vmatprep.subr.mxu0 0.0
      %1730 = vmatpush1.msra.mxu0 0.0
      %1731 = vmatprep.subr.mxu0 0.0
      %1732 = vmatpush1.msra.mxu0 0.0
      %1733 = vmatprep.subr.mxu0 0.0
      %1734 = vmatpush1.msra.mxu0 0.0
      %1735 = vmatprep.subr.mxu0 0.0
      %1736 = vmatpush1.msra.mxu0 0.0
      %1737 = vmatprep.subr.mxu0 0.0
      %1738 = vmatpush1.msra.mxu0 0.0
      %1739 = vmatprep.subr.mxu0 0.0
      %1740 = vmatpush1.msra.mxu0 0.0
      %1741 = vmatprep.subr.mxu0 0.0
      %1742 = vmatpush1.msra.mxu0 0.0
      %1743 = vmatprep.subr.mxu0 0.0
      %1744 = vmatpush1.msra.mxu0 0.0
      %1745 = vmatprep.subr.mxu0 0.0
      %1746 = vmatpush1.msra.mxu0 0.0
      %1747 = vmatprep.subr.mxu0 0.0
      %1748 = vmatpush1.msra.mxu0 0.0
      %1749 = vmatprep.subr.mxu0 0.0
      %1750 = vmatpush1.msra.mxu0 0.0
      %1751 = vmatprep.subr.mxu0 0.0
      %1752 = vmatpush1.msra.mxu0 0.0
      %1753 = vmatprep.subr.mxu0 0.0
      %1754 = vmatpush1.msra.mxu0 0.0
      %1755 = vmatprep.subr.mxu0 0.0
      %1756 = vmatpush1.msra.mxu0 0.0
      %1757 = vmatprep.mubr.f32.mxu0 0.0
      %1758 = vmatmul.mubr.f32.gmra.mrb[0].mxu0 %v1682
      %v1759 = vpop.f32.mrb[0].mxu0
      %v1760 = vadd.f32 0.0, %v1759
      %v1761 = vpop.f32.mrb[0].mxu0
      %1762 = vmatprep.mubr.f32.mxu0 0.0
      %1763 = vmatmul.mubr.f32.gmra.mrb[0].mxu0 %v1685
      %v1764 = vpop.f32.mrb[0].mxu0
      %v1765 = vadd.f32 0.0, %v1764
      %v1766 = vpop.f32.mrb[0].mxu0
      %1767 = vmatprep.mubr.f32.mxu0 0.0
      %1768 = vmatmul.mubr.f32.gmra.mrb[0].mxu0 %v1688
      %v1769 = vpop.f32.mrb[0].mxu0
      %v1770 = vadd.f32 0.0, %v1769
      %v1771 = vpop.f32.mrb[0].mxu0
      %1772 = vmatprep.mubr.f32.mxu0 0.0
      %1773 = vmatmul.mubr.f32.gmra.mrb[0].mxu0 %v1691
      %v1774 = vpop.f32.mrb[0].mxu0
      %v1775 = vadd.f32 0.0, %v1774
      %v1776 = vpop.f32.mrb[0].mxu0
      %1777 = vdwg.mxu0
      %v1778 = vadd.f32 %v1634, %v1760
      %v1779 = vadd.f32 %v1639, %v1765
      %v1780 = vadd.f32 %v1644, %v1770
      %v1781 = vadd.f32 %v1649, %v1775
      %s1782 = scalar_lea.vmem %s4, 96
      %v1783 = vld [vmem:[%s1782] sm:$0xff]
      %v1784 = vld [vmem:[%s1782 + $0x8] sm:$0xff]
      %v1785 = vld [vmem:[%s1782 + $0x10] sm:$0xff]
      %v1786 = vld [vmem:[%s1782 + $0x18] sm:$0xff]
      %1787 = vrot.lane.b32.xlu0 %v1408, 119
      %v1788 = vpop.permute.xlu0 %1787
      %1789 = vrot.lane.b32.xlu0 %v1409, 119
      %v1790 = vpop.permute.xlu0 %1789
      %1791 = vrot.lane.b32.xlu0 %v1410, 119
      %v1792 = vpop.permute.xlu0 %1791
      %1793 = vrot.lane.b32.xlu0 %v1411, 119
      %v1794 = vpop.permute.xlu0 %1793
      %1795 = vrot.lane.b32.xlu0 %v1412, 119
      %v1796 = vpop.permute.xlu0 %1795
      %1797 = vrot.lane.b32.xlu0 %v1413, 119
      %v1798 = vpop.permute.xlu0 %1797
      %1799 = vrot.lane.b32.xlu0 %v1414, 119
      %v1800 = vpop.permute.xlu0 %1799
      %1801 = vrot.lane.b32.xlu0 %v1415, 119
      %v1802 = vpop.permute.xlu0 %1801
      %v1812 = vsel %vm1457, %v1783, 0
      %v1815 = vsel %vm1457, %v1784, 0
      %v1818 = vsel %vm1457, %v1785, 0
      %v1821 = vsel %vm1457, %v1786, 0
      %1823 = vmatprep.subr.mxu0 0.0
      %1824 = vmatpush1.msra.mxu0 %v1788
      %1825 = vmatprep.subr.mxu0 0.0
      %1826 = vmatpush1.msra.mxu0 %v1790
      %1827 = vmatprep.subr.mxu0 0.0
      %1828 = vmatpush1.msra.mxu0 %v1792
      %1829 = vmatprep.subr.mxu0 0.0
      %1830 = vmatpush1.msra.mxu0 %v1794
      %1831 = vmatprep.subr.mxu0 0.0
      %1832 = vmatpush1.msra.mxu0 %v1796
      %1833 = vmatprep.subr.mxu0 0.0
      %1834 = vmatpush1.msra.mxu0 %v1798
      %1835 = vmatprep.subr.mxu0 0.0
      %1836 = vmatpush1.msra.mxu0 %v1800
      %1837 = vmatprep.subr.mxu0 0.0
      %1838 = vmatpush1.msra.mxu0 %v1802
      %1839 = vmatprep.subr.mxu0 0.0
      %1840 = vmatpush1.msra.mxu0 0.0
      %1841 = vmatprep.subr.mxu0 0.0
      %1842 = vmatpush1.msra.mxu0 0.0
      %1843 = vmatprep.subr.mxu0 0.0
      %1844 = vmatpush1.msra.mxu0 0.0
      %1845 = vmatprep.subr.mxu0 0.0
      %1846 = vmatpush1.msra.mxu0 0.0
      %1847 = vmatprep.subr.mxu0 0.0
      %1848 = vmatpush1.msra.mxu0 0.0
      %1849 = vmatprep.subr.mxu0 0.0
      %1850 = vmatpush1.msra.mxu0 0.0
      %1851 = vmatprep.subr.mxu0 0.0
      %1852 = vmatpush1.msra.mxu0 0.0
      %1853 = vmatprep.subr.mxu0 0.0
      %1854 = vmatpush1.msra.mxu0 0.0
      %1855 = vmatprep.subr.mxu0 0.0
      %1856 = vmatpush1.msra.mxu0 0.0
      %1857 = vmatprep.subr.mxu0 0.0
      %1858 = vmatpush1.msra.mxu0 0.0
      %1859 = vmatprep.subr.mxu0 0.0
      %1860 = vmatpush1.msra.mxu0 0.0
      %1861 = vmatprep.subr.mxu0 0.0
      %1862 = vmatpush1.msra.mxu0 0.0
      %1863 = vmatprep.subr.mxu0 0.0
      %1864 = vmatpush1.msra.mxu0 0.0
      %1865 = vmatprep.subr.mxu0 0.0
      %1866 = vmatpush1.msra.mxu0 0.0
      %1867 = vmatprep.subr.mxu0 0.0
      %1868 = vmatpush1.msra.mxu0 0.0
      %1869 = vmatprep.subr.mxu0 0.0
      %1870 = vmatpush1.msra.mxu0 0.0
      %1871 = vmatprep.subr.mxu0 0.0
      %1872 = vmatpush1.msra.mxu0 0.0
      %1873 = vmatprep.subr.mxu0 0.0
      %1874 = vmatpush1.msra.mxu0 0.0
      %1875 = vmatprep.subr.mxu0 0.0
      %1876 = vmatpush1.msra.mxu0 0.0
      %1877 = vmatprep.subr.mxu0 0.0
      %1878 = vmatpush1.msra.mxu0 0.0
      %1879 = vmatprep.subr.mxu0 0.0
      %1880 = vmatpush1.msra.mxu0 0.0
      %1881 = vmatprep.subr.mxu0 0.0
      %1882 = vmatpush1.msra.mxu0 0.0
      %1883 = vmatprep.subr.mxu0 0.0
      %1884 = vmatpush1.msra.mxu0 0.0
      %1885 = vmatprep.subr.mxu0 0.0
      %1886 = vmatpush1.msra.mxu0 0.0
      %1887 = vmatprep.mubr.f32.mxu0 0.0
      %1888 = vmatmul.mubr.f32.gmra.mrb[0].mxu0 %v1812
      %v1889 = vpop.f32.mrb[0].mxu0
      %v1890 = vadd.f32 0.0, %v1889
      %v1891 = vpop.f32.mrb[0].mxu0
      %1892 = vmatprep.mubr.f32.mxu0 0.0
      %1893 = vmatmul.mubr.f32.gmra.mrb[0].mxu0 %v1815
      %v1894 = vpop.f32.mrb[0].mxu0
      %v1895 = vadd.f32 0.0, %v1894
      %v1896 = vpop.f32.mrb[0].mxu0
      %1897 = vmatprep.mubr.f32.mxu0 0.0
      %1898 = vmatmul.mubr.f32.gmra.mrb[0].mxu0 %v1818
      %v1899 = vpop.f32.mrb[0].mxu0
      %v1900 = vadd.f32 0.0, %v1899
      %v1901 = vpop.f32.mrb[0].mxu0
      %1902 = vmatprep.mubr.f32.mxu0 0.0
      %1903 = vmatmul.mubr.f32.gmra.mrb[0].mxu0 %v1821
      %v1904 = vpop.f32.mrb[0].mxu0
      %v1905 = vadd.f32 0.0, %v1904
      %v1906 = vpop.f32.mrb[0].mxu0
      %1907 = vdwg.mxu0
      %v1908 = vadd.f32 %v1778, %v1890
      %v1909 = vadd.f32 %v1779, %v1895
      %v1910 = vadd.f32 %v1780, %v1900
      %v1911 = vadd.f32 %v1781, %v1905
      %v1912 = vld [vmem:[%s5] sm:$0xff]
      %v1913 = vld [vmem:[%s5 + $0x8] sm:$0xff]
      %v1914 = vld [vmem:[%s5 + $0x10] sm:$0xff]
      %v1915 = vld [vmem:[%s5 + $0x18] sm:$0xff]
      %1917 = vset.pattern.permute.xlu0 0
      %1918 = vperm.xlu0 %1917, %v1912
      %v1919 = vpop.permute.xlu0 %1918
      %1922 = vset.pattern.permute.xlu0 0
      %1923 = vperm.xlu0 %1922, %v1913
      %v1924 = vpop.permute.xlu0 %1923
      %1927 = vset.pattern.permute.xlu0 0
      %1928 = vperm.xlu0 %1927, %v1914
      %v1929 = vpop.permute.xlu0 %1928
      %1932 = vset.pattern.permute.xlu0 0
      %1933 = vperm.xlu0 %1932, %v1915
      %v1934 = vpop.permute.xlu0 %1933
      %v1936 = vadd.f32 %v1908, %v1919
      %v1937 = vadd.f32 %v1909, %v1924
      %v1938 = vadd.f32 %v1910, %v1929
      %v1939 = vadd.f32 %v1911, %v1934
      %vm1940 = vcmask 64512
      %1941 = vst.msk [vmem:[%s251] sm:$0xff] %vm1940, %v1936
      %1942 = vst.msk [vmem:[%s251 + $0x8] sm:$0xff] %vm1940, %v1937
      %1943 = vst.msk [vmem:[%s251 + $0x10] sm:$0xff] %vm1940, %v1938
      %1944 = vst.msk [vmem:[%s251 + $0x18] sm:$0xff] %vm1940, %v1939
      %p1945 = scmp.lt.s32.totalorder %s17, 1
      %s1946 = scalar_select %p1945, %s17, 1
      %s1947 = smul.addr %s1946, 4
      %s1948 = smul.addr %s1947, 8
      %s1949 = scalar_lea.vmem %s6, %s1948
      // Predicated region
      $region45: #{_lambda_.3} parent=43 // pred_check
        %p1950 = pneg %p166
      $region46: #{_lambda_.3} parent=43 // pred_check_branch
        %1952 = sbr.rel (%p1950) target = $region48
      $region47: #{_lambda_.3} parent=43 // pred_region
        _
      $region48: #{_lambda_.3} parent=43 // pred_fallthru
        _
    $region44: #{_lambda_.3} parent=5 // pred_fallthru
      _
    %p1953 = scmp.le.s32.totalorder 2, %s12
    // Predicated region
    $region49: #{_lambda_.3} parent=5 // pred_check
      %p1954 = pneg %p1953
    $region50: #{_lambda_.3} parent=5 // pred_check_branch
      %1956 = sbr.rel (%p1954) target = $region52
    $region51: #{_lambda_.3} parent=5 // pred_region
      %s1957 = ssub.s32 %s12, 2
      // Predicated region
      $region53: #{_lambda_.3} parent=51 // pred_check
        %p1958 = pneg %p172
      $region54: #{_lambda_.3} parent=51 // pred_check_branch
        %1960 = sbr.rel (%p1958) target = $region56
      $region55: #{_lambda_.3} parent=51 // pred_region
        %p1961 = scmp.lt.s32.totalorder %s18, 1
        %s1962 = scalar_select %p1961, %s18, 1
        %s1963 = smul.addr %s1962, 4
        %s1964 = smul.addr %s1963, 8
        %s1965 = scalar_lea.vmem %s6, %s1964
      $region56: #{_lambda_.3} parent=51 // pred_fallthru
        _
    $region52: #{_lambda_.3} parent=5 // pred_fallthru
      _
  $region6: #{_lambda_.3} parent=0 // loop_footer
    %s16 = sadd.s32 1, %s12
  $region7: #{_lambda_.3} parent=0 // loop_footer_branch
    %11 = sbr.rel target = $region3
  $region8: #{_lambda_.3} parent=0 // loop_exit
    _

</llo_original>
